<compile_context>
chip_gen: v7x
topology: tpu7x:2x2x1
jax: 0.10.0
libtpu: 0.0.40
codegen_flags: <defaults>
</compile_context>

<pallas_src>
import functools

import jax
import jax.numpy as jnp
from jax.experimental import pallas as pl
from jax.experimental.pallas import tpu as pltpu


C_FEAT = 128                      # stand-in feature width: lane-dense, no padded bytes streamed
IMAGENET_MEAN = jnp.array([0.485, 0.456, 0.406], jnp.float32)
IMAGENET_STD = jnp.array([0.229, 0.224, 0.225], jnp.float32)


def _vmem_config():
    """(vmem_limit_bytes, per-feature-block byte budget), per TPU generation."""
    try:
        cap = int(pltpu.get_tpu_info().vmem_capacity_bytes)
    except Exception:
        cap = 64 << 20                      # conservative fallback if the query fails
    if cap >= (100 << 20):                  # v5e / v6e: 128 MiB physical VMEM
        return 96 << 20, 5 << 20
    return 40 << 20, 2 << 20                # v7x: 64 MiB VMEM per TensorCore


def _pick_nb(n, hw, c, itemsize, budget):
    """Largest divisor of n whose (nb, hw, c) block fits `budget`; prefers an even
    block count so the leading grid axis can be sharded across 2 TensorCores (v7x)."""
    fits = [d for d in range(1, n + 1) if n % d == 0 and d * hw * c * itemsize <= budget]
    if not fits:
        # TODO(synk): add an hw-tiled / online-softmax path for the case where even a
        # single sample's (1, hw, C) block exceeds VMEM (hw >~ 32K, first on v7x).
        return 1
    even = [d for d in fits if (n // d) % 2 == 0]
    return max(even) if even else max(fits)


# --------------------------- fused per-layer kernel ---------------------------

def _fused_conv_softmaxmse_kernel(xp_ref, xt_ref, wp_ref, wt_ref, bp_ref, bt_ref,
                                  fp_ref, ft_ref, acc_ref, *, hw, nb, small_k):
    """One grid step = nb whole samples of one stage, pred + target branches.

    Computes y = relu(x @ w + b) (bf16 features for the next stage) and, in the same
    pass, accumulates per-lane partials of sum((SoftMaxNorm(y_p) - SoftMaxNorm(y_t))**2)
    into a per-core resident (1, 1, C) f32 accumulator.
    """
    j = pl.program_id(1)

    @pl.when(j == 0)
    def _():
        acc_ref[...] = jnp.zeros_like(acc_ref)

    wp = wp_ref[...]
    wt = wt_ref[...]
    bp = bp_ref[...]                                   # (1, C) f32
    bt = bt_ref[...]

    def conv_relu(x, w, b):
        # x: (hw, cin), w: (cin, C), b: (1, C); f32 accumulation.
        if small_k:
            # Cin=3 first stage (norm folded into w/b): K is tiny, a dense MXU matmul
            # is wasted -> a few VPU broadcast-MACs instead.
            xf = x.astype(jnp.float32)
            wf = w.astype(jnp.float32)
            y = jnp.zeros((x.shape[0], w.shape[1]), jnp.float32) + b
            for c in range(x.shape[-1]):
                y = y + xf[:, c:c + 1] * wf[c:c + 1, :]
        else:
            y = jnp.dot(x, w, preferred_element_type=jnp.float32) + b
        return jnp.maximum(y, 0.0)

    def softmax_norm(y):
        # softmax over the spatial (sublane) axis, * H*W; math stays in f32.
        m = jnp.max(y, axis=0, keepdims=True)
        e = jnp.exp(y - m)
        s = jnp.sum(e, axis=0, keepdims=True)
        # one EUP reciprocal per (sample, channel); the * H*W scale folds into it.
        # (approx=True -> tiny relative error vs. the exact PyTorch softmax.)
        return e * (pl.reciprocal(s, approx=True) * float(hw))

    def body(i, carry):
        yp = conv_relu(xp_ref[i], wp, bp)
        yt = conv_relu(xt_ref[i], wt, bt)
        fp_ref[i] = yp.astype(fp_ref.dtype)            # lane-dense bf16 feature stores
        ft_ref[i] = yt.astype(ft_ref.dtype)
        d = softmax_norm(yp) - softmax_norm(yt)
        return carry + jnp.sum(d * d, axis=0, keepdims=True)    # (1, C) lane partials

    part = jax.lax.fori_loop(0, nb, body, jnp.zeros((1, wp.shape[1]), jnp.float32))
    acc_ref[...] += part[None]                         # (1, 1, C) resident accumulator


def _fused_layer(xp, xt, wp, wt, bp, bt, *, vmem_limit, block_budget):
    """conv1x1+ReLU features for both branches + fused SoftMaxNorm/MSE partials."""
    n, hw, cin = xp.shape
    cout = wp.shape[1]
    nb = _pick_nb(n, hw, cout, 2, block_budget)        # budget the bf16 feature block
    n_blocks = n // nb
    ncores = 2 if n_blocks % 2 == 0 else 1             # v7x: shard blocks across both TCs
    n_inner = n_blocks // ncores
    small_k = cin < 16

    kern = functools.partial(_fused_conv_softmaxmse_kernel, hw=hw, nb=nb, small_k=small_k)
    x_spec = pl.BlockSpec((nb, hw, cin), lambda p, j: (p * n_inner + j, 0, 0))
    f_spec = pl.BlockSpec((nb, hw, cout), lambda p, j: (p * n_inner + j, 0, 0))
    w_spec = pl.BlockSpec((cin, cout), lambda p, j: (0, 0))      # resident weights
    b_spec = pl.BlockSpec((1, cout), lambda p, j: (0, 0))        # resident bias

    fp, ft, acc = pl.pallas_call(
        kern,
        out_shape=(jax.ShapeDtypeStruct((n, hw, cout), jnp.bfloat16),
                   jax.ShapeDtypeStruct((n, hw, cout), jnp.bfloat16),
                   jax.ShapeDtypeStruct((ncores, 1, cout), jnp.float32)),
        grid_spec=pltpu.PrefetchScalarGridSpec(
            num_scalar_prefetch=0,
            grid=(ncores, n_inner),
            in_specs=[x_spec, x_spec, w_spec, w_spec, b_spec, b_spec],
            out_specs=[f_spec, f_spec,
                       pl.BlockSpec((1, 1, cout), lambda p, j: (p, 0, 0))],
        ),
        compiler_params=pltpu.CompilerParams(
            dimension_semantics=("parallel", "arbitrary"),
            vmem_limit_bytes=vmem_limit,
        ),
    )(xp, xt, wp, wt, bp, bt)
    return fp, ft, acc


# ----------------------------- XLA glue (cheap) ------------------------------

def _pool_image_nchw_to_rows(img):
    """2x2 avg-pool in NCHW, THEN transpose to NHWC (4x less data), flatten spatial."""
    n, c, h, w = img.shape
    x = img.reshape(n, c, h // 2, 2, w // 2, 2).mean(axis=(3, 5))   # (n, c, h/2, w/2)
    x = jnp.transpose(x, (0, 2, 3, 1))                              # (n, h/2, w/2, c)
    return x.reshape(n, (h // 2) * (w // 2), c)                     # (n, hw, 3)


def _pool_feats(f, h, w):
    """2x2 avg-pool of (n, h*w, C) bf16 features -> (n, (h/2)*(w/2), C)."""
    n, _, c = f.shape
    x = f.reshape(n, h, w, c).astype(jnp.float32)
    x = x.reshape(n, h // 2, 2, w // 2, 2, c).mean(axis=(2, 4))
    return x.astype(f.dtype).reshape(n, (h // 2) * (w // 2), c)


def _make_standin_weights(key, n_stages, in_ch=3, width=C_FEAT):
    ws = []
    c = in_ch
    for i in range(n_stages):
        k = jax.random.fold_in(key, i)
        ws.append(jax.random.normal(k, (c, width), jnp.float32) / jnp.sqrt(float(c)))
        c = width
    return ws


# ------------------------------ SWAGContentLoss ------------------------------

class SWAGContentLossPallas:
    def __init__(self, layers=("layer2", "layer3", "layer4"),
                 pred_mean=(0.5, 0.5, 0.5), pred_std=(0.225, 0.225, 0.225), key=None):
        assert layers is not None and len(layers) > 0
        n = len(layers)
        weights = list(reversed([1.0 / 2 ** i for i in range(n)]))
        s = sum(weights)
        weights = [w / s for w in weights]
        # SWAGContentLoss: keys are layers[:-1] + ['output']
        self.layer_weights = dict(zip(list(layers[:-1]) + ["output"], weights))

        self.vmem_limit, self.block_budget = _vmem_config()

        key = jax.random.PRNGKey(42) if key is None else key
        ws = _make_standin_weights(key, n)

        # Fold GAN-denorm + ImageNet normalization into the first conv, per branch:
        #   pred:   (x*ps + pm - mean)/std  => scale ps/std,  offset (pm-mean)/std
        #   target: (x       - mean)/std    => scale 1/std,   offset -mean/std
        pm = jnp.array(pred_mean, jnp.float32)
        ps = jnp.array(pred_std, jnp.float32)
        a_p = ps / IMAGENET_STD
        o_p = (pm - IMAGENET_MEAN) / IMAGENET_STD
        a_t = 1.0 / IMAGENET_STD
        o_t = -IMAGENET_MEAN / IMAGENET_STD
        w0 = ws[0]                                                   # (3, C_FEAT)
        self.w0_p = (a_p[:, None] * w0).astype(jnp.float32)
        self.w0_t = (a_t[:, None] * w0).astype(jnp.float32)
        self.b0_p = (o_p @ w0)[None, :].astype(jnp.float32)          # (1, C_FEAT)
        self.b0_t = (o_t @ w0)[None, :].astype(jnp.float32)
        self.w_rest = [w.astype(jnp.bfloat16) for w in ws[1:]]       # MXU stages: bf16
        self.zero_bias = jnp.zeros((1, C_FEAT), jnp.float32)

    def __call__(self, pred, target):
        # pred/target: (N, 3, H, W) NCHW (PyTorch convention).
        n, _, h_in, w_in = pred.shape
        target = jax.lax.stop_gradient(target)        # `with torch.no_grad()` branch
        xp = _pool_image_nchw_to_rows(pred.astype(jnp.float32))
        xt = _pool_image_nchw_to_rows(target.astype(jnp.float32))
        h, w = h_in // 2, w_in // 2

        loss = jnp.float32(0.0)
        fp = ft = None
        for idx, (name, layer_w) in enumerate(self.layer_weights.items()):
            if idx == 0:
                wp, wt, bp, bt = self.w0_p, self.w0_t, self.b0_p, self.b0_t
            else:
                xp = _pool_feats(fp, h, w)
                xt = _pool_feats(ft, h, w)
                h, w = h // 2, w // 2
                wp = wt = self.w_rest[idx - 1]
                bp = bt = self.zero_bias
            hw = h * w
            fp, ft, acc = _fused_layer(xp, xt, wp, wt, bp, bt,
                                       vmem_limit=self.vmem_limit,
                                       block_budget=self.block_budget)
            # nn.MSELoss(reduction='mean') over the (N, C, H, W) feature map
            loss = loss + layer_w * (jnp.sum(acc) / (n * C_FEAT * hw))

        # TODO(synk): forward-only; no custom_vjp is defined for the fused pallas_call
        # (jax.grad through the pl.when-gated resident accumulator is not supported).
        return loss


# ----------------------------------- main ------------------------------------

if __name__ == "__main__":
    key = jax.random.PRNGKey(0)
    k1, k2 = jax.random.split(key)
    # NCHW, matching the PyTorch conv input convention
    pred = jax.random.normal(k1, (2, 3, 16, 16), jnp.float32) * 0.5
    target = jax.random.uniform(k2, (2, 3, 16, 16), jnp.float32)

    loss_fn = SWAGContentLossPallas(layers=("layer2", "layer3", "layer4"))
    loss = jax.jit(lambda a, b: loss_fn(a, b))(pred, target)
    jax.block_until_ready(loss)
    assert loss.shape == () and bool(jnp.isfinite(loss))
    print("KERNEL_OK")
</pallas_src>

<mosaic_0001>
module attributes {stable_mosaic.version = 11 : i64} {
  func.func @_fused_conv_softmaxmse_kernel(%arg0: i32, %arg1: i32, %arg2: memref<1x64x3xf32, #tpu.memory_space<vmem>>, %arg3: memref<1x64x3xf32, #tpu.memory_space<vmem>>, %arg4: memref<3x128xf32, #tpu.memory_space<vmem>>, %arg5: memref<3x128xf32, #tpu.memory_space<vmem>>, %arg6: memref<1x128xf32, #tpu.memory_space<vmem>>, %arg7: memref<1x128xf32, #tpu.memory_space<vmem>>, %arg8: memref<1x64x128xbf16, #tpu.memory_space<vmem>>, %arg9: memref<1x64x128xbf16, #tpu.memory_space<vmem>>, %arg10: memref<1x1x128xf32, #tpu.memory_space<vmem>>) attributes {dimension_semantics = [#tpu.dimension_semantics<parallel>, #tpu.dimension_semantics<arbitrary>], iteration_bounds = array<i64: 2, 1>, scalar_prefetch = 0 : i64, scratch_operands = 0 : i64, tpu.core_type = #tpu.core_type<tc>, window_params = [{transform_indices = @transform_0, window_bounds = array<i64: 1, 64, 3>}, {transform_indices = @transform_1, window_bounds = array<i64: 1, 64, 3>}, {pipeline_mode = #tpu.pipeline_mode<synchronous>, transform_indices = @transform_2, window_bounds = array<i64: 3, 128>}, {pipeline_mode = #tpu.pipeline_mode<synchronous>, transform_indices = @transform_3, window_bounds = array<i64: 3, 128>}, {pipeline_mode = #tpu.pipeline_mode<synchronous>, transform_indices = @transform_4, window_bounds = array<i64: 1, 128>}, {pipeline_mode = #tpu.pipeline_mode<synchronous>, transform_indices = @transform_5, window_bounds = array<i64: 1, 128>}, {transform_indices = @transform_6, window_bounds = array<i64: 1, 64, 128>}, {transform_indices = @transform_7, window_bounds = array<i64: 1, 64, 128>}, {transform_indices = @transform_8, window_bounds = array<i64: 1, 1, 128>}]} {
    %c0_i32 = arith.constant 0 : i32
    %0 = arith.cmpi eq, %arg1, %c0_i32 : i32
    %1 = arith.extui %0 : i1 to i32
    %c0_i32_0 = arith.constant 0 : i32
    %2 = arith.cmpi ne, %1, %c0_i32_0 : i32
    scf.if %2 {
      %cst_34 = arith.constant 0.000000e+00 : f32
      %103 = vector.broadcast %cst_34 : f32 to vector<1x1x128xf32>
      %c0_35 = arith.constant 0 : index
      %c0_36 = arith.constant 0 : index
      %c0_37 = arith.constant 0 : index
      %104 = vector.load %arg10[%c0_35, %c0_36, %c0_37] : memref<1x1x128xf32, #tpu.memory_space<vmem>>, vector<1x1x128xf32>
      tpu.vector_store %arg10[%c0_35, %c0_36, %c0_37], %103 {strides = array<i32>} : memref<1x1x128xf32, #tpu.memory_space<vmem>>, vector<1x1x128xf32>,
    } else {
    }
    %c0 = arith.constant 0 : index
    %c0_1 = arith.constant 0 : index
    %3 = vector.load %arg4[%c0, %c0_1] : memref<3x128xf32, #tpu.memory_space<vmem>>, vector<3x128xf32>
    %c0_2 = arith.constant 0 : index
    %c0_3 = arith.constant 0 : index
    %4 = vector.load %arg5[%c0_2, %c0_3] : memref<3x128xf32, #tpu.memory_space<vmem>>, vector<3x128xf32>
    %c0_4 = arith.constant 0 : index
    %c0_5 = arith.constant 0 : index
    %5 = vector.load %arg6[%c0_4, %c0_5] : memref<1x128xf32, #tpu.memory_space<vmem>>, vector<1x128xf32>
    %c0_6 = arith.constant 0 : index
    %c0_7 = arith.constant 0 : index
    %6 = vector.load %arg7[%c0_6, %c0_7] : memref<1x128xf32, #tpu.memory_space<vmem>>, vector<1x128xf32>
    %cst = arith.constant 0.000000e+00 : f32
    %7 = vector.broadcast %cst : f32 to vector<1x128xf32>
    %c0_i32_8 = arith.constant 0 : i32
    %8 = arith.index_cast %c0_i32_8 : i32 to index
    %c0_9 = arith.constant 0 : index
    %c0_10 = arith.constant 0 : index
    %9 = vector.load %arg2[%8, %c0_9, %c0_10] : memref<1x64x3xf32, #tpu.memory_space<vmem>>, vector<1x64x3xf32>
    %10 = vector.shape_cast %9 : vector<1x64x3xf32> to vector<64x3xf32>
    %cst_11 = arith.constant 0.000000e+00 : f32
    %11 = vector.broadcast %cst_11 : f32 to vector<64x128xf32>
    %12 = vector.broadcast %5 : vector<1x128xf32> to vector<64x128xf32>
    %13 = arith.addf %11, %12 : vector<64x128xf32>
    %14 = vector.extract_strided_slice %10 {offsets = [0, 0], sizes = [64, 1], strides = [1, 1]} : vector<64x3xf32> to vector<64x1xf32>
    %15 = vector.extract_strided_slice %3 {offsets = [0, 0], sizes = [1, 128], strides = [1, 1]} : vector<3x128xf32> to vector<1x128xf32>
    %16 = vector.broadcast %14 : vector<64x1xf32> to vector<64x128xf32>
    %17 = vector.broadcast %15 : vector<1x128xf32> to vector<64x128xf32>
    %18 = arith.mulf %16, %17 : vector<64x128xf32>
    %19 = arith.addf %13, %18 : vector<64x128xf32>
    %20 = vector.extract_strided_slice %10 {offsets = [0, 1], sizes = [64, 1], strides = [1, 1]} : vector<64x3xf32> to vector<64x1xf32>
    %21 = vector.extract_strided_slice %3 {offsets = [1, 0], sizes = [1, 128], strides = [1, 1]} : vector<3x128xf32> to vector<1x128xf32>
    %22 = vector.broadcast %20 : vector<64x1xf32> to vector<64x128xf32>
    %23 = vector.broadcast %21 : vector<1x128xf32> to vector<64x128xf32>
    %24 = arith.mulf %22, %23 : vector<64x128xf32>
    %25 = arith.addf %19, %24 : vector<64x128xf32>
    %26 = vector.extract_strided_slice %10 {offsets = [0, 2], sizes = [64, 1], strides = [1, 1]} : vector<64x3xf32> to vector<64x1xf32>
    %27 = vector.extract_strided_slice %3 {offsets = [2, 0], sizes = [1, 128], strides = [1, 1]} : vector<3x128xf32> to vector<1x128xf32>
    %28 = vector.broadcast %26 : vector<64x1xf32> to vector<64x128xf32>
    %29 = vector.broadcast %27 : vector<1x128xf32> to vector<64x128xf32>
    %30 = arith.mulf %28, %29 : vector<64x128xf32>
    %31 = arith.addf %25, %30 : vector<64x128xf32>
    %cst_12 = arith.constant 0.000000e+00 : f32
    %32 = vector.broadcast %cst_12 : f32 to vector<64x128xf32>
    %33 = arith.maximumf %31, %32 : vector<64x128xf32>
    %34 = arith.index_cast %c0_i32_8 : i32 to index
    %c0_13 = arith.constant 0 : index
    %c0_14 = arith.constant 0 : index
    %35 = vector.load %arg3[%34, %c0_13, %c0_14] : memref<1x64x3xf32, #tpu.memory_space<vmem>>, vector<1x64x3xf32>
    %36 = vector.shape_cast %35 : vector<1x64x3xf32> to vector<64x3xf32>
    %cst_15 = arith.constant 0.000000e+00 : f32
    %37 = vector.broadcast %cst_15 : f32 to vector<64x128xf32>
    %38 = vector.broadcast %6 : vector<1x128xf32> to vector<64x128xf32>
    %39 = arith.addf %37, %38 : vector<64x128xf32>
    %40 = vector.extract_strided_slice %36 {offsets = [0, 0], sizes = [64, 1], strides = [1, 1]} : vector<64x3xf32> to vector<64x1xf32>
    %41 = vector.extract_strided_slice %4 {offsets = [0, 0], sizes = [1, 128], strides = [1, 1]} : vector<3x128xf32> to vector<1x128xf32>
    %42 = vector.broadcast %40 : vector<64x1xf32> to vector<64x128xf32>
    %43 = vector.broadcast %41 : vector<1x128xf32> to vector<64x128xf32>
    %44 = arith.mulf %42, %43 : vector<64x128xf32>
    %45 = arith.addf %39, %44 : vector<64x128xf32>
    %46 = vector.extract_strided_slice %36 {offsets = [0, 1], sizes = [64, 1], strides = [1, 1]} : vector<64x3xf32> to vector<64x1xf32>
    %47 = vector.extract_strided_slice %4 {offsets = [1, 0], sizes = [1, 128], strides = [1, 1]} : vector<3x128xf32> to vector<1x128xf32>
    %48 = vector.broadcast %46 : vector<64x1xf32> to vector<64x128xf32>
    %49 = vector.broadcast %47 : vector<1x128xf32> to vector<64x128xf32>
    %50 = arith.mulf %48, %49 : vector<64x128xf32>
    %51 = arith.addf %45, %50 : vector<64x128xf32>
    %52 = vector.extract_strided_slice %36 {offsets = [0, 2], sizes = [64, 1], strides = [1, 1]} : vector<64x3xf32> to vector<64x1xf32>
    %53 = vector.extract_strided_slice %4 {offsets = [2, 0], sizes = [1, 128], strides = [1, 1]} : vector<3x128xf32> to vector<1x128xf32>
    %54 = vector.broadcast %52 : vector<64x1xf32> to vector<64x128xf32>
    %55 = vector.broadcast %53 : vector<1x128xf32> to vector<64x128xf32>
    %56 = arith.mulf %54, %55 : vector<64x128xf32>
    %57 = arith.addf %51, %56 : vector<64x128xf32>
    %cst_16 = arith.constant 0.000000e+00 : f32
    %58 = vector.broadcast %cst_16 : f32 to vector<64x128xf32>
    %59 = arith.maximumf %57, %58 : vector<64x128xf32>
    %60 = arith.truncf %33 : vector<64x128xf32> to vector<64x128xbf16>
    %61 = arith.index_cast %c0_i32_8 : i32 to index
    %c0_17 = arith.constant 0 : index
    %c0_18 = arith.constant 0 : index
    %62 = vector.load %arg8[%61, %c0_17, %c0_18] : memref<1x64x128xbf16, #tpu.memory_space<vmem>>, vector<1x64x128xbf16>
    %63 = vector.shape_cast %62 : vector<1x64x128xbf16> to vector<64x128xbf16>
    %64 = vector.shape_cast %60 : vector<64x128xbf16> to vector<1x64x128xbf16>
    tpu.vector_store %arg8[%61, %c0_17, %c0_18], %64 {strides = array<i32>} : memref<1x64x128xbf16, #tpu.memory_space<vmem>>, vector<1x64x128xbf16>,
    %65 = arith.truncf %59 : vector<64x128xf32> to vector<64x128xbf16>
    %66 = arith.index_cast %c0_i32_8 : i32 to index
    %c0_19 = arith.constant 0 : index
    %c0_20 = arith.constant 0 : index
    %67 = vector.load %arg9[%66, %c0_19, %c0_20] : memref<1x64x128xbf16, #tpu.memory_space<vmem>>, vector<1x64x128xbf16>
    %68 = vector.shape_cast %67 : vector<1x64x128xbf16> to vector<64x128xbf16>
    %69 = vector.shape_cast %65 : vector<64x128xbf16> to vector<1x64x128xbf16>
    tpu.vector_store %arg9[%66, %c0_19, %c0_20], %69 {strides = array<i32>} : memref<1x64x128xbf16, #tpu.memory_space<vmem>>, vector<1x64x128xbf16>,
    %cst_21 = arith.constant dense<0xFF800000> : vector<128xf32>
    %70 = vector.multi_reduction <maximumf>, %33, %cst_21 [0] : vector<64x128xf32> to vector<128xf32>
    %71 = vector.shape_cast %70 : vector<128xf32> to vector<1x128xf32>
    %72 = vector.broadcast %71 : vector<1x128xf32> to vector<64x128xf32>
    %73 = arith.subf %33, %72 : vector<64x128xf32>
    %74 = math.exp %73 : vector<64x128xf32>
    %cst_22 = arith.constant dense<0.000000e+00> : vector<128xf32>
    %75 = vector.multi_reduction <add>, %74, %cst_22 [0] : vector<64x128xf32> to vector<128xf32>
    %76 = vector.shape_cast %75 : vector<128xf32> to vector<1x128xf32>
    %77 = tpu.reciprocal %76 {approx = true} : vector<1x128xf32> -> vector<1x128xf32>
    %cst_23 = arith.constant 6.400000e+01 : f32
    %78 = vector.broadcast %cst_23 : f32 to vector<1x128xf32>
    %79 = arith.mulf %77, %78 : vector<1x128xf32>
    %80 = vector.broadcast %79 : vector<1x128xf32> to vector<64x128xf32>
    %81 = arith.mulf %74, %80 : vector<64x128xf32>
    %cst_24 = arith.constant dense<0xFF800000> : vector<128xf32>
    %82 = vector.multi_reduction <maximumf>, %59, %cst_24 [0] : vector<64x128xf32> to vector<128xf32>
    %83 = vector.shape_cast %82 : vector<128xf32> to vector<1x128xf32>
    %84 = vector.broadcast %83 : vector<1x128xf32> to vector<64x128xf32>
    %85 = arith.subf %59, %84 : vector<64x128xf32>
    %86 = math.exp %85 : vector<64x128xf32>
    %cst_25 = arith.constant dense<0.000000e+00> : vector<128xf32>
    %87 = vector.multi_reduction <add>, %86, %cst_25 [0] : vector<64x128xf32> to vector<128xf32>
    %88 = vector.shape_cast %87 : vector<128xf32> to vector<1x128xf32>
    %89 = tpu.reciprocal %88 {approx = true} : vector<1x128xf32> -> vector<1x128xf32>
    %cst_26 = arith.constant 6.400000e+01 : f32
    %90 = vector.broadcast %cst_26 : f32 to vector<1x128xf32>
    %91 = arith.mulf %89, %90 : vector<1x128xf32>
    %92 = vector.broadcast %91 : vector<1x128xf32> to vector<64x128xf32>
    %93 = arith.mulf %86, %92 : vector<64x128xf32>
    %94 = arith.subf %81, %93 : vector<64x128xf32>
    %95 = arith.mulf %94, %94 : vector<64x128xf32>
    %cst_27 = arith.constant dense<0.000000e+00> : vector<128xf32>
    %96 = vector.multi_reduction <add>, %95, %cst_27 [0] : vector<64x128xf32> to vector<128xf32>
    %97 = vector.shape_cast %96 : vector<128xf32> to vector<1x128xf32>
    %98 = arith.addf %7, %97 : vector<1x128xf32>
    %c1_i32 = arith.constant 1 : i32
    %c0_28 = arith.constant 0 : index
    %c0_29 = arith.constant 0 : index
    %c0_30 = arith.constant 0 : index
    %99 = vector.load %arg10[%c0_28, %c0_29, %c0_30] : memref<1x1x128xf32, #tpu.memory_space<vmem>>, vector<1x1x128xf32>
    %100 = vector.shape_cast %98 : vector<1x128xf32> to vector<1x1x128xf32>
    %101 = arith.addf %99, %100 : vector<1x1x128xf32>
    %c0_31 = arith.constant 0 : index
    %c0_32 = arith.constant 0 : index
    %c0_33 = arith.constant 0 : index
    %102 = vector.load %arg10[%c0_31, %c0_32, %c0_33] : memref<1x1x128xf32, #tpu.memory_space<vmem>>, vector<1x1x128xf32>
    tpu.vector_store %arg10[%c0_31, %c0_32, %c0_33], %101 {strides = array<i32>} : memref<1x1x128xf32, #tpu.memory_space<vmem>>, vector<1x1x128xf32>,
    return
  }
  func.func @transform_0(%arg0: i32, %arg1: i32) -> (i32, i32, i32) {
    %c1_i32 = arith.constant 1 : i32
    %0 = arith.muli %arg0, %c1_i32 : i32
    %1 = arith.addi %0, %arg1 : i32
    %c0_i32 = arith.constant 0 : i32
    %c0_i32_0 = arith.constant 0 : i32
    %c0_i32_1 = arith.constant 0 : i32
    return %1, %c0_i32, %c0_i32_0 : i32, i32, i32
  }
  func.func @transform_1(%arg0: i32, %arg1: i32) -> (i32, i32, i32) {
    %c1_i32 = arith.constant 1 : i32
    %0 = arith.muli %arg0, %c1_i32 : i32
    %1 = arith.addi %0, %arg1 : i32
    %c0_i32 = arith.constant 0 : i32
    %c0_i32_0 = arith.constant 0 : i32
    %c0_i32_1 = arith.constant 0 : i32
    return %1, %c0_i32, %c0_i32_0 : i32, i32, i32
  }
  func.func @transform_2(%arg0: i32, %arg1: i32) -> (i32, i32) {
    %c0_i32 = arith.constant 0 : i32
    %c0_i32_0 = arith.constant 0 : i32
    %c0_i32_1 = arith.constant 0 : i32
    return %c0_i32, %c0_i32_0 : i32, i32
  }
  func.func @transform_3(%arg0: i32, %arg1: i32) -> (i32, i32) {
    %c0_i32 = arith.constant 0 : i32
    %c0_i32_0 = arith.constant 0 : i32
    %c0_i32_1 = arith.constant 0 : i32
    return %c0_i32, %c0_i32_0 : i32, i32
  }
  func.func @transform_4(%arg0: i32, %arg1: i32) -> (i32, i32) {
    %c0_i32 = arith.constant 0 : i32
    %c0_i32_0 = arith.constant 0 : i32
    %c0_i32_1 = arith.constant 0 : i32
    return %c0_i32, %c0_i32_0 : i32, i32
  }
  func.func @transform_5(%arg0: i32, %arg1: i32) -> (i32, i32) {
    %c0_i32 = arith.constant 0 : i32
    %c0_i32_0 = arith.constant 0 : i32
    %c0_i32_1 = arith.constant 0 : i32
    return %c0_i32, %c0_i32_0 : i32, i32
  }
  func.func @transform_6(%arg0: i32, %arg1: i32) -> (i32, i32, i32) {
    %c1_i32 = arith.constant 1 : i32
    %0 = arith.muli %arg0, %c1_i32 : i32
    %1 = arith.addi %0, %arg1 : i32
    %c0_i32 = arith.constant 0 : i32
    %c0_i32_0 = arith.constant 0 : i32
    %c0_i32_1 = arith.constant 0 : i32
    return %1, %c0_i32, %c0_i32_0 : i32, i32, i32
  }
  func.func @transform_7(%arg0: i32, %arg1: i32) -> (i32, i32, i32) {
    %c1_i32 = arith.constant 1 : i32
    %0 = arith.muli %arg0, %c1_i32 : i32
    %1 = arith.addi %0, %arg1 : i32
    %c0_i32 = arith.constant 0 : i32
    %c0_i32_0 = arith.constant 0 : i32
    %c0_i32_1 = arith.constant 0 : i32
    return %1, %c0_i32, %c0_i32_0 : i32, i32, i32
  }
  func.func @transform_8(%arg0: i32, %arg1: i32) -> (i32, i32, i32) {
    %c0_i32 = arith.constant 0 : i32
    %c0_i32_0 = arith.constant 0 : i32
    %c0_i32_1 = arith.constant 0 : i32
    return %arg0, %c0_i32, %c0_i32_0 : i32, i32, i32
  }
}

module attributes {stable_mosaic.version = 11 : i64} {
  func.func @_fused_conv_softmaxmse_kernel(%arg0: i32, %arg1: i32, %arg2: memref<1x16x128xbf16, #tpu.memory_space<vmem>>, %arg3: memref<1x16x128xbf16, #tpu.memory_space<vmem>>, %arg4: memref<128x128xbf16, #tpu.memory_space<vmem>>, %arg5: memref<128x128xbf16, #tpu.memory_space<vmem>>, %arg6: memref<1x128xf32, #tpu.memory_space<vmem>>, %arg7: memref<1x128xf32, #tpu.memory_space<vmem>>, %arg8: memref<1x16x128xbf16, #tpu.memory_space<vmem>>, %arg9: memref<1x16x128xbf16, #tpu.memory_space<vmem>>, %arg10: memref<1x1x128xf32, #tpu.memory_space<vmem>>) attributes {dimension_semantics = [#tpu.dimension_semantics<parallel>, #tpu.dimension_semantics<arbitrary>], iteration_bounds = array<i64: 2, 1>, scalar_prefetch = 0 : i64, scratch_operands = 0 : i64, tpu.core_type = #tpu.core_type<tc>, window_params = [{transform_indices = @transform_0, window_bounds = array<i64: 1, 16, 128>}, {transform_indices = @transform_1, window_bounds = array<i64: 1, 16, 128>}, {pipeline_mode = #tpu.pipeline_mode<synchronous>, transform_indices = @transform_2, window_bounds = array<i64: 128, 128>}, {pipeline_mode = #tpu.pipeline_mode<synchronous>, transform_indices = @transform_3, window_bounds = array<i64: 128, 128>}, {pipeline_mode = #tpu.pipeline_mode<synchronous>, transform_indices = @transform_4, window_bounds = array<i64: 1, 128>}, {pipeline_mode = #tpu.pipeline_mode<synchronous>, transform_indices = @transform_5, window_bounds = array<i64: 1, 128>}, {transform_indices = @transform_6, window_bounds = array<i64: 1, 16, 128>}, {transform_indices = @transform_7, window_bounds = array<i64: 1, 16, 128>}, {transform_indices = @transform_8, window_bounds = array<i64: 1, 1, 128>}]} {
    %c0_i32 = arith.constant 0 : i32
    %0 = arith.cmpi eq, %arg1, %c0_i32 : i32
    %1 = arith.extui %0 : i1 to i32
    %c0_i32_0 = arith.constant 0 : i32
    %2 = arith.cmpi ne, %1, %c0_i32_0 : i32
    scf.if %2 {
      %cst_34 = arith.constant 0.000000e+00 : f32
      %67 = vector.broadcast %cst_34 : f32 to vector<1x1x128xf32>
      %c0_35 = arith.constant 0 : index
      %c0_36 = arith.constant 0 : index
      %c0_37 = arith.constant 0 : index
      %68 = vector.load %arg10[%c0_35, %c0_36, %c0_37] : memref<1x1x128xf32, #tpu.memory_space<vmem>>, vector<1x1x128xf32>
      tpu.vector_store %arg10[%c0_35, %c0_36, %c0_37], %67 {strides = array<i32>} : memref<1x1x128xf32, #tpu.memory_space<vmem>>, vector<1x1x128xf32>,
    } else {
    }
    %c0 = arith.constant 0 : index
    %c0_1 = arith.constant 0 : index
    %3 = vector.load %arg4[%c0, %c0_1] : memref<128x128xbf16, #tpu.memory_space<vmem>>, vector<128x128xbf16>
    %c0_2 = arith.constant 0 : index
    %c0_3 = arith.constant 0 : index
    %4 = vector.load %arg5[%c0_2, %c0_3] : memref<128x128xbf16, #tpu.memory_space<vmem>>, vector<128x128xbf16>
    %c0_4 = arith.constant 0 : index
    %c0_5 = arith.constant 0 : index
    %5 = vector.load %arg6[%c0_4, %c0_5] : memref<1x128xf32, #tpu.memory_space<vmem>>, vector<1x128xf32>
    %c0_6 = arith.constant 0 : index
    %c0_7 = arith.constant 0 : index
    %6 = vector.load %arg7[%c0_6, %c0_7] : memref<1x128xf32, #tpu.memory_space<vmem>>, vector<1x128xf32>
    %cst = arith.constant 0.000000e+00 : f32
    %7 = vector.broadcast %cst : f32 to vector<1x128xf32>
    %c0_i32_8 = arith.constant 0 : i32
    %8 = arith.index_cast %c0_i32_8 : i32 to index
    %c0_9 = arith.constant 0 : index
    %c0_10 = arith.constant 0 : index
    %9 = vector.load %arg2[%8, %c0_9, %c0_10] : memref<1x16x128xbf16, #tpu.memory_space<vmem>>, vector<1x16x128xbf16>
    %10 = vector.shape_cast %9 : vector<1x16x128xbf16> to vector<16x128xbf16>
    %cst_11 = arith.constant dense<0.000000e+00> : vector<16x128xf32>
    %11 = tpu.matmul %10, %3, %cst_11 {dimension_numbers = #tpu.dot_dimension_numbers<[1], [0], [0], [1], [0, 0, 1, 1], [], []>} : vector<16x128xbf16>, vector<128x128xbf16>, vector<16x128xf32> -> vector<16x128xf32>
    %12 = vector.broadcast %5 : vector<1x128xf32> to vector<16x128xf32>
    %13 = arith.addf %11, %12 : vector<16x128xf32>
    %cst_12 = arith.constant 0.000000e+00 : f32
    %14 = vector.broadcast %cst_12 : f32 to vector<16x128xf32>
    %15 = arith.maximumf %13, %14 : vector<16x128xf32>
    %16 = arith.index_cast %c0_i32_8 : i32 to index
    %c0_13 = arith.constant 0 : index
    %c0_14 = arith.constant 0 : index
    %17 = vector.load %arg3[%16, %c0_13, %c0_14] : memref<1x16x128xbf16, #tpu.memory_space<vmem>>, vector<1x16x128xbf16>
    %18 = vector.shape_cast %17 : vector<1x16x128xbf16> to vector<16x128xbf16>
    %cst_15 = arith.constant dense<0.000000e+00> : vector<16x128xf32>
    %19 = tpu.matmul %18, %4, %cst_15 {dimension_numbers = #tpu.dot_dimension_numbers<[1], [0], [0], [1], [0, 0, 1, 1], [], []>} : vector<16x128xbf16>, vector<128x128xbf16>, vector<16x128xf32> -> vector<16x128xf32>
    %20 = vector.broadcast %6 : vector<1x128xf32> to vector<16x128xf32>
    %21 = arith.addf %19, %20 : vector<16x128xf32>
    %cst_16 = arith.constant 0.000000e+00 : f32
    %22 = vector.broadcast %cst_16 : f32 to vector<16x128xf32>
    %23 = arith.maximumf %21, %22 : vector<16x128xf32>
    %24 = arith.truncf %15 : vector<16x128xf32> to vector<16x128xbf16>
    %25 = arith.index_cast %c0_i32_8 : i32 to index
    %c0_17 = arith.constant 0 : index
    %c0_18 = arith.constant 0 : index
    %26 = vector.load %arg8[%25, %c0_17, %c0_18] : memref<1x16x128xbf16, #tpu.memory_space<vmem>>, vector<1x16x128xbf16>
    %27 = vector.shape_cast %26 : vector<1x16x128xbf16> to vector<16x128xbf16>
    %28 = vector.shape_cast %24 : vector<16x128xbf16> to vector<1x16x128xbf16>
    tpu.vector_store %arg8[%25, %c0_17, %c0_18], %28 {strides = array<i32>} : memref<1x16x128xbf16, #tpu.memory_space<vmem>>, vector<1x16x128xbf16>,
    %29 = arith.truncf %23 : vector<16x128xf32> to vector<16x128xbf16>
    %30 = arith.index_cast %c0_i32_8 : i32 to index
    %c0_19 = arith.constant 0 : index
    %c0_20 = arith.constant 0 : index
    %31 = vector.load %arg9[%30, %c0_19, %c0_20] : memref<1x16x128xbf16, #tpu.memory_space<vmem>>, vector<1x16x128xbf16>
    %32 = vector.shape_cast %31 : vector<1x16x128xbf16> to vector<16x128xbf16>
    %33 = vector.shape_cast %29 : vector<16x128xbf16> to vector<1x16x128xbf16>
    tpu.vector_store %arg9[%30, %c0_19, %c0_20], %33 {strides = array<i32>} : memref<1x16x128xbf16, #tpu.memory_space<vmem>>, vector<1x16x128xbf16>,
    %cst_21 = arith.constant dense<0xFF800000> : vector<128xf32>
    %34 = vector.multi_reduction <maximumf>, %15, %cst_21 [0] : vector<16x128xf32> to vector<128xf32>
    %35 = vector.shape_cast %34 : vector<128xf32> to vector<1x128xf32>
    %36 = vector.broadcast %35 : vector<1x128xf32> to vector<16x128xf32>
    %37 = arith.subf %15, %36 : vector<16x128xf32>
    %38 = math.exp %37 : vector<16x128xf32>
    %cst_22 = arith.constant dense<0.000000e+00> : vector<128xf32>
    %39 = vector.multi_reduction <add>, %38, %cst_22 [0] : vector<16x128xf32> to vector<128xf32>
    %40 = vector.shape_cast %39 : vector<128xf32> to vector<1x128xf32>
    %41 = tpu.reciprocal %40 {approx = true} : vector<1x128xf32> -> vector<1x128xf32>
    %cst_23 = arith.constant 1.600000e+01 : f32
    %42 = vector.broadcast %cst_23 : f32 to vector<1x128xf32>
    %43 = arith.mulf %41, %42 : vector<1x128xf32>
    %44 = vector.broadcast %43 : vector<1x128xf32> to vector<16x128xf32>
    %45 = arith.mulf %38, %44 : vector<16x128xf32>
    %cst_24 = arith.constant dense<0xFF800000> : vector<128xf32>
    %46 = vector.multi_reduction <maximumf>, %23, %cst_24 [0] : vector<16x128xf32> to vector<128xf32>
    %47 = vector.shape_cast %46 : vector<128xf32> to vector<1x128xf32>
    %48 = vector.broadcast %47 : vector<1x128xf32> to vector<16x128xf32>
    %49 = arith.subf %23, %48 : vector<16x128xf32>
    %50 = math.exp %49 : vector<16x128xf32>
    %cst_25 = arith.constant dense<0.000000e+00> : vector<128xf32>
    %51 = vector.multi_reduction <add>, %50, %cst_25 [0] : vector<16x128xf32> to vector<128xf32>
    %52 = vector.shape_cast %51 : vector<128xf32> to vector<1x128xf32>
    %53 = tpu.reciprocal %52 {approx = true} : vector<1x128xf32> -> vector<1x128xf32>
    %cst_26 = arith.constant 1.600000e+01 : f32
    %54 = vector.broadcast %cst_26 : f32 to vector<1x128xf32>
    %55 = arith.mulf %53, %54 : vector<1x128xf32>
    %56 = vector.broadcast %55 : vector<1x128xf32> to vector<16x128xf32>
    %57 = arith.mulf %50, %56 : vector<16x128xf32>
    %58 = arith.subf %45, %57 : vector<16x128xf32>
    %59 = arith.mulf %58, %58 : vector<16x128xf32>
    %cst_27 = arith.constant dense<0.000000e+00> : vector<128xf32>
    %60 = vector.multi_reduction <add>, %59, %cst_27 [0] : vector<16x128xf32> to vector<128xf32>
    %61 = vector.shape_cast %60 : vector<128xf32> to vector<1x128xf32>
    %62 = arith.addf %7, %61 : vector<1x128xf32>
    %c1_i32 = arith.constant 1 : i32
    %c0_28 = arith.constant 0 : index
    %c0_29 = arith.constant 0 : index
    %c0_30 = arith.constant 0 : index
    %63 = vector.load %arg10[%c0_28, %c0_29, %c0_30] : memref<1x1x128xf32, #tpu.memory_space<vmem>>, vector<1x1x128xf32>
    %64 = vector.shape_cast %62 : vector<1x128xf32> to vector<1x1x128xf32>
    %65 = arith.addf %63, %64 : vector<1x1x128xf32>
    %c0_31 = arith.constant 0 : index
    %c0_32 = arith.constant 0 : index
    %c0_33 = arith.constant 0 : index
    %66 = vector.load %arg10[%c0_31, %c0_32, %c0_33] : memref<1x1x128xf32, #tpu.memory_space<vmem>>, vector<1x1x128xf32>
    tpu.vector_store %arg10[%c0_31, %c0_32, %c0_33], %65 {strides = array<i32>} : memref<1x1x128xf32, #tpu.memory_space<vmem>>, vector<1x1x128xf32>,
    return
  }
  func.func @transform_0(%arg0: i32, %arg1: i32) -> (i32, i32, i32) {
    %c1_i32 = arith.constant 1 : i32
    %0 = arith.muli %arg0, %c1_i32 : i32
    %1 = arith.addi %0, %arg1 : i32
    %c0_i32 = arith.constant 0 : i32
    %c0_i32_0 = arith.constant 0 : i32
    %c0_i32_1 = arith.constant 0 : i32
    return %1, %c0_i32, %c0_i32_0 : i32, i32, i32
  }
  func.func @transform_1(%arg0: i32, %arg1: i32) -> (i32, i32, i32) {
    %c1_i32 = arith.constant 1 : i32
    %0 = arith.muli %arg0, %c1_i32 : i32
    %1 = arith.addi %0, %arg1 : i32
    %c0_i32 = arith.constant 0 : i32
    %c0_i32_0 = arith.constant 0 : i32
    %c0_i32_1 = arith.constant 0 : i32
    return %1, %c0_i32, %c0_i32_0 : i32, i32, i32
  }
  func.func @transform_2(%arg0: i32, %arg1: i32) -> (i32, i32) {
    %c0_i32 = arith.constant 0 : i32
    %c0_i32_0 = arith.constant 0 : i32
    %c0_i32_1 = arith.constant 0 : i32
    return %c0_i32, %c0_i32_0 : i32, i32
  }
  func.func @transform_3(%arg0: i32, %arg1: i32) -> (i32, i32) {
    %c0_i32 = arith.constant 0 : i32
    %c0_i32_0 = arith.constant 0 : i32
    %c0_i32_1 = arith.constant 0 : i32
    return %c0_i32, %c0_i32_0 : i32, i32
  }
  func.func @transform_4(%arg0: i32, %arg1: i32) -> (i32, i32) {
    %c0_i32 = arith.constant 0 : i32
    %c0_i32_0 = arith.constant 0 : i32
    %c0_i32_1 = arith.constant 0 : i32
    return %c0_i32, %c0_i32_0 : i32, i32
  }
  func.func @transform_5(%arg0: i32, %arg1: i32) -> (i32, i32) {
    %c0_i32 = arith.constant 0 : i32
    %c0_i32_0 = arith.constant 0 : i32
    %c0_i32_1 = arith.constant 0 : i32
    return %c0_i32, %c0_i32_0 : i32, i32
  }
  func.func @transform_6(%arg0: i32, %arg1: i32) -> (i32, i32, i32) {
    %c1_i32 = arith.constant 1 : i32
    %0 = arith.muli %arg0, %c1_i32 : i32
    %1 = arith.addi %0, %arg1 : i32
    %c0_i32 = arith.constant 0 : i32
    %c0_i32_0 = arith.constant 0 : i32
    %c0_i32_1 = arith.constant 0 : i32
    return %1, %c0_i32, %c0_i32_0 : i32, i32, i32
  }
  func.func @transform_7(%arg0: i32, %arg1: i32) -> (i32, i32, i32) {
    %c1_i32 = arith.constant 1 : i32
    %0 = arith.muli %arg0, %c1_i32 : i32
    %1 = arith.addi %0, %arg1 : i32
    %c0_i32 = arith.constant 0 : i32
    %c0_i32_0 = arith.constant 0 : i32
    %c0_i32_1 = arith.constant 0 : i32
    return %1, %c0_i32, %c0_i32_0 : i32, i32, i32
  }
  func.func @transform_8(%arg0: i32, %arg1: i32) -> (i32, i32, i32) {
    %c0_i32 = arith.constant 0 : i32
    %c0_i32_0 = arith.constant 0 : i32
    %c0_i32_1 = arith.constant 0 : i32
    return %arg0, %c0_i32, %c0_i32_0 : i32, i32, i32
  }
}

module attributes {stable_mosaic.version = 11 : i64} {
  func.func @_fused_conv_softmaxmse_kernel(%arg0: i32, %arg1: i32, %arg2: memref<1x4x128xbf16, #tpu.memory_space<vmem>>, %arg3: memref<1x4x128xbf16, #tpu.memory_space<vmem>>, %arg4: memref<128x128xbf16, #tpu.memory_space<vmem>>, %arg5: memref<128x128xbf16, #tpu.memory_space<vmem>>, %arg6: memref<1x128xf32, #tpu.memory_space<vmem>>, %arg7: memref<1x128xf32, #tpu.memory_space<vmem>>, %arg8: memref<1x4x128xbf16, #tpu.memory_space<vmem>>, %arg9: memref<1x4x128xbf16, #tpu.memory_space<vmem>>, %arg10: memref<1x1x128xf32, #tpu.memory_space<vmem>>) attributes {dimension_semantics = [#tpu.dimension_semantics<parallel>, #tpu.dimension_semantics<arbitrary>], iteration_bounds = array<i64: 2, 1>, scalar_prefetch = 0 : i64, scratch_operands = 0 : i64, tpu.core_type = #tpu.core_type<tc>, window_params = [{transform_indices = @transform_0, window_bounds = array<i64: 1, 4, 128>}, {transform_indices = @transform_1, window_bounds = array<i64: 1, 4, 128>}, {pipeline_mode = #tpu.pipeline_mode<synchronous>, transform_indices = @transform_2, window_bounds = array<i64: 128, 128>}, {pipeline_mode = #tpu.pipeline_mode<synchronous>, transform_indices = @transform_3, window_bounds = array<i64: 128, 128>}, {pipeline_mode = #tpu.pipeline_mode<synchronous>, transform_indices = @transform_4, window_bounds = array<i64: 1, 128>}, {pipeline_mode = #tpu.pipeline_mode<synchronous>, transform_indices = @transform_5, window_bounds = array<i64: 1, 128>}, {transform_indices = @transform_6, window_bounds = array<i64: 1, 4, 128>}, {transform_indices = @transform_7, window_bounds = array<i64: 1, 4, 128>}, {transform_indices = @transform_8, window_bounds = array<i64: 1, 1, 128>}]} {
    %c0_i32 = arith.constant 0 : i32
    %0 = arith.cmpi eq, %arg1, %c0_i32 : i32
    %1 = arith.extui %0 : i1 to i32
    %c0_i32_0 = arith.constant 0 : i32
    %2 = arith.cmpi ne, %1, %c0_i32_0 : i32
    scf.if %2 {
      %cst_34 = arith.constant 0.000000e+00 : f32
      %67 = vector.broadcast %cst_34 : f32 to vector<1x1x128xf32>
      %c0_35 = arith.constant 0 : index
      %c0_36 = arith.constant 0 : index
      %c0_37 = arith.constant 0 : index
      %68 = vector.load %arg10[%c0_35, %c0_36, %c0_37] : memref<1x1x128xf32, #tpu.memory_space<vmem>>, vector<1x1x128xf32>
      tpu.vector_store %arg10[%c0_35, %c0_36, %c0_37], %67 {strides = array<i32>} : memref<1x1x128xf32, #tpu.memory_space<vmem>>, vector<1x1x128xf32>,
    } else {
    }
    %c0 = arith.constant 0 : index
    %c0_1 = arith.constant 0 : index
    %3 = vector.load %arg4[%c0, %c0_1] : memref<128x128xbf16, #tpu.memory_space<vmem>>, vector<128x128xbf16>
    %c0_2 = arith.constant 0 : index
    %c0_3 = arith.constant 0 : index
    %4 = vector.load %arg5[%c0_2, %c0_3] : memref<128x128xbf16, #tpu.memory_space<vmem>>, vector<128x128xbf16>
    %c0_4 = arith.constant 0 : index
    %c0_5 = arith.constant 0 : index
    %5 = vector.load %arg6[%c0_4, %c0_5] : memref<1x128xf32, #tpu.memory_space<vmem>>, vector<1x128xf32>
    %c0_6 = arith.constant 0 : index
    %c0_7 = arith.constant 0 : index
    %6 = vector.load %arg7[%c0_6, %c0_7] : memref<1x128xf32, #tpu.memory_space<vmem>>, vector<1x128xf32>
    %cst = arith.constant 0.000000e+00 : f32
    %7 = vector.broadcast %cst : f32 to vector<1x128xf32>
    %c0_i32_8 = arith.constant 0 : i32
    %8 = arith.index_cast %c0_i32_8 : i32 to index
    %c0_9 = arith.constant 0 : index
    %c0_10 = arith.constant 0 : index
    %9 = vector.load %arg2[%8, %c0_9, %c0_10] : memref<1x4x128xbf16, #tpu.memory_space<vmem>>, vector<1x4x128xbf16>
    %10 = vector.shape_cast %9 : vector<1x4x128xbf16> to vector<4x128xbf16>
    %cst_11 = arith.constant dense<0.000000e+00> : vector<4x128xf32>
    %11 = tpu.matmul %10, %3, %cst_11 {dimension_numbers = #tpu.dot_dimension_numbers<[1], [0], [0], [1], [0, 0, 1, 1], [], []>} : vector<4x128xbf16>, vector<128x128xbf16>, vector<4x128xf32> -> vector<4x128xf32>
    %12 = vector.broadcast %5 : vector<1x128xf32> to vector<4x128xf32>
    %13 = arith.addf %11, %12 : vector<4x128xf32>
    %cst_12 = arith.constant 0.000000e+00 : f32
    %14 = vector.broadcast %cst_12 : f32 to vector<4x128xf32>
    %15 = arith.maximumf %13, %14 : vector<4x128xf32>
    %16 = arith.index_cast %c0_i32_8 : i32 to index
    %c0_13 = arith.constant 0 : index
    %c0_14 = arith.constant 0 : index
    %17 = vector.load %arg3[%16, %c0_13, %c0_14] : memref<1x4x128xbf16, #tpu.memory_space<vmem>>, vector<1x4x128xbf16>
    %18 = vector.shape_cast %17 : vector<1x4x128xbf16> to vector<4x128xbf16>
    %cst_15 = arith.constant dense<0.000000e+00> : vector<4x128xf32>
    %19 = tpu.matmul %18, %4, %cst_15 {dimension_numbers = #tpu.dot_dimension_numbers<[1], [0], [0], [1], [0, 0, 1, 1], [], []>} : vector<4x128xbf16>, vector<128x128xbf16>, vector<4x128xf32> -> vector<4x128xf32>
    %20 = vector.broadcast %6 : vector<1x128xf32> to vector<4x128xf32>
    %21 = arith.addf %19, %20 : vector<4x128xf32>
    %cst_16 = arith.constant 0.000000e+00 : f32
    %22 = vector.broadcast %cst_16 : f32 to vector<4x128xf32>
    %23 = arith.maximumf %21, %22 : vector<4x128xf32>
    %24 = arith.truncf %15 : vector<4x128xf32> to vector<4x128xbf16>
    %25 = arith.index_cast %c0_i32_8 : i32 to index
    %c0_17 = arith.constant 0 : index
    %c0_18 = arith.constant 0 : index
    %26 = vector.load %arg8[%25, %c0_17, %c0_18] : memref<1x4x128xbf16, #tpu.memory_space<vmem>>, vector<1x4x128xbf16>
    %27 = vector.shape_cast %26 : vector<1x4x128xbf16> to vector<4x128xbf16>
    %28 = vector.shape_cast %24 : vector<4x128xbf16> to vector<1x4x128xbf16>
    tpu.vector_store %arg8[%25, %c0_17, %c0_18], %28 {strides = array<i32>} : memref<1x4x128xbf16, #tpu.memory_space<vmem>>, vector<1x4x128xbf16>,
    %29 = arith.truncf %23 : vector<4x128xf32> to vector<4x128xbf16>
    %30 = arith.index_cast %c0_i32_8 : i32 to index
    %c0_19 = arith.constant 0 : index
    %c0_20 = arith.constant 0 : index
    %31 = vector.load %arg9[%30, %c0_19, %c0_20] : memref<1x4x128xbf16, #tpu.memory_space<vmem>>, vector<1x4x128xbf16>
    %32 = vector.shape_cast %31 : vector<1x4x128xbf16> to vector<4x128xbf16>
    %33 = vector.shape_cast %29 : vector<4x128xbf16> to vector<1x4x128xbf16>
    tpu.vector_store %arg9[%30, %c0_19, %c0_20], %33 {strides = array<i32>} : memref<1x4x128xbf16, #tpu.memory_space<vmem>>, vector<1x4x128xbf16>,
    %cst_21 = arith.constant dense<0xFF800000> : vector<128xf32>
    %34 = vector.multi_reduction <maximumf>, %15, %cst_21 [0] : vector<4x128xf32> to vector<128xf32>
    %35 = vector.shape_cast %34 : vector<128xf32> to vector<1x128xf32>
    %36 = vector.broadcast %35 : vector<1x128xf32> to vector<4x128xf32>
    %37 = arith.subf %15, %36 : vector<4x128xf32>
    %38 = math.exp %37 : vector<4x128xf32>
    %cst_22 = arith.constant dense<0.000000e+00> : vector<128xf32>
    %39 = vector.multi_reduction <add>, %38, %cst_22 [0] : vector<4x128xf32> to vector<128xf32>
    %40 = vector.shape_cast %39 : vector<128xf32> to vector<1x128xf32>
    %41 = tpu.reciprocal %40 {approx = true} : vector<1x128xf32> -> vector<1x128xf32>
    %cst_23 = arith.constant 4.000000e+00 : f32
    %42 = vector.broadcast %cst_23 : f32 to vector<1x128xf32>
    %43 = arith.mulf %41, %42 : vector<1x128xf32>
    %44 = vector.broadcast %43 : vector<1x128xf32> to vector<4x128xf32>
    %45 = arith.mulf %38, %44 : vector<4x128xf32>
    %cst_24 = arith.constant dense<0xFF800000> : vector<128xf32>
    %46 = vector.multi_reduction <maximumf>, %23, %cst_24 [0] : vector<4x128xf32> to vector<128xf32>
    %47 = vector.shape_cast %46 : vector<128xf32> to vector<1x128xf32>
    %48 = vector.broadcast %47 : vector<1x128xf32> to vector<4x128xf32>
    %49 = arith.subf %23, %48 : vector<4x128xf32>
    %50 = math.exp %49 : vector<4x128xf32>
    %cst_25 = arith.constant dense<0.000000e+00> : vector<128xf32>
    %51 = vector.multi_reduction <add>, %50, %cst_25 [0] : vector<4x128xf32> to vector<128xf32>
    %52 = vector.shape_cast %51 : vector<128xf32> to vector<1x128xf32>
    %53 = tpu.reciprocal %52 {approx = true} : vector<1x128xf32> -> vector<1x128xf32>
    %cst_26 = arith.constant 4.000000e+00 : f32
    %54 = vector.broadcast %cst_26 : f32 to vector<1x128xf32>
    %55 = arith.mulf %53, %54 : vector<1x128xf32>
    %56 = vector.broadcast %55 : vector<1x128xf32> to vector<4x128xf32>
    %57 = arith.mulf %50, %56 : vector<4x128xf32>
    %58 = arith.subf %45, %57 : vector<4x128xf32>
    %59 = arith.mulf %58, %58 : vector<4x128xf32>
    %cst_27 = arith.constant dense<0.000000e+00> : vector<128xf32>
    %60 = vector.multi_reduction <add>, %59, %cst_27 [0] : vector<4x128xf32> to vector<128xf32>
    %61 = vector.shape_cast %60 : vector<128xf32> to vector<1x128xf32>
    %62 = arith.addf %7, %61 : vector<1x128xf32>
    %c1_i32 = arith.constant 1 : i32
    %c0_28 = arith.constant 0 : index
    %c0_29 = arith.constant 0 : index
    %c0_30 = arith.constant 0 : index
    %63 = vector.load %arg10[%c0_28, %c0_29, %c0_30] : memref<1x1x128xf32, #tpu.memory_space<vmem>>, vector<1x1x128xf32>
    %64 = vector.shape_cast %62 : vector<1x128xf32> to vector<1x1x128xf32>
    %65 = arith.addf %63, %64 : vector<1x1x128xf32>
    %c0_31 = arith.constant 0 : index
    %c0_32 = arith.constant 0 : index
    %c0_33 = arith.constant 0 : index
    %66 = vector.load %arg10[%c0_31, %c0_32, %c0_33] : memref<1x1x128xf32, #tpu.memory_space<vmem>>, vector<1x1x128xf32>
    tpu.vector_store %arg10[%c0_31, %c0_32, %c0_33], %65 {strides = array<i32>} : memref<1x1x128xf32, #tpu.memory_space<vmem>>, vector<1x1x128xf32>,
    return
  }
  func.func @transform_0(%arg0: i32, %arg1: i32) -> (i32, i32, i32) {
    %c1_i32 = arith.constant 1 : i32
    %0 = arith.muli %arg0, %c1_i32 : i32
    %1 = arith.addi %0, %arg1 : i32
    %c0_i32 = arith.constant 0 : i32
    %c0_i32_0 = arith.constant 0 : i32
    %c0_i32_1 = arith.constant 0 : i32
    return %1, %c0_i32, %c0_i32_0 : i32, i32, i32
  }
  func.func @transform_1(%arg0: i32, %arg1: i32) -> (i32, i32, i32) {
    %c1_i32 = arith.constant 1 : i32
    %0 = arith.muli %arg0, %c1_i32 : i32
    %1 = arith.addi %0, %arg1 : i32
    %c0_i32 = arith.constant 0 : i32
    %c0_i32_0 = arith.constant 0 : i32
    %c0_i32_1 = arith.constant 0 : i32
    return %1, %c0_i32, %c0_i32_0 : i32, i32, i32
  }
  func.func @transform_2(%arg0: i32, %arg1: i32) -> (i32, i32) {
    %c0_i32 = arith.constant 0 : i32
    %c0_i32_0 = arith.constant 0 : i32
    %c0_i32_1 = arith.constant 0 : i32
    return %c0_i32, %c0_i32_0 : i32, i32
  }
  func.func @transform_3(%arg0: i32, %arg1: i32) -> (i32, i32) {
    %c0_i32 = arith.constant 0 : i32
    %c0_i32_0 = arith.constant 0 : i32
    %c0_i32_1 = arith.constant 0 : i32
    return %c0_i32, %c0_i32_0 : i32, i32
  }
  func.func @transform_4(%arg0: i32, %arg1: i32) -> (i32, i32) {
    %c0_i32 = arith.constant 0 : i32
    %c0_i32_0 = arith.constant 0 : i32
    %c0_i32_1 = arith.constant 0 : i32
    return %c0_i32, %c0_i32_0 : i32, i32
  }
  func.func @transform_5(%arg0: i32, %arg1: i32) -> (i32, i32) {
    %c0_i32 = arith.constant 0 : i32
    %c0_i32_0 = arith.constant 0 : i32
    %c0_i32_1 = arith.constant 0 : i32
    return %c0_i32, %c0_i32_0 : i32, i32
  }
  func.func @transform_6(%arg0: i32, %arg1: i32) -> (i32, i32, i32) {
    %c1_i32 = arith.constant 1 : i32
    %0 = arith.muli %arg0, %c1_i32 : i32
    %1 = arith.addi %0, %arg1 : i32
    %c0_i32 = arith.constant 0 : i32
    %c0_i32_0 = arith.constant 0 : i32
    %c0_i32_1 = arith.constant 0 : i32
    return %1, %c0_i32, %c0_i32_0 : i32, i32, i32
  }
  func.func @transform_7(%arg0: i32, %arg1: i32) -> (i32, i32, i32) {
    %c1_i32 = arith.constant 1 : i32
    %0 = arith.muli %arg0, %c1_i32 : i32
    %1 = arith.addi %0, %arg1 : i32
    %c0_i32 = arith.constant 0 : i32
    %c0_i32_0 = arith.constant 0 : i32
    %c0_i32_1 = arith.constant 0 : i32
    return %1, %c0_i32, %c0_i32_0 : i32, i32, i32
  }
  func.func @transform_8(%arg0: i32, %arg1: i32) -> (i32, i32, i32) {
    %c0_i32 = arith.constant 0 : i32
    %c0_i32_0 = arith.constant 0 : i32
    %c0_i32_1 = arith.constant 0 : i32
    return %arg0, %c0_i32, %c0_i32_0 : i32, i32, i32
  }
}

</mosaic_0001>

<llo_original>
// kernel: _lambda_.3
$region0: #{_lambda_.3}
  #allocation0 [shape = 'u32[]', space=smem, size = 0x4, offset = 0x4, fixed_abs, tag = 'smem constant byte address 0x4 - core index']
  #allocation1 [shape = 'u32[144,128]{1,0:T(1,128)}', space=vmem, size = 0x12000, scoped, tag = 'internal scratch']
  %s0 = inlined_call_operand.vmem [shape: f32[2,64,3], index: 0, kind: input, shape index: {}]
  %s1 = inlined_call_operand.vmem [shape: f32[2,64,3], index: 1, kind: input, shape index: {}]
  %s2 = inlined_call_operand.vmem [shape: f32[3,128], index: 2, kind: input, shape index: {}]
  %s3 = inlined_call_operand.vmem [shape: f32[3,128], index: 3, kind: input, shape index: {}]
  %s4 = inlined_call_operand.vmem [shape: f32[1,128], index: 4, kind: input, shape index: {}]
  %s5 = inlined_call_operand.vmem [shape: f32[1,128], index: 5, kind: input, shape index: {}]
  %s6 = inlined_call_operand.vmem [shape: bf16[2,64,128], index: 6, kind: output, shape index: {0}]
  %s7 = inlined_call_operand.vmem [shape: bf16[2,64,128], index: 7, kind: output, shape index: {1}]
  %s8 = inlined_call_operand.vmem [shape: f32[2,1,128], index: 8, kind: output, shape index: {2}]
  %9 = xla_tuple %s6, %s7, %s8
  %s10 = sld [smem:[#allocation0]]
  $region77: #{_lambda_.3} parent=0
    _
  %s12 = ssub.s32 1, %s10
  %s13 = scalar_select 0, %s12, %s10
  loop: start=0, step=1, limit=4
  $region2: #{_lambda_.3} parent=0 // loop_pre_header
    _
  $region3: #{_lambda_.3} parent=0 // loop_header
    %s15 = sphi 0, %s19
    %p16 = scmp.ge.s32.totalorder %s15, 4
    %s22 = sphi 0, %s34
    %s23 = sphi 0, %s30
    %s24 = sphi 0, %s22
    %s25 = sphi 0, %s23
    %s26 = sphi 0, %s24
    %s27 = sphi 0, %s25
    %s39 = sphi 0, %s41
    %s42 = sphi 0, %s39
    %s43 = sphi 0, %s42
    %s59 = sphi 0, %s43
    %s67 = sphi 0, %s69
    %s70 = sphi 0, %s67
    %s71 = sphi 0, %s70
    %s87 = sphi 0, %s71
    %s91 = sphi 0, %s91
    %s93 = sphi 0, %s91
    %s94 = sphi 0, %s93
    %s108 = sphi 0, %s94
    %s112 = sphi 0, %s112
    %s114 = sphi 0, %s112
    %s115 = sphi 0, %s114
    %s129 = sphi 0, %s115
    %s133 = sphi 0, %s133
    %s135 = sphi 0, %s133
    %s136 = sphi 0, %s135
    %s150 = sphi 0, %s136
    %s154 = sphi 0, %s154
    %s156 = sphi 0, %s154
    %s157 = sphi 0, %s156
    %s171 = sphi 0, %s157
    %s179 = sphi 0, %s181
    %s182 = sphi 0, %s179
    %s183 = sphi 0, %s182
    %s199 = sphi 0, %s183
    %s207 = sphi 0, %s209
    %s210 = sphi 0, %s207
    %s211 = sphi 0, %s210
    %s227 = sphi 0, %s211
    %s233 = sphi 0, %s235
    %s236 = sphi 0, %s233
    %s237 = sphi 0, %s236
    %s253 = sphi 0, %s237
  $region4: #{_lambda_.3} parent=0 // loop_header_branch
    %18 = sbr.rel (%p16) target = $region8
  $region5: #{_lambda_.3} parent=0 // loop_body
    %s20 = ssub.s32 %s15, 1
    %s21 = ssub.s32 %s15, 2
    %s28 = sadd.s32 1, %s23
    %p29 = scmp.ge.s32.totalorder %s28, 1
    %s30 = scalar_select %p29, 0, %s28
    %s31 = sadd.s32 1, %s22
    %s32 = scalar_select %p29, %s31, %s22
    %p33 = scmp.ge.s32.totalorder %s32, 2
    %s34 = scalar_select %p33, 0, %s32
    %s35 = sadd.s32 %s22, %s23
    %s36 = sadd.s32 %s34, %s30
    %s37 = ssub.s32 %s35, %s36
    %p38 = scmp.eq.s32.totalorder %s37, 0
    %s40 = sadd.s32 %s39, 1
    %s41 = scalar_select %p38, %s39, %s40
    %p44 = pneg %p38
    %p45 = scmp.eq.s32.totalorder %s15, 1
    %p46 = por %p44, %p45
    %p47 = scmp.ne.s32.totalorder %s39, %s42
    %p48 = scmp.eq.s32.totalorder %s15, 0
    %p49 = por %p47, %p48
    %p50 = scmp.ne.s32.totalorder %s39, %s42
    %p51 = scmp.eq.s32.totalorder %s20, 1
    %p52 = por %p50, %p51
    %p53 = scmp.ne.s32.totalorder %s42, %s43
    %p54 = scmp.eq.s32.totalorder %s20, 0
    %p55 = por %p53, %p54
    %p56 = scmp.ne.s32.totalorder %s42, %s43
    %p57 = scmp.eq.s32.totalorder %s21, 1
    %p58 = por %p56, %p57
    %p60 = scmp.ne.s32.totalorder %s43, %s59
    %p61 = scmp.eq.s32.totalorder %s21, 0
    %p62 = por %p60, %p61
    %s63 = sadd.s32 %s22, %s23
    %s64 = sadd.s32 %s34, %s30
    %s65 = ssub.s32 %s63, %s64
    %p66 = scmp.eq.s32.totalorder %s65, 0
    %s68 = sadd.s32 %s67, 1
    %s69 = scalar_select %p66, %s67, %s68
    %p72 = pneg %p66
    %p73 = scmp.eq.s32.totalorder %s15, 1
    %p74 = por %p72, %p73
    %p75 = scmp.ne.s32.totalorder %s67, %s70
    %p76 = scmp.eq.s32.totalorder %s15, 0
    %p77 = por %p75, %p76
    %p78 = scmp.ne.s32.totalorder %s67, %s70
    %p79 = scmp.eq.s32.totalorder %s20, 1
    %p80 = por %p78, %p79
    %p81 = scmp.ne.s32.totalorder %s70, %s71
    %p82 = scmp.eq.s32.totalorder %s20, 0
    %p83 = por %p81, %p82
    %p84 = scmp.ne.s32.totalorder %s70, %s71
    %p85 = scmp.eq.s32.totalorder %s21, 1
    %p86 = por %p84, %p85
    %p88 = scmp.ne.s32.totalorder %s71, %s87
    %p89 = scmp.eq.s32.totalorder %s21, 0
    %p90 = por %p88, %p89
    %s92 = sadd.s32 %s91, 1
    %p95 = scmp.eq.s32.totalorder %s15, 1
    %p96 = scmp.ne.s32.totalorder %s91, %s93
    %p97 = scmp.eq.s32.totalorder %s15, 0
    %p98 = por %p96, %p97
    %p99 = scmp.ne.s32.totalorder %s91, %s93
    %p100 = scmp.eq.s32.totalorder %s20, 1
    %p101 = por %p99, %p100
    %p102 = scmp.ne.s32.totalorder %s93, %s94
    %p103 = scmp.eq.s32.totalorder %s20, 0
    %p104 = por %p102, %p103
    %p105 = scmp.ne.s32.totalorder %s93, %s94
    %p106 = scmp.eq.s32.totalorder %s21, 1
    %p107 = por %p105, %p106
    %p109 = scmp.ne.s32.totalorder %s94, %s108
    %p110 = scmp.eq.s32.totalorder %s21, 0
    %p111 = por %p109, %p110
    %s113 = sadd.s32 %s112, 1
    %p116 = scmp.eq.s32.totalorder %s15, 1
    %p117 = scmp.ne.s32.totalorder %s112, %s114
    %p118 = scmp.eq.s32.totalorder %s15, 0
    %p119 = por %p117, %p118
    %p120 = scmp.ne.s32.totalorder %s112, %s114
    %p121 = scmp.eq.s32.totalorder %s20, 1
    %p122 = por %p120, %p121
    %p123 = scmp.ne.s32.totalorder %s114, %s115
    %p124 = scmp.eq.s32.totalorder %s20, 0
    %p125 = por %p123, %p124
    %p126 = scmp.ne.s32.totalorder %s114, %s115
    %p127 = scmp.eq.s32.totalorder %s21, 1
    %p128 = por %p126, %p127
    %p130 = scmp.ne.s32.totalorder %s115, %s129
    %p131 = scmp.eq.s32.totalorder %s21, 0
    %p132 = por %p130, %p131
    %s134 = sadd.s32 %s133, 1
    %p137 = scmp.eq.s32.totalorder %s15, 1
    %p138 = scmp.ne.s32.totalorder %s133, %s135
    %p139 = scmp.eq.s32.totalorder %s15, 0
    %p140 = por %p138, %p139
    %p141 = scmp.ne.s32.totalorder %s133, %s135
    %p142 = scmp.eq.s32.totalorder %s20, 1
    %p143 = por %p141, %p142
    %p144 = scmp.ne.s32.totalorder %s135, %s136
    %p145 = scmp.eq.s32.totalorder %s20, 0
    %p146 = por %p144, %p145
    %p147 = scmp.ne.s32.totalorder %s135, %s136
    %p148 = scmp.eq.s32.totalorder %s21, 1
    %p149 = por %p147, %p148
    %p151 = scmp.ne.s32.totalorder %s136, %s150
    %p152 = scmp.eq.s32.totalorder %s21, 0
    %p153 = por %p151, %p152
    %s155 = sadd.s32 %s154, 1
    %p158 = scmp.eq.s32.totalorder %s15, 1
    %p159 = scmp.ne.s32.totalorder %s154, %s156
    %p160 = scmp.eq.s32.totalorder %s15, 0
    %p161 = por %p159, %p160
    %p162 = scmp.ne.s32.totalorder %s154, %s156
    %p163 = scmp.eq.s32.totalorder %s20, 1
    %p164 = por %p162, %p163
    %p165 = scmp.ne.s32.totalorder %s156, %s157
    %p166 = scmp.eq.s32.totalorder %s20, 0
    %p167 = por %p165, %p166
    %p168 = scmp.ne.s32.totalorder %s156, %s157
    %p169 = scmp.eq.s32.totalorder %s21, 1
    %p170 = por %p168, %p169
    %p172 = scmp.ne.s32.totalorder %s157, %s171
    %p173 = scmp.eq.s32.totalorder %s21, 0
    %p174 = por %p172, %p173
    %s175 = sadd.s32 %s22, %s23
    %s176 = sadd.s32 %s34, %s30
    %s177 = ssub.s32 %s175, %s176
    %p178 = scmp.eq.s32.totalorder %s177, 0
    %s180 = sadd.s32 %s179, 1
    %s181 = scalar_select %p178, %s179, %s180
    %p184 = pneg %p178
    %p185 = scmp.eq.s32.totalorder %s15, 1
    %p186 = por %p184, %p185
    %p187 = scmp.ne.s32.totalorder %s179, %s182
    %p188 = scmp.eq.s32.totalorder %s15, 0
    %p189 = por %p187, %p188
    %p190 = scmp.ne.s32.totalorder %s179, %s182
    %p191 = scmp.eq.s32.totalorder %s20, 1
    %p192 = por %p190, %p191
    %p193 = scmp.ne.s32.totalorder %s182, %s183
    %p194 = scmp.eq.s32.totalorder %s20, 0
    %p195 = por %p193, %p194
    %p196 = scmp.ne.s32.totalorder %s182, %s183
    %p197 = scmp.eq.s32.totalorder %s21, 1
    %p198 = por %p196, %p197
    %p200 = scmp.ne.s32.totalorder %s183, %s199
    %p201 = scmp.eq.s32.totalorder %s21, 0
    %p202 = por %p200, %p201
    %s203 = sadd.s32 %s22, %s23
    %s204 = sadd.s32 %s34, %s30
    %s205 = ssub.s32 %s203, %s204
    %p206 = scmp.eq.s32.totalorder %s205, 0
    %s208 = sadd.s32 %s207, 1
    %s209 = scalar_select %p206, %s207, %s208
    %p212 = pneg %p206
    %p213 = scmp.eq.s32.totalorder %s15, 1
    %p214 = por %p212, %p213
    %p215 = scmp.ne.s32.totalorder %s207, %s210
    %p216 = scmp.eq.s32.totalorder %s15, 0
    %p217 = por %p215, %p216
    %p218 = scmp.ne.s32.totalorder %s207, %s210
    %p219 = scmp.eq.s32.totalorder %s20, 1
    %p220 = por %p218, %p219
    %p221 = scmp.ne.s32.totalorder %s210, %s211
    %p222 = scmp.eq.s32.totalorder %s20, 0
    %p223 = por %p221, %p222
    %p224 = scmp.ne.s32.totalorder %s210, %s211
    %p225 = scmp.eq.s32.totalorder %s21, 1
    %p226 = por %p224, %p225
    %p228 = scmp.ne.s32.totalorder %s211, %s227
    %p229 = scmp.eq.s32.totalorder %s21, 0
    %p230 = por %p228, %p229
    %s231 = ssub.s32 %s22, %s34
    %p232 = scmp.eq.s32.totalorder %s231, 0
    %s234 = sadd.s32 %s233, 1
    %s235 = scalar_select %p232, %s233, %s234
    %p238 = pneg %p232
    %p239 = scmp.eq.s32.totalorder %s15, 1
    %p240 = por %p238, %p239
    %p241 = scmp.ne.s32.totalorder %s233, %s236
    %p242 = scmp.eq.s32.totalorder %s15, 0
    %p243 = por %p241, %p242
    %p244 = scmp.ne.s32.totalorder %s233, %s236
    %p245 = scmp.eq.s32.totalorder %s20, 1
    %p246 = por %p244, %p245
    %p247 = scmp.ne.s32.totalorder %s236, %s237
    %p248 = scmp.eq.s32.totalorder %s20, 0
    %p249 = por %p247, %p248
    %p250 = scmp.ne.s32.totalorder %s236, %s237
    %p251 = scmp.eq.s32.totalorder %s21, 1
    %p252 = por %p250, %p251
    %p254 = scmp.ne.s32.totalorder %s237, %s253
    %p255 = scmp.eq.s32.totalorder %s21, 0
    %p256 = por %p254, %p255
    %p257 = scmp.le.s32.totalorder 1, %s15
    %p258 = scmp.lt.s32.totalorder %s15, 3
    %p259 = pnand %p257, %p258
    %p260 = pneg %p259
    // Predicated region
    $region9: #{_lambda_.3} parent=5 // pred_check
      _
    $region10: #{_lambda_.3} parent=5 // pred_check_branch
      %262 = sbr.rel (%p259) target = $region12
    $region11: #{_lambda_.3} parent=5 // pred_region
      %s263 = ssub.s32 %s15, 1
      // Predicated region
      $region13: #{_lambda_.3} parent=11 // pred_check
        %p264 = pneg %p104
      $region14: #{_lambda_.3} parent=11 // pred_check_branch
        %266 = sbr.rel (%p264) target = $region16
      $region15: #{_lambda_.3} parent=11 // pred_region
        _
      $region16: #{_lambda_.3} parent=11 // pred_fallthru
        _
      // Predicated region
      $region17: #{_lambda_.3} parent=11 // pred_check
        %p267 = pneg %p125
      $region18: #{_lambda_.3} parent=11 // pred_check_branch
        %269 = sbr.rel (%p267) target = $region20
      $region19: #{_lambda_.3} parent=11 // pred_region
        _
      $region20: #{_lambda_.3} parent=11 // pred_fallthru
        _
      // Predicated region
      $region21: #{_lambda_.3} parent=11 // pred_check
        %p270 = pneg %p146
      $region22: #{_lambda_.3} parent=11 // pred_check_branch
        %272 = sbr.rel (%p270) target = $region24
      $region23: #{_lambda_.3} parent=11 // pred_region
        _
      $region24: #{_lambda_.3} parent=11 // pred_fallthru
        _
      // Predicated region
      $region25: #{_lambda_.3} parent=11 // pred_check
        %p273 = pneg %p167
      $region26: #{_lambda_.3} parent=11 // pred_check_branch
        %275 = sbr.rel (%p273) target = $region28
      $region27: #{_lambda_.3} parent=11 // pred_region
        _
      $region28: #{_lambda_.3} parent=11 // pred_fallthru
        _
    $region12: #{_lambda_.3} parent=5 // pred_fallthru
      _
    %p276 = scmp.lt.s32.totalorder %s15, 2
    // Predicated region
    $region29: #{_lambda_.3} parent=5 // pred_check
      %p277 = pneg %p276
    $region30: #{_lambda_.3} parent=5 // pred_check_branch
      %279 = sbr.rel (%p277) target = $region32
    $region31: #{_lambda_.3} parent=5 // pred_region
      // Predicated region
      $region33: #{_lambda_.3} parent=31 // pred_check
        %p280 = pneg %p49
      $region34: #{_lambda_.3} parent=31 // pred_check_branch
        %282 = sbr.rel (%p280) target = $region36
      $region35: #{_lambda_.3} parent=31 // pred_region
        %s283 = sadd.s32 %s22, %s23
        %p284 = scmp.lt.s32.totalorder %s283, 1
        %s285 = scalar_select %p284, %s283, 1
        %s286 = smul.addr %s285, 8
        %s287 = smul.addr %s286, 8
        %s288 = scalar_lea.vmem %s0, %s287
        %s289 = sadd.s32 %s22, %s23
      $region36: #{_lambda_.3} parent=31 // pred_fallthru
        _
      // Predicated region
      $region37: #{_lambda_.3} parent=31 // pred_check
        %p290 = pneg %p77
      $region38: #{_lambda_.3} parent=31 // pred_check_branch
        %292 = sbr.rel (%p290) target = $region40
      $region39: #{_lambda_.3} parent=31 // pred_region
        %s293 = sadd.s32 %s22, %s23
        %p294 = scmp.lt.s32.totalorder %s293, 1
        %s295 = scalar_select %p294, %s293, 1
        %s296 = smul.addr %s295, 8
        %s297 = smul.addr %s296, 8
        %s298 = scalar_lea.vmem %s1, %s297
        %s299 = sadd.s32 %s22, %s23
      $region40: #{_lambda_.3} parent=31 // pred_fallthru
        _
    $region32: #{_lambda_.3} parent=5 // pred_fallthru
      _
    %p300 = scmp.le.s32.totalorder 1, %s15
    %p301 = scmp.lt.s32.totalorder %s15, 3
    %p302 = pnand %p300, %p301
    %p303 = pneg %p302
    // Predicated region
    $region41: #{_lambda_.3} parent=5 // pred_check
      _
    $region42: #{_lambda_.3} parent=5 // pred_check_branch
      %305 = sbr.rel (%p302) target = $region44
    $region43: #{_lambda_.3} parent=5 // pred_region
      %s306 = ssub.s32 %s15, 1
      %s307 = sadd.s32 %s24, %s25
      %p308 = scmp.lt.s32.totalorder %s307, 1
      %s309 = scalar_select %p308, %s307, 1
      %s310 = smul.addr %s309, 8
      %s311 = smul.addr %s310, 8
      %s312 = scalar_lea.vmem %s0, %s311
      %p313 = pneg %p55
      %p314 = pneg %p52
      %s315 = sadd.s32 %s24, %s25
      %p316 = scmp.lt.s32.totalorder %s315, 1
      %s317 = scalar_select %p316, %s315, 1
      %s318 = smul.addr %s317, 8
      %s319 = smul.addr %s318, 8
      %s320 = scalar_lea.vmem %s1, %s319
      %p321 = pneg %p83
      %p322 = pneg %p80
      %p323 = pneg %p104
      %p324 = pneg %p101
      %p325 = pneg %p125
      %p326 = pneg %p122
      %p327 = pneg %p146
      %p328 = pneg %p143
      %p329 = pneg %p167
      %p330 = pneg %p164
      %p331 = pneg %p195
      %p332 = pneg %p192
      %s333 = sadd.s32 %s24, %s25
      %p334 = scmp.lt.s32.totalorder %s333, 1
      %s335 = scalar_select %p334, %s333, 1
      %s336 = smul.addr %s335, 8
      %s337 = smul.addr %s336, 4
      %s338 = scalar_lea.vmem %s6, %s337
      %p339 = pneg %p223
      %p340 = pneg %p220
      %s341 = sadd.s32 %s24, %s25
      %p342 = scmp.lt.s32.totalorder %s341, 1
      %s343 = scalar_select %p342, %s341, 1
      %s344 = smul.addr %s343, 8
      %s345 = smul.addr %s344, 4
      %s346 = scalar_lea.vmem %s7, %s345
      %p347 = pneg %p249
      %p348 = pneg %p246
      %p349 = scmp.lt.s32.totalorder %s24, 1
      %s350 = scalar_select %p349, %s24, 1
      %s351 = scalar_lea.vmem %s8, %s350
      %s352 = sadd.s32 %s24, %s25
      %p353 = scmp.lt.s32.totalorder %s352, 1
      %s354 = scalar_select %p353, %s352, 1
      %s355 = smul.addr %s354, 8
      %s356 = smul.addr %s355, 8
      %s357 = scalar_lea.vmem %s0, %s356
      %s358 = sadd.s32 %s24, %s25
      %s359 = sadd.s32 %s24, %s25
      %p360 = scmp.lt.s32.totalorder %s359, 1
      %s361 = scalar_select %p360, %s359, 1
      %s362 = smul.addr %s361, 8
      %s363 = smul.addr %s362, 8
      %s364 = scalar_lea.vmem %s1, %s363
      %s365 = sadd.s32 %s24, %s25
      %s366 = sadd.s32 %s24, %s25
      %p367 = scmp.lt.s32.totalorder %s366, 1
      %s368 = scalar_select %p367, %s366, 1
      %s369 = smul.addr %s368, 8
      %s370 = smul.addr %s369, 4
      %s371 = scalar_lea.vmem %s6, %s370
      %s372 = sadd.s32 %s24, %s25
      %s373 = sadd.s32 %s24, %s25
      %p374 = scmp.lt.s32.totalorder %s373, 1
      %s375 = scalar_select %p374, %s373, 1
      %s376 = smul.addr %s375, 8
      %s377 = smul.addr %s376, 4
      %s378 = scalar_lea.vmem %s7, %s377
      %s379 = sadd.s32 %s24, %s25
      %p380 = scmp.lt.s32.totalorder %s24, 1
      %s381 = scalar_select %p380, %s24, 1
      %s382 = scalar_lea.vmem %s8, %s381
      %p383 = scmp.eq.s32.totalorder %s25, 0
      // Predicated region
      $region45: #{_lambda_.3} parent=43 // pred_check
        %p384 = pneg %p383
      $region46: #{_lambda_.3} parent=43 // pred_check_branch
        %386 = sbr.rel (%p384) target = $region48
      $region47: #{_lambda_.3} parent=43 // pred_region
        %387 = vst [vmem:[%s382] sm:$0x1] 0.0
      $region48: #{_lambda_.3} parent=43 // pred_fallthru
        _
      %v388 = vld [vmem:[%s2] sm:$0x7]
      %v389 = vld [vmem:[%s3] sm:$0x7]
      %v390 = vld [vmem:[%s4] sm:$0x1]
      %v391 = vld [vmem:[%s5] sm:$0x1]
      %v392 = vld [vmem:[%s357] sm:$0xff]
      %v393 = vld [vmem:[%s357 + $0x8] sm:$0xff]
      %v394 = vld [vmem:[%s357 + $0x10] sm:$0xff]
      %v395 = vld [vmem:[%s357 + $0x18] sm:$0xff]
      %v396 = vld [vmem:[%s357 + $0x20] sm:$0xff]
      %v397 = vld [vmem:[%s357 + $0x28] sm:$0xff]
      %v398 = vld [vmem:[%s357 + $0x30] sm:$0xff]
      %v399 = vld [vmem:[%s357 + $0x38] sm:$0xff]
      %v401 = vlaneseq
      %v402 = vshrl.u32 %v401, 7
      %v403 = vsub.s32 0, %v402
      %v404 = vrot.slane %v390, %v403
      %v406 = vadd.f32 %v404, 0.0
      %408 = vset.pattern.permute.xlu0 0
      %409 = vperm.xlu0 %408, %v392
      %v410 = vpop.permute.xlu0 %409
      %413 = vset.pattern.permute.xlu0 0
      %414 = vperm.xlu0 %413, %v393
      %v415 = vpop.permute.xlu0 %414
      %418 = vset.pattern.permute.xlu0 0
      %419 = vperm.xlu0 %418, %v394
      %v420 = vpop.permute.xlu0 %419
      %423 = vset.pattern.permute.xlu0 0
      %424 = vperm.xlu0 %423, %v395
      %v425 = vpop.permute.xlu0 %424
      %428 = vset.pattern.permute.xlu0 0
      %429 = vperm.xlu0 %428, %v396
      %v430 = vpop.permute.xlu0 %429
      %433 = vset.pattern.permute.xlu0 0
      %434 = vperm.xlu0 %433, %v397
      %v435 = vpop.permute.xlu0 %434
      %438 = vset.pattern.permute.xlu0 0
      %439 = vperm.xlu0 %438, %v398
      %v440 = vpop.permute.xlu0 %439
      %443 = vset.pattern.permute.xlu0 0
      %444 = vperm.xlu0 %443, %v399
      %v445 = vpop.permute.xlu0 %444
      %v447 = vlaneseq
      %v448 = vshrl.u32 %v447, 7
      %v449 = vsub.s32 0, %v448
      %v450 = vrot.slane %v388, %v449
      %v451 = vmul.f32 %v410, %v450
      %v452 = vmul.f32 %v415, %v450
      %v453 = vmul.f32 %v420, %v450
      %v454 = vmul.f32 %v425, %v450
      %v455 = vmul.f32 %v430, %v450
      %v456 = vmul.f32 %v435, %v450
      %v457 = vmul.f32 %v440, %v450
      %v458 = vmul.f32 %v445, %v450
      %v459 = vadd.f32 %v406, %v451
      %v460 = vadd.f32 %v406, %v452
      %v461 = vadd.f32 %v406, %v453
      %v462 = vadd.f32 %v406, %v454
      %v463 = vadd.f32 %v406, %v455
      %v464 = vadd.f32 %v406, %v456
      %v465 = vadd.f32 %v406, %v457
      %v466 = vadd.f32 %v406, %v458
      %467 = vset.pattern.permute.xlu0 1
      %468 = vperm.xlu0 %467, %v392
      %v469 = vpop.permute.xlu0 %468
      %471 = vset.pattern.permute.xlu0 1
      %472 = vperm.xlu0 %471, %v393
      %v473 = vpop.permute.xlu0 %472
      %475 = vset.pattern.permute.xlu0 1
      %476 = vperm.xlu0 %475, %v394
      %v477 = vpop.permute.xlu0 %476
      %479 = vset.pattern.permute.xlu0 1
      %480 = vperm.xlu0 %479, %v395
      %v481 = vpop.permute.xlu0 %480
      %483 = vset.pattern.permute.xlu0 1
      %484 = vperm.xlu0 %483, %v396
      %v485 = vpop.permute.xlu0 %484
      %487 = vset.pattern.permute.xlu0 1
      %488 = vperm.xlu0 %487, %v397
      %v489 = vpop.permute.xlu0 %488
      %491 = vset.pattern.permute.xlu0 1
      %492 = vperm.xlu0 %491, %v398
      %v493 = vpop.permute.xlu0 %492
      %495 = vset.pattern.permute.xlu0 1
      %496 = vperm.xlu0 %495, %v399
      %v497 = vpop.permute.xlu0 %496
      %v499 = vlaneseq
      %v500 = vshrl.u32 %v499, 7
      %v501 = vsub.s32 1, %v500
      %v502 = vrot.slane %v388, %v501
      %v503 = vmul.f32 %v469, %v502
      %v504 = vmul.f32 %v473, %v502
      %v505 = vmul.f32 %v477, %v502
      %v506 = vmul.f32 %v481, %v502
      %v507 = vmul.f32 %v485, %v502
      %v508 = vmul.f32 %v489, %v502
      %v509 = vmul.f32 %v493, %v502
      %v510 = vmul.f32 %v497, %v502
      %v511 = vadd.f32 %v459, %v503
      %v512 = vadd.f32 %v460, %v504
      %v513 = vadd.f32 %v461, %v505
      %v514 = vadd.f32 %v462, %v506
      %v515 = vadd.f32 %v463, %v507
      %v516 = vadd.f32 %v464, %v508
      %v517 = vadd.f32 %v465, %v509
      %v518 = vadd.f32 %v466, %v510
      %519 = vset.pattern.permute.xlu0 2
      %520 = vperm.xlu0 %519, %v392
      %v521 = vpop.permute.xlu0 %520
      %523 = vset.pattern.permute.xlu0 2
      %524 = vperm.xlu0 %523, %v393
      %v525 = vpop.permute.xlu0 %524
      %527 = vset.pattern.permute.xlu0 2
      %528 = vperm.xlu0 %527, %v394
      %v529 = vpop.permute.xlu0 %528
      %531 = vset.pattern.permute.xlu0 2
      %532 = vperm.xlu0 %531, %v395
      %v533 = vpop.permute.xlu0 %532
      %535 = vset.pattern.permute.xlu0 2
      %536 = vperm.xlu0 %535, %v396
      %v537 = vpop.permute.xlu0 %536
      %539 = vset.pattern.permute.xlu0 2
      %540 = vperm.xlu0 %539, %v397
      %v541 = vpop.permute.xlu0 %540
      %543 = vset.pattern.permute.xlu0 2
      %544 = vperm.xlu0 %543, %v398
      %v545 = vpop.permute.xlu0 %544
      %547 = vset.pattern.permute.xlu0 2
      %548 = vperm.xlu0 %547, %v399
      %v549 = vpop.permute.xlu0 %548
      %v551 = vlaneseq
      %v552 = vshrl.u32 %v551, 7
      %v553 = vsub.s32 2, %v552
      %v554 = vrot.slane %v388, %v553
      %v555 = vmul.f32 %v521, %v554
      %v556 = vmul.f32 %v525, %v554
      %v557 = vmul.f32 %v529, %v554
      %v558 = vmul.f32 %v533, %v554
      %v559 = vmul.f32 %v537, %v554
      %v560 = vmul.f32 %v541, %v554
      %v561 = vmul.f32 %v545, %v554
      %v562 = vmul.f32 %v549, %v554
      %v563 = vadd.f32 %v511, %v555
      %v564 = vadd.f32 %v512, %v556
      %v565 = vadd.f32 %v513, %v557
      %v566 = vadd.f32 %v514, %v558
      %v567 = vadd.f32 %v515, %v559
      %v568 = vadd.f32 %v516, %v560
      %v569 = vadd.f32 %v517, %v561
      %v570 = vadd.f32 %v518, %v562
      %v571 = vmax.f32 %v563, 0.0
      %v572 = vmax.f32 %v564, 0.0
      %v573 = vmax.f32 %v565, 0.0
      %v574 = vmax.f32 %v566, 0.0
      %v575 = vmax.f32 %v567, 0.0
      %v576 = vmax.f32 %v568, 0.0
      %v577 = vmax.f32 %v569, 0.0
      %v578 = vmax.f32 %v570, 0.0
      %v579 = vld [vmem:[%s364] sm:$0xff]
      %v580 = vld [vmem:[%s364 + $0x8] sm:$0xff]
      %v581 = vld [vmem:[%s364 + $0x10] sm:$0xff]
      %v582 = vld [vmem:[%s364 + $0x18] sm:$0xff]
      %v583 = vld [vmem:[%s364 + $0x20] sm:$0xff]
      %v584 = vld [vmem:[%s364 + $0x28] sm:$0xff]
      %v585 = vld [vmem:[%s364 + $0x30] sm:$0xff]
      %v586 = vld [vmem:[%s364 + $0x38] sm:$0xff]
      %v588 = vlaneseq
      %v589 = vshrl.u32 %v588, 7
      %v590 = vsub.s32 0, %v589
      %v591 = vrot.slane %v391, %v590
      %v593 = vadd.f32 %v591, 0.0
      %595 = vset.pattern.permute.xlu0 0
      %596 = vperm.xlu0 %595, %v579
      %v597 = vpop.permute.xlu0 %596
      %600 = vset.pattern.permute.xlu0 0
      %601 = vperm.xlu0 %600, %v580
      %v602 = vpop.permute.xlu0 %601
      %605 = vset.pattern.permute.xlu0 0
      %606 = vperm.xlu0 %605, %v581
      %v607 = vpop.permute.xlu0 %606
      %610 = vset.pattern.permute.xlu0 0
      %611 = vperm.xlu0 %610, %v582
      %v612 = vpop.permute.xlu0 %611
      %615 = vset.pattern.permute.xlu0 0
      %616 = vperm.xlu0 %615, %v583
      %v617 = vpop.permute.xlu0 %616
      %620 = vset.pattern.permute.xlu0 0
      %621 = vperm.xlu0 %620, %v584
      %v622 = vpop.permute.xlu0 %621
      %625 = vset.pattern.permute.xlu0 0
      %626 = vperm.xlu0 %625, %v585
      %v627 = vpop.permute.xlu0 %626
      %630 = vset.pattern.permute.xlu0 0
      %631 = vperm.xlu0 %630, %v586
      %v632 = vpop.permute.xlu0 %631
      %v634 = vlaneseq
      %v635 = vshrl.u32 %v634, 7
      %v636 = vsub.s32 0, %v635
      %v637 = vrot.slane %v389, %v636
      %v638 = vmul.f32 %v597, %v637
      %v639 = vmul.f32 %v602, %v637
      %v640 = vmul.f32 %v607, %v637
      %v641 = vmul.f32 %v612, %v637
      %v642 = vmul.f32 %v617, %v637
      %v643 = vmul.f32 %v622, %v637
      %v644 = vmul.f32 %v627, %v637
      %v645 = vmul.f32 %v632, %v637
      %v646 = vadd.f32 %v593, %v638
      %v647 = vadd.f32 %v593, %v639
      %v648 = vadd.f32 %v593, %v640
      %v649 = vadd.f32 %v593, %v641
      %v650 = vadd.f32 %v593, %v642
      %v651 = vadd.f32 %v593, %v643
      %v652 = vadd.f32 %v593, %v644
      %v653 = vadd.f32 %v593, %v645
      %654 = vset.pattern.permute.xlu0 1
      %655 = vperm.xlu0 %654, %v579
      %v656 = vpop.permute.xlu0 %655
      %658 = vset.pattern.permute.xlu0 1
      %659 = vperm.xlu0 %658, %v580
      %v660 = vpop.permute.xlu0 %659
      %662 = vset.pattern.permute.xlu0 1
      %663 = vperm.xlu0 %662, %v581
      %v664 = vpop.permute.xlu0 %663
      %666 = vset.pattern.permute.xlu0 1
      %667 = vperm.xlu0 %666, %v582
      %v668 = vpop.permute.xlu0 %667
      %670 = vset.pattern.permute.xlu0 1
      %671 = vperm.xlu0 %670, %v583
      %v672 = vpop.permute.xlu0 %671
      %674 = vset.pattern.permute.xlu0 1
      %675 = vperm.xlu0 %674, %v584
      %v676 = vpop.permute.xlu0 %675
      %678 = vset.pattern.permute.xlu0 1
      %679 = vperm.xlu0 %678, %v585
      %v680 = vpop.permute.xlu0 %679
      %682 = vset.pattern.permute.xlu0 1
      %683 = vperm.xlu0 %682, %v586
      %v684 = vpop.permute.xlu0 %683
      %v686 = vlaneseq
      %v687 = vshrl.u32 %v686, 7
      %v688 = vsub.s32 1, %v687
      %v689 = vrot.slane %v389, %v688
      %v690 = vmul.f32 %v656, %v689
      %v691 = vmul.f32 %v660, %v689
      %v692 = vmul.f32 %v664, %v689
      %v693 = vmul.f32 %v668, %v689
      %v694 = vmul.f32 %v672, %v689
      %v695 = vmul.f32 %v676, %v689
      %v696 = vmul.f32 %v680, %v689
      %v697 = vmul.f32 %v684, %v689
      %v698 = vadd.f32 %v646, %v690
      %v699 = vadd.f32 %v647, %v691
      %v700 = vadd.f32 %v648, %v692
      %v701 = vadd.f32 %v649, %v693
      %v702 = vadd.f32 %v650, %v694
      %v703 = vadd.f32 %v651, %v695
      %v704 = vadd.f32 %v652, %v696
      %v705 = vadd.f32 %v653, %v697
      %706 = vset.pattern.permute.xlu0 2
      %707 = vperm.xlu0 %706, %v579
      %v708 = vpop.permute.xlu0 %707
      %710 = vset.pattern.permute.xlu0 2
      %711 = vperm.xlu0 %710, %v580
      %v712 = vpop.permute.xlu0 %711
      %714 = vset.pattern.permute.xlu0 2
      %715 = vperm.xlu0 %714, %v581
      %v716 = vpop.permute.xlu0 %715
      %718 = vset.pattern.permute.xlu0 2
      %719 = vperm.xlu0 %718, %v582
      %v720 = vpop.permute.xlu0 %719
      %722 = vset.pattern.permute.xlu0 2
      %723 = vperm.xlu0 %722, %v583
      %v724 = vpop.permute.xlu0 %723
      %726 = vset.pattern.permute.xlu0 2
      %727 = vperm.xlu0 %726, %v584
      %v728 = vpop.permute.xlu0 %727
      %730 = vset.pattern.permute.xlu0 2
      %731 = vperm.xlu0 %730, %v585
      %v732 = vpop.permute.xlu0 %731
      %734 = vset.pattern.permute.xlu0 2
      %735 = vperm.xlu0 %734, %v586
      %v736 = vpop.permute.xlu0 %735
      %v738 = vlaneseq
      %v739 = vshrl.u32 %v738, 7
      %v740 = vsub.s32 2, %v739
      %v741 = vrot.slane %v389, %v740
      %v742 = vmul.f32 %v708, %v741
      %v743 = vmul.f32 %v712, %v741
      %v744 = vmul.f32 %v716, %v741
      %v745 = vmul.f32 %v720, %v741
      %v746 = vmul.f32 %v724, %v741
      %v747 = vmul.f32 %v728, %v741
      %v748 = vmul.f32 %v732, %v741
      %v749 = vmul.f32 %v736, %v741
      %v750 = vadd.f32 %v698, %v742
      %v751 = vadd.f32 %v699, %v743
      %v752 = vadd.f32 %v700, %v744
      %v753 = vadd.f32 %v701, %v745
      %v754 = vadd.f32 %v702, %v746
      %v755 = vadd.f32 %v703, %v747
      %v756 = vadd.f32 %v704, %v748
      %v757 = vadd.f32 %v705, %v749
      %v758 = vmax.f32 %v750, 0.0
      %v759 = vmax.f32 %v751, 0.0
      %v760 = vmax.f32 %v752, 0.0
      %v761 = vmax.f32 %v753, 0.0
      %v762 = vmax.f32 %v754, 0.0
      %v763 = vmax.f32 %v755, 0.0
      %v764 = vmax.f32 %v756, 0.0
      %v765 = vmax.f32 %v757, 0.0
      %v766 = vpack.c.bf16 %v572, %v571
      %v767 = vpack.c.bf16 %v574, %v573
      %v768 = vpack.c.bf16 %v576, %v575
      %v769 = vpack.c.bf16 %v578, %v577
      %v774 = vunpack.c.l.b16 %v766
      %v775 = vunpack.c.h.b16 %v766
      %v776 = vunpack.c.l.b16 %v767
      %v777 = vunpack.c.h.b16 %v767
      %v778 = vunpack.c.l.b16 %v768
      %v779 = vunpack.c.h.b16 %v768
      %v780 = vunpack.c.l.b16 %v769
      %v781 = vunpack.c.h.b16 %v769
      %v782 = vpack.c.b16 %v774, %v774
      %v783 = vpack.c.b16 %v775, %v775
      %v784 = vpack.c.b16 %v776, %v776
      %v785 = vpack.c.b16 %v777, %v777
      %v786 = vpack.c.b16 %v778, %v778
      %v787 = vpack.c.b16 %v779, %v779
      %v788 = vpack.c.b16 %v780, %v780
      %v789 = vpack.c.b16 %v781, %v781
      %798 = vst [vmem:[%s371] sm:$0xf] %v782
      %799 = vst [vmem:[%s371 + $0x4] sm:$0xf] %v783
      %800 = vst [vmem:[%s371 + $0x8] sm:$0xf] %v784
      %801 = vst [vmem:[%s371 + $0xc] sm:$0xf] %v785
      %802 = vst [vmem:[%s371 + $0x10] sm:$0xf] %v786
      %803 = vst [vmem:[%s371 + $0x14] sm:$0xf] %v787
      %804 = vst [vmem:[%s371 + $0x18] sm:$0xf] %v788
      %805 = vst [vmem:[%s371 + $0x1c] sm:$0xf] %v789
      %v806 = vpack.c.bf16 %v759, %v758
      %v807 = vpack.c.bf16 %v761, %v760
      %v808 = vpack.c.bf16 %v763, %v762
      %v809 = vpack.c.bf16 %v765, %v764
      %v814 = vunpack.c.l.b16 %v806
      %v815 = vunpack.c.h.b16 %v806
      %v816 = vunpack.c.l.b16 %v807
      %v817 = vunpack.c.h.b16 %v807
      %v818 = vunpack.c.l.b16 %v808
      %v819 = vunpack.c.h.b16 %v808
      %v820 = vunpack.c.l.b16 %v809
      %v821 = vunpack.c.h.b16 %v809
      %v822 = vpack.c.b16 %v814, %v814
      %v823 = vpack.c.b16 %v815, %v815
      %v824 = vpack.c.b16 %v816, %v816
      %v825 = vpack.c.b16 %v817, %v817
      %v826 = vpack.c.b16 %v818, %v818
      %v827 = vpack.c.b16 %v819, %v819
      %v828 = vpack.c.b16 %v820, %v820
      %v829 = vpack.c.b16 %v821, %v821
      %838 = vst [vmem:[%s378] sm:$0xf] %v822
      %839 = vst [vmem:[%s378 + $0x4] sm:$0xf] %v823
      %840 = vst [vmem:[%s378 + $0x8] sm:$0xf] %v824
      %841 = vst [vmem:[%s378 + $0xc] sm:$0xf] %v825
      %842 = vst [vmem:[%s378 + $0x10] sm:$0xf] %v826
      %843 = vst [vmem:[%s378 + $0x14] sm:$0xf] %v827
      %844 = vst [vmem:[%s378 + $0x18] sm:$0xf] %v828
      %845 = vst [vmem:[%s378 + $0x1c] sm:$0xf] %v829
      %v846 = vmax.f32 %v571, %v575
      %v847 = vmax.f32 %v572, %v576
      %v848 = vmax.f32 %v573, %v577
      %v849 = vmax.f32 %v574, %v578
      %v850 = vmax.f32 %v846, %v847
      %v851 = vmax.f32 %v848, %v849
      %v852 = vmax.f32 %v850, %v851
      %v853 = vrot.slane %v852, 4
      %v854 = vmax.f32 %v852, %v853
      %v855 = vrot.slane %v854, 2
      %v856 = vmax.f32 %v854, %v855
      %v857 = vrot.slane %v856, 1
      %v858 = vmax.f32 %v856, %v857
      %v859 = vsub.f32 %v571, %v858
      %v860 = vsub.f32 %v572, %v858
      %v861 = vsub.f32 %v573, %v858
      %v862 = vsub.f32 %v574, %v858
      %v863 = vsub.f32 %v575, %v858
      %v864 = vsub.f32 %v576, %v858
      %v865 = vsub.f32 %v577, %v858
      %v866 = vsub.f32 %v578, %v858
      %v867 = vmul.f32 %v859, 1.442695
      %v868 = vpow.pop %v867
      %v869 = vmul.f32 %v860, 1.442695
      %v870 = vpow.pop %v869
      %v871 = vmul.f32 %v861, 1.442695
      %v872 = vpow.pop %v871
      %v873 = vmul.f32 %v862, 1.442695
      %v874 = vpow.pop %v873
      %v875 = vmul.f32 %v863, 1.442695
      %v876 = vpow.pop %v875
      %v877 = vmul.f32 %v864, 1.442695
      %v878 = vpow.pop %v877
      %v879 = vmul.f32 %v865, 1.442695
      %v880 = vpow.pop %v879
      %v881 = vmul.f32 %v866, 1.442695
      %v882 = vpow.pop %v881
      %v883 = vadd.f32 %v868, %v870
      %v884 = vadd.f32 %v883, %v872
      %v885 = vadd.f32 %v884, %v874
      %v886 = vadd.f32 %v885, %v876
      %v887 = vadd.f32 %v886, %v878
      %v888 = vadd.f32 %v887, %v880
      %v889 = vadd.f32 %v888, %v882
      %v890 = vrot.slane %v889, 4
      %v891 = vadd.f32 %v889, %v890
      %v892 = vrot.slane %v891, 2
      %v893 = vadd.f32 %v891, %v892
      %v894 = vrot.slane %v893, 1
      %v895 = vadd.f32 %v893, %v894
      %v896 = vrcp.pop %v895
      %v897 = vmul.f32 %v896, 64.0
      %v898 = vmul.f32 %v868, %v897
      %v899 = vmul.f32 %v870, %v897
      %v900 = vmul.f32 %v872, %v897
      %v901 = vmul.f32 %v874, %v897
      %v902 = vmul.f32 %v876, %v897
      %v903 = vmul.f32 %v878, %v897
      %v904 = vmul.f32 %v880, %v897
      %v905 = vmul.f32 %v882, %v897
      %v906 = vmax.f32 %v758, %v762
      %v907 = vmax.f32 %v759, %v763
      %v908 = vmax.f32 %v760, %v764
      %v909 = vmax.f32 %v761, %v765
      %v910 = vmax.f32 %v906, %v907
      %v911 = vmax.f32 %v908, %v909
      %v912 = vmax.f32 %v910, %v911
      %v913 = vrot.slane %v912, 4
      %v914 = vmax.f32 %v912, %v913
      %v915 = vrot.slane %v914, 2
      %v916 = vmax.f32 %v914, %v915
      %v917 = vrot.slane %v916, 1
      %v918 = vmax.f32 %v916, %v917
      %v919 = vsub.f32 %v758, %v918
      %v920 = vsub.f32 %v759, %v918
      %v921 = vsub.f32 %v760, %v918
      %v922 = vsub.f32 %v761, %v918
      %v923 = vsub.f32 %v762, %v918
      %v924 = vsub.f32 %v763, %v918
      %v925 = vsub.f32 %v764, %v918
      %v926 = vsub.f32 %v765, %v918
      %v927 = vmul.f32 %v919, 1.442695
      %v928 = vpow.pop %v927
      %v929 = vmul.f32 %v920, 1.442695
      %v930 = vpow.pop %v929
      %v931 = vmul.f32 %v921, 1.442695
      %v932 = vpow.pop %v931
      %v933 = vmul.f32 %v922, 1.442695
      %v934 = vpow.pop %v933
      %v935 = vmul.f32 %v923, 1.442695
      %v936 = vpow.pop %v935
      %v937 = vmul.f32 %v924, 1.442695
      %v938 = vpow.pop %v937
      %v939 = vmul.f32 %v925, 1.442695
      %v940 = vpow.pop %v939
      %v941 = vmul.f32 %v926, 1.442695
      %v942 = vpow.pop %v941
      %v943 = vadd.f32 %v928, %v930
      %v944 = vadd.f32 %v943, %v932
      %v945 = vadd.f32 %v944, %v934
      %v946 = vadd.f32 %v945, %v936
      %v947 = vadd.f32 %v946, %v938
      %v948 = vadd.f32 %v947, %v940
      %v949 = vadd.f32 %v948, %v942
      %v950 = vrot.slane %v949, 4
      %v951 = vadd.f32 %v949, %v950
      %v952 = vrot.slane %v951, 2
      %v953 = vadd.f32 %v951, %v952
      %v954 = vrot.slane %v953, 1
      %v955 = vadd.f32 %v953, %v954
      %v956 = vrcp.pop %v955
      %v957 = vmul.f32 %v956, 64.0
      %v958 = vmul.f32 %v928, %v957
      %v959 = vmul.f32 %v930, %v957
      %v960 = vmul.f32 %v932, %v957
      %v961 = vmul.f32 %v934, %v957
      %v962 = vmul.f32 %v936, %v957
      %v963 = vmul.f32 %v938, %v957
      %v964 = vmul.f32 %v940, %v957
      %v965 = vmul.f32 %v942, %v957
      %v966 = vsub.f32 %v898, %v958
      %v967 = vsub.f32 %v899, %v959
      %v968 = vsub.f32 %v900, %v960
      %v969 = vsub.f32 %v901, %v961
      %v970 = vsub.f32 %v902, %v962
      %v971 = vsub.f32 %v903, %v963
      %v972 = vsub.f32 %v904, %v964
      %v973 = vsub.f32 %v905, %v965
      %v974 = vmul.f32 %v966, %v966
      %v975 = vmul.f32 %v967, %v967
      %v976 = vmul.f32 %v968, %v968
      %v977 = vmul.f32 %v969, %v969
      %v978 = vmul.f32 %v970, %v970
      %v979 = vmul.f32 %v971, %v971
      %v980 = vmul.f32 %v972, %v972
      %v981 = vmul.f32 %v973, %v973
      %v982 = vadd.f32 %v974, %v975
      %v983 = vadd.f32 %v982, %v976
      %v984 = vadd.f32 %v983, %v977
      %v985 = vadd.f32 %v984, %v978
      %v986 = vadd.f32 %v985, %v979
      %v987 = vadd.f32 %v986, %v980
      %v988 = vadd.f32 %v987, %v981
      %v989 = vrot.slane %v988, 4
      %v990 = vadd.f32 %v988, %v989
      %v991 = vrot.slane %v990, 2
      %v992 = vadd.f32 %v990, %v991
      %v993 = vrot.slane %v992, 1
      %v994 = vadd.f32 %v992, %v993
      %v995 = vadd.f32 %v994, 0.0
      %v996 = vld [vmem:[%s382] sm:$0x1]
      %v997 = vadd.f32 %v996, %v995
      %998 = vst [vmem:[%s382] sm:$0x1] %v997
      %s999 = sadd.s32 %s24, %s25
      %p1000 = scmp.lt.s32.totalorder %s999, 1
      %s1001 = scalar_select %p1000, %s999, 1
      %s1002 = smul.addr %s1001, 8
      %s1003 = smul.addr %s1002, 4
      %s1004 = scalar_lea.vmem %s6, %s1003
      %s1005 = sadd.s32 %s24, %s25
      %p1006 = scmp.lt.s32.totalorder %s1005, 1
      %s1007 = scalar_select %p1006, %s1005, 1
      %s1008 = smul.addr %s1007, 8
      %s1009 = smul.addr %s1008, 4
      %s1010 = scalar_lea.vmem %s7, %s1009
      %p1011 = scmp.lt.s32.totalorder %s24, 1
      %s1012 = scalar_select %p1011, %s24, 1
      %s1013 = scalar_lea.vmem %s8, %s1012
      // Predicated region
      $region49: #{_lambda_.3} parent=43 // pred_check
        %p1014 = pneg %p192
      $region50: #{_lambda_.3} parent=43 // pred_check_branch
        %1016 = sbr.rel (%p1014) target = $region52
      $region51: #{_lambda_.3} parent=43 // pred_region
        %s1017 = sadd.s32 %s24, %s25
      $region52: #{_lambda_.3} parent=43 // pred_fallthru
        _
      // Predicated region
      $region53: #{_lambda_.3} parent=43 // pred_check
        %p1018 = pneg %p220
      $region54: #{_lambda_.3} parent=43 // pred_check_branch
        %1020 = sbr.rel (%p1018) target = $region56
      $region55: #{_lambda_.3} parent=43 // pred_region
        %s1021 = sadd.s32 %s24, %s25
      $region56: #{_lambda_.3} parent=43 // pred_fallthru
        _
      // Predicated region
      $region57: #{_lambda_.3} parent=43 // pred_check
        %p1022 = pneg %p246
      $region58: #{_lambda_.3} parent=43 // pred_check_branch
        %1024 = sbr.rel (%p1022) target = $region60
      $region59: #{_lambda_.3} parent=43 // pred_region
        _
      $region60: #{_lambda_.3} parent=43 // pred_fallthru
        _
    $region44: #{_lambda_.3} parent=5 // pred_fallthru
      _
    %p1025 = scmp.le.s32.totalorder 2, %s15
    // Predicated region
    $region61: #{_lambda_.3} parent=5 // pred_check
      %p1026 = pneg %p1025
    $region62: #{_lambda_.3} parent=5 // pred_check_branch
      %1028 = sbr.rel (%p1026) target = $region64
    $region63: #{_lambda_.3} parent=5 // pred_region
      %s1029 = ssub.s32 %s15, 2
      // Predicated region
      $region65: #{_lambda_.3} parent=63 // pred_check
        %p1030 = pneg %p198
      $region66: #{_lambda_.3} parent=63 // pred_check_branch
        %1032 = sbr.rel (%p1030) target = $region68
      $region67: #{_lambda_.3} parent=63 // pred_region
        %s1033 = sadd.s32 %s26, %s27
        %p1034 = scmp.lt.s32.totalorder %s1033, 1
        %s1035 = scalar_select %p1034, %s1033, 1
        %s1036 = smul.addr %s1035, 8
        %s1037 = smul.addr %s1036, 4
        %s1038 = scalar_lea.vmem %s6, %s1037
      $region68: #{_lambda_.3} parent=63 // pred_fallthru
        _
      // Predicated region
      $region69: #{_lambda_.3} parent=63 // pred_check
        %p1039 = pneg %p226
      $region70: #{_lambda_.3} parent=63 // pred_check_branch
        %1041 = sbr.rel (%p1039) target = $region72
      $region71: #{_lambda_.3} parent=63 // pred_region
        %s1042 = sadd.s32 %s26, %s27
        %p1043 = scmp.lt.s32.totalorder %s1042, 1
        %s1044 = scalar_select %p1043, %s1042, 1
        %s1045 = smul.addr %s1044, 8
        %s1046 = smul.addr %s1045, 4
        %s1047 = scalar_lea.vmem %s7, %s1046
      $region72: #{_lambda_.3} parent=63 // pred_fallthru
        _
      // Predicated region
      $region73: #{_lambda_.3} parent=63 // pred_check
        %p1048 = pneg %p252
      $region74: #{_lambda_.3} parent=63 // pred_check_branch
        %1050 = sbr.rel (%p1048) target = $region76
      $region75: #{_lambda_.3} parent=63 // pred_region
        %p1051 = scmp.lt.s32.totalorder %s26, 1
        %s1052 = scalar_select %p1051, %s26, 1
        %s1053 = scalar_lea.vmem %s8, %s1052
      $region76: #{_lambda_.3} parent=63 // pred_fallthru
        _
    $region64: #{_lambda_.3} parent=5 // pred_fallthru
      _
  $region6: #{_lambda_.3} parent=0 // loop_footer
    %s19 = sadd.s32 1, %s15
  $region7: #{_lambda_.3} parent=0 // loop_footer_branch
    %14 = sbr.rel target = $region3
  $region8: #{_lambda_.3} parent=0 // loop_exit
    _

// kernel: _lambda_.4
$region0: #{_lambda_.4}
  #allocation0 [shape = 'u32[]', space=smem, size = 0x4, offset = 0x4, fixed_abs, tag = 'smem constant byte address 0x4 - core index']
  #allocation1 [shape = 'u32[144,128]{1,0:T(1,128)}', space=vmem, size = 0x12000, scoped, tag = 'internal scratch']
  %s0 = inlined_call_operand.vmem [shape: bf16[2,16,128], index: 0, kind: input, shape index: {}]
  %s1 = inlined_call_operand.vmem [shape: bf16[2,16,128], index: 1, kind: input, shape index: {}]
  %s2 = inlined_call_operand.vmem [shape: bf16[128,128], index: 2, kind: input, shape index: {}, may-alias: {2,3}]
  %s3 = inlined_call_operand.vmem [shape: bf16[128,128], index: 3, kind: input, shape index: {}, may-alias: {2,3}]
  %s4 = inlined_call_operand.vmem [shape: f32[1,128], index: 4, kind: input, shape index: {}, may-alias: {4,5}]
  %s5 = inlined_call_operand.vmem [shape: f32[1,128], index: 5, kind: input, shape index: {}, may-alias: {4,5}]
  %s6 = inlined_call_operand.vmem [shape: bf16[2,16,128], index: 6, kind: output, shape index: {0}]
  %s7 = inlined_call_operand.vmem [shape: bf16[2,16,128], index: 7, kind: output, shape index: {1}]
  %s8 = inlined_call_operand.vmem [shape: f32[2,1,128], index: 8, kind: output, shape index: {2}]
  %9 = xla_tuple %s6, %s7, %s8
  %s10 = sld [smem:[#allocation0]]
  $region77: #{_lambda_.4} parent=0
    _
  %s12 = ssub.s32 1, %s10
  %s13 = scalar_select 0, %s12, %s10
  loop: start=0, step=1, limit=4
  $region2: #{_lambda_.4} parent=0 // loop_pre_header
    _
  $region3: #{_lambda_.4} parent=0 // loop_header
    %s15 = sphi 0, %s19
    %p16 = scmp.ge.s32.totalorder %s15, 4
    %s22 = sphi 0, %s34
    %s23 = sphi 0, %s30
    %s24 = sphi 0, %s22
    %s25 = sphi 0, %s23
    %s26 = sphi 0, %s24
    %s27 = sphi 0, %s25
    %s39 = sphi 0, %s41
    %s42 = sphi 0, %s39
    %s43 = sphi 0, %s42
    %s59 = sphi 0, %s43
    %s67 = sphi 0, %s69
    %s70 = sphi 0, %s67
    %s71 = sphi 0, %s70
    %s87 = sphi 0, %s71
    %s91 = sphi 0, %s91
    %s93 = sphi 0, %s91
    %s94 = sphi 0, %s93
    %s108 = sphi 0, %s94
    %s112 = sphi 0, %s112
    %s114 = sphi 0, %s112
    %s115 = sphi 0, %s114
    %s129 = sphi 0, %s115
    %s133 = sphi 0, %s133
    %s135 = sphi 0, %s133
    %s136 = sphi 0, %s135
    %s150 = sphi 0, %s136
    %s154 = sphi 0, %s154
    %s156 = sphi 0, %s154
    %s157 = sphi 0, %s156
    %s171 = sphi 0, %s157
    %s179 = sphi 0, %s181
    %s182 = sphi 0, %s179
    %s183 = sphi 0, %s182
    %s199 = sphi 0, %s183
    %s207 = sphi 0, %s209
    %s210 = sphi 0, %s207
    %s211 = sphi 0, %s210
    %s227 = sphi 0, %s211
    %s233 = sphi 0, %s235
    %s236 = sphi 0, %s233
    %s237 = sphi 0, %s236
    %s253 = sphi 0, %s237
  $region4: #{_lambda_.4} parent=0 // loop_header_branch
    %18 = sbr.rel (%p16) target = $region8
  $region5: #{_lambda_.4} parent=0 // loop_body
    %s20 = ssub.s32 %s15, 1
    %s21 = ssub.s32 %s15, 2
    %s28 = sadd.s32 1, %s23
    %p29 = scmp.ge.s32.totalorder %s28, 1
    %s30 = scalar_select %p29, 0, %s28
    %s31 = sadd.s32 1, %s22
    %s32 = scalar_select %p29, %s31, %s22
    %p33 = scmp.ge.s32.totalorder %s32, 2
    %s34 = scalar_select %p33, 0, %s32
    %s35 = sadd.s32 %s22, %s23
    %s36 = sadd.s32 %s34, %s30
    %s37 = ssub.s32 %s35, %s36
    %p38 = scmp.eq.s32.totalorder %s37, 0
    %s40 = sadd.s32 %s39, 1
    %s41 = scalar_select %p38, %s39, %s40
    %p44 = pneg %p38
    %p45 = scmp.eq.s32.totalorder %s15, 1
    %p46 = por %p44, %p45
    %p47 = scmp.ne.s32.totalorder %s39, %s42
    %p48 = scmp.eq.s32.totalorder %s15, 0
    %p49 = por %p47, %p48
    %p50 = scmp.ne.s32.totalorder %s39, %s42
    %p51 = scmp.eq.s32.totalorder %s20, 1
    %p52 = por %p50, %p51
    %p53 = scmp.ne.s32.totalorder %s42, %s43
    %p54 = scmp.eq.s32.totalorder %s20, 0
    %p55 = por %p53, %p54
    %p56 = scmp.ne.s32.totalorder %s42, %s43
    %p57 = scmp.eq.s32.totalorder %s21, 1
    %p58 = por %p56, %p57
    %p60 = scmp.ne.s32.totalorder %s43, %s59
    %p61 = scmp.eq.s32.totalorder %s21, 0
    %p62 = por %p60, %p61
    %s63 = sadd.s32 %s22, %s23
    %s64 = sadd.s32 %s34, %s30
    %s65 = ssub.s32 %s63, %s64
    %p66 = scmp.eq.s32.totalorder %s65, 0
    %s68 = sadd.s32 %s67, 1
    %s69 = scalar_select %p66, %s67, %s68
    %p72 = pneg %p66
    %p73 = scmp.eq.s32.totalorder %s15, 1
    %p74 = por %p72, %p73
    %p75 = scmp.ne.s32.totalorder %s67, %s70
    %p76 = scmp.eq.s32.totalorder %s15, 0
    %p77 = por %p75, %p76
    %p78 = scmp.ne.s32.totalorder %s67, %s70
    %p79 = scmp.eq.s32.totalorder %s20, 1
    %p80 = por %p78, %p79
    %p81 = scmp.ne.s32.totalorder %s70, %s71
    %p82 = scmp.eq.s32.totalorder %s20, 0
    %p83 = por %p81, %p82
    %p84 = scmp.ne.s32.totalorder %s70, %s71
    %p85 = scmp.eq.s32.totalorder %s21, 1
    %p86 = por %p84, %p85
    %p88 = scmp.ne.s32.totalorder %s71, %s87
    %p89 = scmp.eq.s32.totalorder %s21, 0
    %p90 = por %p88, %p89
    %s92 = sadd.s32 %s91, 1
    %p95 = scmp.eq.s32.totalorder %s15, 1
    %p96 = scmp.ne.s32.totalorder %s91, %s93
    %p97 = scmp.eq.s32.totalorder %s15, 0
    %p98 = por %p96, %p97
    %p99 = scmp.ne.s32.totalorder %s91, %s93
    %p100 = scmp.eq.s32.totalorder %s20, 1
    %p101 = por %p99, %p100
    %p102 = scmp.ne.s32.totalorder %s93, %s94
    %p103 = scmp.eq.s32.totalorder %s20, 0
    %p104 = por %p102, %p103
    %p105 = scmp.ne.s32.totalorder %s93, %s94
    %p106 = scmp.eq.s32.totalorder %s21, 1
    %p107 = por %p105, %p106
    %p109 = scmp.ne.s32.totalorder %s94, %s108
    %p110 = scmp.eq.s32.totalorder %s21, 0
    %p111 = por %p109, %p110
    %s113 = sadd.s32 %s112, 1
    %p116 = scmp.eq.s32.totalorder %s15, 1
    %p117 = scmp.ne.s32.totalorder %s112, %s114
    %p118 = scmp.eq.s32.totalorder %s15, 0
    %p119 = por %p117, %p118
    %p120 = scmp.ne.s32.totalorder %s112, %s114
    %p121 = scmp.eq.s32.totalorder %s20, 1
    %p122 = por %p120, %p121
    %p123 = scmp.ne.s32.totalorder %s114, %s115
    %p124 = scmp.eq.s32.totalorder %s20, 0
    %p125 = por %p123, %p124
    %p126 = scmp.ne.s32.totalorder %s114, %s115
    %p127 = scmp.eq.s32.totalorder %s21, 1
    %p128 = por %p126, %p127
    %p130 = scmp.ne.s32.totalorder %s115, %s129
    %p131 = scmp.eq.s32.totalorder %s21, 0
    %p132 = por %p130, %p131
    %s134 = sadd.s32 %s133, 1
    %p137 = scmp.eq.s32.totalorder %s15, 1
    %p138 = scmp.ne.s32.totalorder %s133, %s135
    %p139 = scmp.eq.s32.totalorder %s15, 0
    %p140 = por %p138, %p139
    %p141 = scmp.ne.s32.totalorder %s133, %s135
    %p142 = scmp.eq.s32.totalorder %s20, 1
    %p143 = por %p141, %p142
    %p144 = scmp.ne.s32.totalorder %s135, %s136
    %p145 = scmp.eq.s32.totalorder %s20, 0
    %p146 = por %p144, %p145
    %p147 = scmp.ne.s32.totalorder %s135, %s136
    %p148 = scmp.eq.s32.totalorder %s21, 1
    %p149 = por %p147, %p148
    %p151 = scmp.ne.s32.totalorder %s136, %s150
    %p152 = scmp.eq.s32.totalorder %s21, 0
    %p153 = por %p151, %p152
    %s155 = sadd.s32 %s154, 1
    %p158 = scmp.eq.s32.totalorder %s15, 1
    %p159 = scmp.ne.s32.totalorder %s154, %s156
    %p160 = scmp.eq.s32.totalorder %s15, 0
    %p161 = por %p159, %p160
    %p162 = scmp.ne.s32.totalorder %s154, %s156
    %p163 = scmp.eq.s32.totalorder %s20, 1
    %p164 = por %p162, %p163
    %p165 = scmp.ne.s32.totalorder %s156, %s157
    %p166 = scmp.eq.s32.totalorder %s20, 0
    %p167 = por %p165, %p166
    %p168 = scmp.ne.s32.totalorder %s156, %s157
    %p169 = scmp.eq.s32.totalorder %s21, 1
    %p170 = por %p168, %p169
    %p172 = scmp.ne.s32.totalorder %s157, %s171
    %p173 = scmp.eq.s32.totalorder %s21, 0
    %p174 = por %p172, %p173
    %s175 = sadd.s32 %s22, %s23
    %s176 = sadd.s32 %s34, %s30
    %s177 = ssub.s32 %s175, %s176
    %p178 = scmp.eq.s32.totalorder %s177, 0
    %s180 = sadd.s32 %s179, 1
    %s181 = scalar_select %p178, %s179, %s180
    %p184 = pneg %p178
    %p185 = scmp.eq.s32.totalorder %s15, 1
    %p186 = por %p184, %p185
    %p187 = scmp.ne.s32.totalorder %s179, %s182
    %p188 = scmp.eq.s32.totalorder %s15, 0
    %p189 = por %p187, %p188
    %p190 = scmp.ne.s32.totalorder %s179, %s182
    %p191 = scmp.eq.s32.totalorder %s20, 1
    %p192 = por %p190, %p191
    %p193 = scmp.ne.s32.totalorder %s182, %s183
    %p194 = scmp.eq.s32.totalorder %s20, 0
    %p195 = por %p193, %p194
    %p196 = scmp.ne.s32.totalorder %s182, %s183
    %p197 = scmp.eq.s32.totalorder %s21, 1
    %p198 = por %p196, %p197
    %p200 = scmp.ne.s32.totalorder %s183, %s199
    %p201 = scmp.eq.s32.totalorder %s21, 0
    %p202 = por %p200, %p201
    %s203 = sadd.s32 %s22, %s23
    %s204 = sadd.s32 %s34, %s30
    %s205 = ssub.s32 %s203, %s204
    %p206 = scmp.eq.s32.totalorder %s205, 0
    %s208 = sadd.s32 %s207, 1
    %s209 = scalar_select %p206, %s207, %s208
    %p212 = pneg %p206
    %p213 = scmp.eq.s32.totalorder %s15, 1
    %p214 = por %p212, %p213
    %p215 = scmp.ne.s32.totalorder %s207, %s210
    %p216 = scmp.eq.s32.totalorder %s15, 0
    %p217 = por %p215, %p216
    %p218 = scmp.ne.s32.totalorder %s207, %s210
    %p219 = scmp.eq.s32.totalorder %s20, 1
    %p220 = por %p218, %p219
    %p221 = scmp.ne.s32.totalorder %s210, %s211
    %p222 = scmp.eq.s32.totalorder %s20, 0
    %p223 = por %p221, %p222
    %p224 = scmp.ne.s32.totalorder %s210, %s211
    %p225 = scmp.eq.s32.totalorder %s21, 1
    %p226 = por %p224, %p225
    %p228 = scmp.ne.s32.totalorder %s211, %s227
    %p229 = scmp.eq.s32.totalorder %s21, 0
    %p230 = por %p228, %p229
    %s231 = ssub.s32 %s22, %s34
    %p232 = scmp.eq.s32.totalorder %s231, 0
    %s234 = sadd.s32 %s233, 1
    %s235 = scalar_select %p232, %s233, %s234
    %p238 = pneg %p232
    %p239 = scmp.eq.s32.totalorder %s15, 1
    %p240 = por %p238, %p239
    %p241 = scmp.ne.s32.totalorder %s233, %s236
    %p242 = scmp.eq.s32.totalorder %s15, 0
    %p243 = por %p241, %p242
    %p244 = scmp.ne.s32.totalorder %s233, %s236
    %p245 = scmp.eq.s32.totalorder %s20, 1
    %p246 = por %p244, %p245
    %p247 = scmp.ne.s32.totalorder %s236, %s237
    %p248 = scmp.eq.s32.totalorder %s20, 0
    %p249 = por %p247, %p248
    %p250 = scmp.ne.s32.totalorder %s236, %s237
    %p251 = scmp.eq.s32.totalorder %s21, 1
    %p252 = por %p250, %p251
    %p254 = scmp.ne.s32.totalorder %s237, %s253
    %p255 = scmp.eq.s32.totalorder %s21, 0
    %p256 = por %p254, %p255
    %p257 = scmp.le.s32.totalorder 1, %s15
    %p258 = scmp.lt.s32.totalorder %s15, 3
    %p259 = pnand %p257, %p258
    %p260 = pneg %p259
    // Predicated region
    $region9: #{_lambda_.4} parent=5 // pred_check
      _
    $region10: #{_lambda_.4} parent=5 // pred_check_branch
      %262 = sbr.rel (%p259) target = $region12
    $region11: #{_lambda_.4} parent=5 // pred_region
      %s263 = ssub.s32 %s15, 1
      // Predicated region
      $region13: #{_lambda_.4} parent=11 // pred_check
        %p264 = pneg %p104
      $region14: #{_lambda_.4} parent=11 // pred_check_branch
        %266 = sbr.rel (%p264) target = $region16
      $region15: #{_lambda_.4} parent=11 // pred_region
        _
      $region16: #{_lambda_.4} parent=11 // pred_fallthru
        _
      // Predicated region
      $region17: #{_lambda_.4} parent=11 // pred_check
        %p267 = pneg %p125
      $region18: #{_lambda_.4} parent=11 // pred_check_branch
        %269 = sbr.rel (%p267) target = $region20
      $region19: #{_lambda_.4} parent=11 // pred_region
        _
      $region20: #{_lambda_.4} parent=11 // pred_fallthru
        _
      // Predicated region
      $region21: #{_lambda_.4} parent=11 // pred_check
        %p270 = pneg %p146
      $region22: #{_lambda_.4} parent=11 // pred_check_branch
        %272 = sbr.rel (%p270) target = $region24
      $region23: #{_lambda_.4} parent=11 // pred_region
        _
      $region24: #{_lambda_.4} parent=11 // pred_fallthru
        _
      // Predicated region
      $region25: #{_lambda_.4} parent=11 // pred_check
        %p273 = pneg %p167
      $region26: #{_lambda_.4} parent=11 // pred_check_branch
        %275 = sbr.rel (%p273) target = $region28
      $region27: #{_lambda_.4} parent=11 // pred_region
        _
      $region28: #{_lambda_.4} parent=11 // pred_fallthru
        _
    $region12: #{_lambda_.4} parent=5 // pred_fallthru
      _
    %p276 = scmp.lt.s32.totalorder %s15, 2
    // Predicated region
    $region29: #{_lambda_.4} parent=5 // pred_check
      %p277 = pneg %p276
    $region30: #{_lambda_.4} parent=5 // pred_check_branch
      %279 = sbr.rel (%p277) target = $region32
    $region31: #{_lambda_.4} parent=5 // pred_region
      // Predicated region
      $region33: #{_lambda_.4} parent=31 // pred_check
        %p280 = pneg %p49
      $region34: #{_lambda_.4} parent=31 // pred_check_branch
        %282 = sbr.rel (%p280) target = $region36
      $region35: #{_lambda_.4} parent=31 // pred_region
        %s283 = sadd.s32 %s22, %s23
        %p284 = scmp.lt.s32.totalorder %s283, 1
        %s285 = scalar_select %p284, %s283, 1
        %s286 = smul.addr %s285, 2
        %s287 = smul.addr %s286, 4
        %s288 = scalar_lea.vmem %s0, %s287
        %s289 = sadd.s32 %s22, %s23
      $region36: #{_lambda_.4} parent=31 // pred_fallthru
        _
      // Predicated region
      $region37: #{_lambda_.4} parent=31 // pred_check
        %p290 = pneg %p77
      $region38: #{_lambda_.4} parent=31 // pred_check_branch
        %292 = sbr.rel (%p290) target = $region40
      $region39: #{_lambda_.4} parent=31 // pred_region
        %s293 = sadd.s32 %s22, %s23
        %p294 = scmp.lt.s32.totalorder %s293, 1
        %s295 = scalar_select %p294, %s293, 1
        %s296 = smul.addr %s295, 2
        %s297 = smul.addr %s296, 4
        %s298 = scalar_lea.vmem %s1, %s297
        %s299 = sadd.s32 %s22, %s23
      $region40: #{_lambda_.4} parent=31 // pred_fallthru
        _
    $region32: #{_lambda_.4} parent=5 // pred_fallthru
      _
    %p300 = scmp.le.s32.totalorder 1, %s15
    %p301 = scmp.lt.s32.totalorder %s15, 3
    %p302 = pnand %p300, %p301
    %p303 = pneg %p302
    // Predicated region
    $region41: #{_lambda_.4} parent=5 // pred_check
      _
    $region42: #{_lambda_.4} parent=5 // pred_check_branch
      %305 = sbr.rel (%p302) target = $region44
    $region43: #{_lambda_.4} parent=5 // pred_region
      %s306 = ssub.s32 %s15, 1
      %s307 = sadd.s32 %s24, %s25
      %p308 = scmp.lt.s32.totalorder %s307, 1
      %s309 = scalar_select %p308, %s307, 1
      %s310 = smul.addr %s309, 2
      %s311 = smul.addr %s310, 4
      %s312 = scalar_lea.vmem %s0, %s311
      %p313 = pneg %p55
      %p314 = pneg %p52
      %s315 = sadd.s32 %s24, %s25
      %p316 = scmp.lt.s32.totalorder %s315, 1
      %s317 = scalar_select %p316, %s315, 1
      %s318 = smul.addr %s317, 2
      %s319 = smul.addr %s318, 4
      %s320 = scalar_lea.vmem %s1, %s319
      %p321 = pneg %p83
      %p322 = pneg %p80
      %p323 = pneg %p104
      %p324 = pneg %p101
      %p325 = pneg %p125
      %p326 = pneg %p122
      %p327 = pneg %p146
      %p328 = pneg %p143
      %p329 = pneg %p167
      %p330 = pneg %p164
      %p331 = pneg %p195
      %p332 = pneg %p192
      %s333 = sadd.s32 %s24, %s25
      %p334 = scmp.lt.s32.totalorder %s333, 1
      %s335 = scalar_select %p334, %s333, 1
      %s336 = smul.addr %s335, 2
      %s337 = smul.addr %s336, 4
      %s338 = scalar_lea.vmem %s6, %s337
      %p339 = pneg %p223
      %p340 = pneg %p220
      %s341 = sadd.s32 %s24, %s25
      %p342 = scmp.lt.s32.totalorder %s341, 1
      %s343 = scalar_select %p342, %s341, 1
      %s344 = smul.addr %s343, 2
      %s345 = smul.addr %s344, 4
      %s346 = scalar_lea.vmem %s7, %s345
      %p347 = pneg %p249
      %p348 = pneg %p246
      %p349 = scmp.lt.s32.totalorder %s24, 1
      %s350 = scalar_select %p349, %s24, 1
      %s351 = scalar_lea.vmem %s8, %s350
      %s352 = sadd.s32 %s24, %s25
      %p353 = scmp.lt.s32.totalorder %s352, 1
      %s354 = scalar_select %p353, %s352, 1
      %s355 = smul.addr %s354, 2
      %s356 = smul.addr %s355, 4
      %s357 = scalar_lea.vmem %s0, %s356
      %s358 = sadd.s32 %s24, %s25
      %s359 = sadd.s32 %s24, %s25
      %p360 = scmp.lt.s32.totalorder %s359, 1
      %s361 = scalar_select %p360, %s359, 1
      %s362 = smul.addr %s361, 2
      %s363 = smul.addr %s362, 4
      %s364 = scalar_lea.vmem %s1, %s363
      %s365 = sadd.s32 %s24, %s25
      %s366 = sadd.s32 %s24, %s25
      %p367 = scmp.lt.s32.totalorder %s366, 1
      %s368 = scalar_select %p367, %s366, 1
      %s369 = smul.addr %s368, 2
      %s370 = smul.addr %s369, 4
      %s371 = scalar_lea.vmem %s6, %s370
      %s372 = sadd.s32 %s24, %s25
      %s373 = sadd.s32 %s24, %s25
      %p374 = scmp.lt.s32.totalorder %s373, 1
      %s375 = scalar_select %p374, %s373, 1
      %s376 = smul.addr %s375, 2
      %s377 = smul.addr %s376, 4
      %s378 = scalar_lea.vmem %s7, %s377
      %s379 = sadd.s32 %s24, %s25
      %p380 = scmp.lt.s32.totalorder %s24, 1
      %s381 = scalar_select %p380, %s24, 1
      %s382 = scalar_lea.vmem %s8, %s381
      %p384 = scmp.eq.s32.totalorder %s25, 0
      // Predicated region
      $region45: #{_lambda_.4} parent=43 // pred_check
        %p385 = pneg %p384
      $region46: #{_lambda_.4} parent=43 // pred_check_branch
        %387 = sbr.rel (%p385) target = $region48
      $region47: #{_lambda_.4} parent=43 // pred_region
        %388 = vst [vmem:[%s382] sm:$0x1] 0.0
      $region48: #{_lambda_.4} parent=43 // pred_fallthru
        _
      %v389 = vld [vmem:[%s2] sm:$0xf]
      %v390 = vld [vmem:[%s2 + $0x4] sm:$0xf]
      %v391 = vld [vmem:[%s2 + $0x8] sm:$0xf]
      %v392 = vld [vmem:[%s2 + $0xc] sm:$0xf]
      %v393 = vld [vmem:[%s2 + $0x10] sm:$0xf]
      %v394 = vld [vmem:[%s2 + $0x14] sm:$0xf]
      %v395 = vld [vmem:[%s2 + $0x18] sm:$0xf]
      %v396 = vld [vmem:[%s2 + $0x1c] sm:$0xf]
      %v397 = vld [vmem:[%s2 + $0x20] sm:$0xf]
      %v398 = vld [vmem:[%s2 + $0x24] sm:$0xf]
      %v399 = vld [vmem:[%s2 + $0x28] sm:$0xf]
      %v400 = vld [vmem:[%s2 + $0x2c] sm:$0xf]
      %v401 = vld [vmem:[%s2 + $0x30] sm:$0xf]
      %v402 = vld [vmem:[%s2 + $0x34] sm:$0xf]
      %v403 = vld [vmem:[%s2 + $0x38] sm:$0xf]
      %v404 = vld [vmem:[%s2 + $0x3c] sm:$0xf]
      %v405 = vld [vmem:[%s3] sm:$0xf]
      %v406 = vld [vmem:[%s3 + $0x4] sm:$0xf]
      %v407 = vld [vmem:[%s3 + $0x8] sm:$0xf]
      %v408 = vld [vmem:[%s3 + $0xc] sm:$0xf]
      %v409 = vld [vmem:[%s3 + $0x10] sm:$0xf]
      %v410 = vld [vmem:[%s3 + $0x14] sm:$0xf]
      %v411 = vld [vmem:[%s3 + $0x18] sm:$0xf]
      %v412 = vld [vmem:[%s3 + $0x1c] sm:$0xf]
      %v413 = vld [vmem:[%s3 + $0x20] sm:$0xf]
      %v414 = vld [vmem:[%s3 + $0x24] sm:$0xf]
      %v415 = vld [vmem:[%s3 + $0x28] sm:$0xf]
      %v416 = vld [vmem:[%s3 + $0x2c] sm:$0xf]
      %v417 = vld [vmem:[%s3 + $0x30] sm:$0xf]
      %v418 = vld [vmem:[%s3 + $0x34] sm:$0xf]
      %v419 = vld [vmem:[%s3 + $0x38] sm:$0xf]
      %v420 = vld [vmem:[%s3 + $0x3c] sm:$0xf]
      %v421 = vld [vmem:[%s4] sm:$0x1]
      %v422 = vld [vmem:[%s5] sm:$0x1]
      %v423 = vld [vmem:[%s357] sm:$0xf]
      %v424 = vld [vmem:[%s357 + $0x4] sm:$0xf]
      %v426 = vlaneseq
      %v427 = vshrl.u32 %v426, 7
      %v428 = vsub.s32 0, %v427
      %v429 = vrot.slane %v421, %v428
      %v433 = vunpack.c.l.b16 %v423
      %v434 = vunpack.c.l.b16 %v424
      %v435 = vpack.c.b16 %v434, %v433
      %v453 = vunpack.c.l.b16 %v389
      %v454 = vunpack.c.l.b16 %v390
      %v455 = vunpack.c.l.b16 %v391
      %v456 = vunpack.c.l.b16 %v392
      %v457 = vunpack.c.l.b16 %v393
      %v458 = vunpack.c.l.b16 %v394
      %v459 = vunpack.c.l.b16 %v395
      %v460 = vunpack.c.l.b16 %v396
      %v461 = vunpack.c.l.b16 %v397
      %v462 = vunpack.c.l.b16 %v398
      %v463 = vunpack.c.l.b16 %v399
      %v464 = vunpack.c.l.b16 %v400
      %v465 = vunpack.c.l.b16 %v401
      %v466 = vunpack.c.l.b16 %v402
      %v467 = vunpack.c.l.b16 %v403
      %v468 = vunpack.c.l.b16 %v404
      %v469 = vpack.c.b16 %v454, %v453
      %v470 = vpack.c.b16 %v456, %v455
      %v471 = vpack.c.b16 %v458, %v457
      %v472 = vpack.c.b16 %v460, %v459
      %v473 = vpack.c.b16 %v462, %v461
      %v474 = vpack.c.b16 %v464, %v463
      %v475 = vpack.c.b16 %v466, %v465
      %v476 = vpack.c.b16 %v468, %v467
      %485 = vmatprep.subr.bf16.mxu0 0
      %486 = vmatpush1.bf16.msra.mxu0 %v469
      %487 = vmatprep.subr.bf16.mxu0 0
      %488 = vmatpush1.bf16.msra.mxu0 %v470
      %489 = vmatprep.subr.bf16.mxu0 0
      %490 = vmatpush1.bf16.msra.mxu0 %v471
      %491 = vmatprep.subr.bf16.mxu0 0
      %492 = vmatpush1.bf16.msra.mxu0 %v472
      %493 = vmatprep.subr.bf16.mxu0 0
      %494 = vmatpush1.bf16.msra.mxu0 %v473
      %495 = vmatprep.subr.bf16.mxu0 0
      %496 = vmatpush1.bf16.msra.mxu0 %v474
      %497 = vmatprep.subr.bf16.mxu0 0
      %498 = vmatpush1.bf16.msra.mxu0 %v475
      %499 = vmatprep.subr.bf16.mxu0 0
      %500 = vmatpush1.bf16.msra.mxu0 %v476
      %501 = vmatprep.subr.bf16.mxu0 0
      %502 = vmatpush1.bf16.msra.mxu0 0
      %503 = vmatprep.subr.bf16.mxu0 0
      %504 = vmatpush1.bf16.msra.mxu0 0
      %505 = vmatprep.subr.bf16.mxu0 0
      %506 = vmatpush1.bf16.msra.mxu0 0
      %507 = vmatprep.subr.bf16.mxu0 0
      %508 = vmatpush1.bf16.msra.mxu0 0
      %509 = vmatprep.subr.bf16.mxu0 0
      %510 = vmatpush1.bf16.msra.mxu0 0
      %511 = vmatprep.subr.bf16.mxu0 0
      %512 = vmatpush1.bf16.msra.mxu0 0
      %513 = vmatprep.subr.bf16.mxu0 0
      %514 = vmatpush1.bf16.msra.mxu0 0
      %515 = vmatprep.subr.bf16.mxu0 0
      %516 = vmatpush1.bf16.msra.mxu0 0
      %517 = vmatprep.mubr.bf16.mxu0 0
      %518 = vmatmul.mubr.bf16.gmra.mrb[0].mxu0 %v435
      %v519 = vpop.f32.mrb[0].mxu0
      %v520 = vadd.f32 %v429, %v519
      %v521 = vpop.f32.mrb[0].mxu0
      %v522 = vpop.f32.mrb[0].mxu0
      %v523 = vadd.f32 %v429, %v522
      %v524 = vpop.f32.mrb[0].mxu0
      %525 = vdwg.mxu0
      %v526 = vmax.f32 %v520, 0.0
      %v527 = vmax.f32 %v523, 0.0
      %v528 = vld [vmem:[%s364] sm:$0xf]
      %v529 = vld [vmem:[%s364 + $0x4] sm:$0xf]
      %v531 = vlaneseq
      %v532 = vshrl.u32 %v531, 7
      %v533 = vsub.s32 0, %v532
      %v534 = vrot.slane %v422, %v533
      %v538 = vunpack.c.l.b16 %v528
      %v539 = vunpack.c.l.b16 %v529
      %v540 = vpack.c.b16 %v539, %v538
      %v558 = vunpack.c.l.b16 %v405
      %v559 = vunpack.c.l.b16 %v406
      %v560 = vunpack.c.l.b16 %v407
      %v561 = vunpack.c.l.b16 %v408
      %v562 = vunpack.c.l.b16 %v409
      %v563 = vunpack.c.l.b16 %v410
      %v564 = vunpack.c.l.b16 %v411
      %v565 = vunpack.c.l.b16 %v412
      %v566 = vunpack.c.l.b16 %v413
      %v567 = vunpack.c.l.b16 %v414
      %v568 = vunpack.c.l.b16 %v415
      %v569 = vunpack.c.l.b16 %v416
      %v570 = vunpack.c.l.b16 %v417
      %v571 = vunpack.c.l.b16 %v418
      %v572 = vunpack.c.l.b16 %v419
      %v573 = vunpack.c.l.b16 %v420
      %v574 = vpack.c.b16 %v559, %v558
      %v575 = vpack.c.b16 %v561, %v560
      %v576 = vpack.c.b16 %v563, %v562
      %v577 = vpack.c.b16 %v565, %v564
      %v578 = vpack.c.b16 %v567, %v566
      %v579 = vpack.c.b16 %v569, %v568
      %v580 = vpack.c.b16 %v571, %v570
      %v581 = vpack.c.b16 %v573, %v572
      %590 = vmatprep.subr.bf16.mxu0 0
      %591 = vmatpush1.bf16.msra.mxu0 %v574
      %592 = vmatprep.subr.bf16.mxu0 0
      %593 = vmatpush1.bf16.msra.mxu0 %v575
      %594 = vmatprep.subr.bf16.mxu0 0
      %595 = vmatpush1.bf16.msra.mxu0 %v576
      %596 = vmatprep.subr.bf16.mxu0 0
      %597 = vmatpush1.bf16.msra.mxu0 %v577
      %598 = vmatprep.subr.bf16.mxu0 0
      %599 = vmatpush1.bf16.msra.mxu0 %v578
      %600 = vmatprep.subr.bf16.mxu0 0
      %601 = vmatpush1.bf16.msra.mxu0 %v579
      %602 = vmatprep.subr.bf16.mxu0 0
      %603 = vmatpush1.bf16.msra.mxu0 %v580
      %604 = vmatprep.subr.bf16.mxu0 0
      %605 = vmatpush1.bf16.msra.mxu0 %v581
      %606 = vmatprep.subr.bf16.mxu0 0
      %607 = vmatpush1.bf16.msra.mxu0 0
      %608 = vmatprep.subr.bf16.mxu0 0
      %609 = vmatpush1.bf16.msra.mxu0 0
      %610 = vmatprep.subr.bf16.mxu0 0
      %611 = vmatpush1.bf16.msra.mxu0 0
      %612 = vmatprep.subr.bf16.mxu0 0
      %613 = vmatpush1.bf16.msra.mxu0 0
      %614 = vmatprep.subr.bf16.mxu0 0
      %615 = vmatpush1.bf16.msra.mxu0 0
      %616 = vmatprep.subr.bf16.mxu0 0
      %617 = vmatpush1.bf16.msra.mxu0 0
      %618 = vmatprep.subr.bf16.mxu0 0
      %619 = vmatpush1.bf16.msra.mxu0 0
      %620 = vmatprep.subr.bf16.mxu0 0
      %621 = vmatpush1.bf16.msra.mxu0 0
      %622 = vmatprep.mubr.bf16.mxu0 0
      %623 = vmatmul.mubr.bf16.gmra.mrb[0].mxu0 %v540
      %v624 = vpop.f32.mrb[0].mxu0
      %v625 = vadd.f32 %v534, %v624
      %v626 = vpop.f32.mrb[0].mxu0
      %v627 = vpop.f32.mrb[0].mxu0
      %v628 = vadd.f32 %v534, %v627
      %v629 = vpop.f32.mrb[0].mxu0
      %630 = vdwg.mxu0
      %v631 = vmax.f32 %v625, 0.0
      %v632 = vmax.f32 %v628, 0.0
      %v633 = vpack.c.bf16 %v527, %v526
      %v635 = vunpack.c.l.b16 %v633
      %v636 = vunpack.c.h.b16 %v633
      %v637 = vpack.c.b16 %v635, %v635
      %v638 = vpack.c.b16 %v636, %v636
      %641 = vst [vmem:[%s371] sm:$0xf] %v637
      %642 = vst [vmem:[%s371 + $0x4] sm:$0xf] %v638
      %v643 = vpack.c.bf16 %v632, %v631
      %v645 = vunpack.c.l.b16 %v643
      %v646 = vunpack.c.h.b16 %v643
      %v647 = vpack.c.b16 %v645, %v645
      %v648 = vpack.c.b16 %v646, %v646
      %651 = vst [vmem:[%s378] sm:$0xf] %v647
      %652 = vst [vmem:[%s378 + $0x4] sm:$0xf] %v648
      %v653 = vmax.f32 %v526, %v527
      %v654 = vrot.slane %v653, 4
      %v655 = vmax.f32 %v653, %v654
      %v656 = vrot.slane %v655, 2
      %v657 = vmax.f32 %v655, %v656
      %v658 = vrot.slane %v657, 1
      %v659 = vmax.f32 %v657, %v658
      %v660 = vsub.f32 %v526, %v659
      %v661 = vsub.f32 %v527, %v659
      %v662 = vmul.f32 %v660, 1.442695
      %v663 = vpow.pop %v662
      %v664 = vmul.f32 %v661, 1.442695
      %v665 = vpow.pop %v664
      %v666 = vadd.f32 %v663, %v665
      %v667 = vrot.slane %v666, 4
      %v668 = vadd.f32 %v666, %v667
      %v669 = vrot.slane %v668, 2
      %v670 = vadd.f32 %v668, %v669
      %v671 = vrot.slane %v670, 1
      %v672 = vadd.f32 %v670, %v671
      %v673 = vrcp.pop %v672
      %v674 = vmul.f32 %v673, 16.0
      %v675 = vmul.f32 %v663, %v674
      %v676 = vmul.f32 %v665, %v674
      %v677 = vmax.f32 %v631, %v632
      %v678 = vrot.slane %v677, 4
      %v679 = vmax.f32 %v677, %v678
      %v680 = vrot.slane %v679, 2
      %v681 = vmax.f32 %v679, %v680
      %v682 = vrot.slane %v681, 1
      %v683 = vmax.f32 %v681, %v682
      %v684 = vsub.f32 %v631, %v683
      %v685 = vsub.f32 %v632, %v683
      %v686 = vmul.f32 %v684, 1.442695
      %v687 = vpow.pop %v686
      %v688 = vmul.f32 %v685, 1.442695
      %v689 = vpow.pop %v688
      %v690 = vadd.f32 %v687, %v689
      %v691 = vrot.slane %v690, 4
      %v692 = vadd.f32 %v690, %v691
      %v693 = vrot.slane %v692, 2
      %v694 = vadd.f32 %v692, %v693
      %v695 = vrot.slane %v694, 1
      %v696 = vadd.f32 %v694, %v695
      %v697 = vrcp.pop %v696
      %v698 = vmul.f32 %v697, 16.0
      %v699 = vmul.f32 %v687, %v698
      %v700 = vmul.f32 %v689, %v698
      %v701 = vsub.f32 %v675, %v699
      %v702 = vsub.f32 %v676, %v700
      %v703 = vmul.f32 %v701, %v701
      %v704 = vmul.f32 %v702, %v702
      %v705 = vadd.f32 %v703, %v704
      %v706 = vrot.slane %v705, 4
      %v707 = vadd.f32 %v705, %v706
      %v708 = vrot.slane %v707, 2
      %v709 = vadd.f32 %v707, %v708
      %v710 = vrot.slane %v709, 1
      %v711 = vadd.f32 %v709, %v710
      %v712 = vadd.f32 %v711, 0.0
      %v713 = vld [vmem:[%s382] sm:$0x1]
      %v714 = vadd.f32 %v713, %v712
      %715 = vst [vmem:[%s382] sm:$0x1] %v714
      %s716 = sadd.s32 %s24, %s25
      %p717 = scmp.lt.s32.totalorder %s716, 1
      %s718 = scalar_select %p717, %s716, 1
      %s719 = smul.addr %s718, 2
      %s720 = smul.addr %s719, 4
      %s721 = scalar_lea.vmem %s6, %s720
      %s722 = sadd.s32 %s24, %s25
      %p723 = scmp.lt.s32.totalorder %s722, 1
      %s724 = scalar_select %p723, %s722, 1
      %s725 = smul.addr %s724, 2
      %s726 = smul.addr %s725, 4
      %s727 = scalar_lea.vmem %s7, %s726
      %p728 = scmp.lt.s32.totalorder %s24, 1
      %s729 = scalar_select %p728, %s24, 1
      %s730 = scalar_lea.vmem %s8, %s729
      // Predicated region
      $region49: #{_lambda_.4} parent=43 // pred_check
        %p731 = pneg %p192
      $region50: #{_lambda_.4} parent=43 // pred_check_branch
        %733 = sbr.rel (%p731) target = $region52
      $region51: #{_lambda_.4} parent=43 // pred_region
        %s734 = sadd.s32 %s24, %s25
      $region52: #{_lambda_.4} parent=43 // pred_fallthru
        _
      // Predicated region
      $region53: #{_lambda_.4} parent=43 // pred_check
        %p735 = pneg %p220
      $region54: #{_lambda_.4} parent=43 // pred_check_branch
        %737 = sbr.rel (%p735) target = $region56
      $region55: #{_lambda_.4} parent=43 // pred_region
        %s738 = sadd.s32 %s24, %s25
      $region56: #{_lambda_.4} parent=43 // pred_fallthru
        _
      // Predicated region
      $region57: #{_lambda_.4} parent=43 // pred_check
        %p739 = pneg %p246
      $region58: #{_lambda_.4} parent=43 // pred_check_branch
        %741 = sbr.rel (%p739) target = $region60
      $region59: #{_lambda_.4} parent=43 // pred_region
        _
      $region60: #{_lambda_.4} parent=43 // pred_fallthru
        _
    $region44: #{_lambda_.4} parent=5 // pred_fallthru
      _
    %p742 = scmp.le.s32.totalorder 2, %s15
    // Predicated region
    $region61: #{_lambda_.4} parent=5 // pred_check
      %p743 = pneg %p742
    $region62: #{_lambda_.4} parent=5 // pred_check_branch
      %745 = sbr.rel (%p743) target = $region64
    $region63: #{_lambda_.4} parent=5 // pred_region
      %s746 = ssub.s32 %s15, 2
      // Predicated region
      $region65: #{_lambda_.4} parent=63 // pred_check
        %p747 = pneg %p198
      $region66: #{_lambda_.4} parent=63 // pred_check_branch
        %749 = sbr.rel (%p747) target = $region68
      $region67: #{_lambda_.4} parent=63 // pred_region
        %s750 = sadd.s32 %s26, %s27
        %p751 = scmp.lt.s32.totalorder %s750, 1
        %s752 = scalar_select %p751, %s750, 1
        %s753 = smul.addr %s752, 2
        %s754 = smul.addr %s753, 4
        %s755 = scalar_lea.vmem %s6, %s754
      $region68: #{_lambda_.4} parent=63 // pred_fallthru
        _
      // Predicated region
      $region69: #{_lambda_.4} parent=63 // pred_check
        %p756 = pneg %p226
      $region70: #{_lambda_.4} parent=63 // pred_check_branch
        %758 = sbr.rel (%p756) target = $region72
      $region71: #{_lambda_.4} parent=63 // pred_region
        %s759 = sadd.s32 %s26, %s27
        %p760 = scmp.lt.s32.totalorder %s759, 1
        %s761 = scalar_select %p760, %s759, 1
        %s762 = smul.addr %s761, 2
        %s763 = smul.addr %s762, 4
        %s764 = scalar_lea.vmem %s7, %s763
      $region72: #{_lambda_.4} parent=63 // pred_fallthru
        _
      // Predicated region
      $region73: #{_lambda_.4} parent=63 // pred_check
        %p765 = pneg %p252
      $region74: #{_lambda_.4} parent=63 // pred_check_branch
        %767 = sbr.rel (%p765) target = $region76
      $region75: #{_lambda_.4} parent=63 // pred_region
        %p768 = scmp.lt.s32.totalorder %s26, 1
        %s769 = scalar_select %p768, %s26, 1
        %s770 = scalar_lea.vmem %s8, %s769
      $region76: #{_lambda_.4} parent=63 // pred_fallthru
        _
    $region64: #{_lambda_.4} parent=5 // pred_fallthru
      _
  $region6: #{_lambda_.4} parent=0 // loop_footer
    %s19 = sadd.s32 1, %s15
  $region7: #{_lambda_.4} parent=0 // loop_footer_branch
    %14 = sbr.rel target = $region3
  $region8: #{_lambda_.4} parent=0 // loop_exit
    _

// kernel: _lambda_.5
$region0: #{_lambda_.5}
  #allocation0 [shape = 'u32[]', space=smem, size = 0x4, offset = 0x4, fixed_abs, tag = 'smem constant byte address 0x4 - core index']
  #allocation1 [shape = 'u32[144,128]{1,0:T(1,128)}', space=vmem, size = 0x12000, scoped, tag = 'internal scratch']
  %s0 = inlined_call_operand.vmem [shape: bf16[2,4,128], index: 0, kind: input, shape index: {}]
  %s1 = inlined_call_operand.vmem [shape: bf16[2,4,128], index: 1, kind: input, shape index: {}]
  %s2 = inlined_call_operand.vmem [shape: bf16[128,128], index: 2, kind: input, shape index: {}, may-alias: {2,3}]
  %s3 = inlined_call_operand.vmem [shape: bf16[128,128], index: 3, kind: input, shape index: {}, may-alias: {2,3}]
  %s4 = inlined_call_operand.vmem [shape: f32[1,128], index: 4, kind: input, shape index: {}, may-alias: {4,5}]
  %s5 = inlined_call_operand.vmem [shape: f32[1,128], index: 5, kind: input, shape index: {}, may-alias: {4,5}]
  %s6 = inlined_call_operand.hbm [shape: bf16[2,4,128], index: 6, kind: output, shape index: {0}]
  %s7 = inlined_call_operand.hbm [shape: bf16[2,4,128], index: 7, kind: output, shape index: {1}]
  %s8 = inlined_call_operand.vmem [shape: f32[2,1,128], index: 8, kind: output, shape index: {2}]
  %9 = xla_tuple %s6, %s7, %s8
  %s10 = sld [smem:[#allocation0]]
  $region77: #{_lambda_.5} parent=0
    _
  %s12 = ssub.s32 1, %s10
  %s13 = scalar_select 0, %s12, %s10
  $region1: #{_lambda_.5} parent=0
    #allocation2 [shape = 'u8[2048]{0}', space=vmem, size = 0x800, scoped, tag = 'output window, operand 0']
    #allocation3 [shape = 's32[2]{0}', space=sflag, size = 0x8, scoped, tag = 'scoped memory for _lambda_.5']
    #allocation4 [shape = 'u8[2048]{0}', space=vmem, size = 0x800, scoped, tag = 'output window, operand 1']
    #allocation5 [shape = 's32[2]{0}', space=sflag, size = 0x8, scoped, tag = 'scoped memory for _lambda_.5']
    %14 = vsyncpa [#allocation3], 0
    %s15 = scalar_lea.sflag [#allocation3], 1
    %16 = vsyncpa %s15, 0
    %17 = vsyncpa [#allocation5], 0
    %s18 = scalar_lea.sflag [#allocation5], 1
    %19 = vsyncpa %s18, 0
    loop: start=0, step=1, limit=4
    $region2: #{_lambda_.5} parent=1 // loop_pre_header
      _
    $region3: #{_lambda_.5} parent=1 // loop_header
      %s21 = sphi 0, %s25
      %p22 = scmp.ge.s32.totalorder %s21, 4
      %s28 = sphi 0, %s40
      %s29 = sphi 0, %s36
      %s30 = sphi 0, %s28
      %s31 = sphi 0, %s29
      %s32 = sphi 0, %s30
      %s33 = sphi 0, %s31
      %s45 = sphi 0, %s47
      %s48 = sphi 0, %s45
      %s49 = sphi 0, %s48
      %s65 = sphi 0, %s49
      %s73 = sphi 0, %s75
      %s76 = sphi 0, %s73
      %s77 = sphi 0, %s76
      %s93 = sphi 0, %s77
      %s97 = sphi 0, %s97
      %s99 = sphi 0, %s97
      %s100 = sphi 0, %s99
      %s114 = sphi 0, %s100
      %s118 = sphi 0, %s118
      %s120 = sphi 0, %s118
      %s121 = sphi 0, %s120
      %s135 = sphi 0, %s121
      %s139 = sphi 0, %s139
      %s141 = sphi 0, %s139
      %s142 = sphi 0, %s141
      %s156 = sphi 0, %s142
      %s160 = sphi 0, %s160
      %s162 = sphi 0, %s160
      %s163 = sphi 0, %s162
      %s177 = sphi 0, %s163
      %s185 = sphi 0, %s187
      %s188 = sphi 0, %s185
      %s189 = sphi 0, %s188
      %s205 = sphi 0, %s189
      %s213 = sphi 0, %s215
      %s216 = sphi 0, %s213
      %s217 = sphi 0, %s216
      %s233 = sphi 0, %s217
      %s239 = sphi 0, %s241
      %s242 = sphi 0, %s239
      %s243 = sphi 0, %s242
      %s259 = sphi 0, %s243
    $region4: #{_lambda_.5} parent=1 // loop_header_branch
      %24 = sbr.rel (%p22) target = $region8
    $region5: #{_lambda_.5} parent=1 // loop_body
      %s26 = ssub.s32 %s21, 1
      %s27 = ssub.s32 %s21, 2
      %s34 = sadd.s32 1, %s29
      %p35 = scmp.ge.s32.totalorder %s34, 1
      %s36 = scalar_select %p35, 0, %s34
      %s37 = sadd.s32 1, %s28
      %s38 = scalar_select %p35, %s37, %s28
      %p39 = scmp.ge.s32.totalorder %s38, 2
      %s40 = scalar_select %p39, 0, %s38
      %s41 = sadd.s32 %s28, %s29
      %s42 = sadd.s32 %s40, %s36
      %s43 = ssub.s32 %s41, %s42
      %p44 = scmp.eq.s32.totalorder %s43, 0
      %s46 = sadd.s32 %s45, 1
      %s47 = scalar_select %p44, %s45, %s46
      %p50 = pneg %p44
      %p51 = scmp.eq.s32.totalorder %s21, 1
      %p52 = por %p50, %p51
      %p53 = scmp.ne.s32.totalorder %s45, %s48
      %p54 = scmp.eq.s32.totalorder %s21, 0
      %p55 = por %p53, %p54
      %p56 = scmp.ne.s32.totalorder %s45, %s48
      %p57 = scmp.eq.s32.totalorder %s26, 1
      %p58 = por %p56, %p57
      %p59 = scmp.ne.s32.totalorder %s48, %s49
      %p60 = scmp.eq.s32.totalorder %s26, 0
      %p61 = por %p59, %p60
      %p62 = scmp.ne.s32.totalorder %s48, %s49
      %p63 = scmp.eq.s32.totalorder %s27, 1
      %p64 = por %p62, %p63
      %p66 = scmp.ne.s32.totalorder %s49, %s65
      %p67 = scmp.eq.s32.totalorder %s27, 0
      %p68 = por %p66, %p67
      %s69 = sadd.s32 %s28, %s29
      %s70 = sadd.s32 %s40, %s36
      %s71 = ssub.s32 %s69, %s70
      %p72 = scmp.eq.s32.totalorder %s71, 0
      %s74 = sadd.s32 %s73, 1
      %s75 = scalar_select %p72, %s73, %s74
      %p78 = pneg %p72
      %p79 = scmp.eq.s32.totalorder %s21, 1
      %p80 = por %p78, %p79
      %p81 = scmp.ne.s32.totalorder %s73, %s76
      %p82 = scmp.eq.s32.totalorder %s21, 0
      %p83 = por %p81, %p82
      %p84 = scmp.ne.s32.totalorder %s73, %s76
      %p85 = scmp.eq.s32.totalorder %s26, 1
      %p86 = por %p84, %p85
      %p87 = scmp.ne.s32.totalorder %s76, %s77
      %p88 = scmp.eq.s32.totalorder %s26, 0
      %p89 = por %p87, %p88
      %p90 = scmp.ne.s32.totalorder %s76, %s77
      %p91 = scmp.eq.s32.totalorder %s27, 1
      %p92 = por %p90, %p91
      %p94 = scmp.ne.s32.totalorder %s77, %s93
      %p95 = scmp.eq.s32.totalorder %s27, 0
      %p96 = por %p94, %p95
      %s98 = sadd.s32 %s97, 1
      %p101 = scmp.eq.s32.totalorder %s21, 1
      %p102 = scmp.ne.s32.totalorder %s97, %s99
      %p103 = scmp.eq.s32.totalorder %s21, 0
      %p104 = por %p102, %p103
      %p105 = scmp.ne.s32.totalorder %s97, %s99
      %p106 = scmp.eq.s32.totalorder %s26, 1
      %p107 = por %p105, %p106
      %p108 = scmp.ne.s32.totalorder %s99, %s100
      %p109 = scmp.eq.s32.totalorder %s26, 0
      %p110 = por %p108, %p109
      %p111 = scmp.ne.s32.totalorder %s99, %s100
      %p112 = scmp.eq.s32.totalorder %s27, 1
      %p113 = por %p111, %p112
      %p115 = scmp.ne.s32.totalorder %s100, %s114
      %p116 = scmp.eq.s32.totalorder %s27, 0
      %p117 = por %p115, %p116
      %s119 = sadd.s32 %s118, 1
      %p122 = scmp.eq.s32.totalorder %s21, 1
      %p123 = scmp.ne.s32.totalorder %s118, %s120
      %p124 = scmp.eq.s32.totalorder %s21, 0
      %p125 = por %p123, %p124
      %p126 = scmp.ne.s32.totalorder %s118, %s120
      %p127 = scmp.eq.s32.totalorder %s26, 1
      %p128 = por %p126, %p127
      %p129 = scmp.ne.s32.totalorder %s120, %s121
      %p130 = scmp.eq.s32.totalorder %s26, 0
      %p131 = por %p129, %p130
      %p132 = scmp.ne.s32.totalorder %s120, %s121
      %p133 = scmp.eq.s32.totalorder %s27, 1
      %p134 = por %p132, %p133
      %p136 = scmp.ne.s32.totalorder %s121, %s135
      %p137 = scmp.eq.s32.totalorder %s27, 0
      %p138 = por %p136, %p137
      %s140 = sadd.s32 %s139, 1
      %p143 = scmp.eq.s32.totalorder %s21, 1
      %p144 = scmp.ne.s32.totalorder %s139, %s141
      %p145 = scmp.eq.s32.totalorder %s21, 0
      %p146 = por %p144, %p145
      %p147 = scmp.ne.s32.totalorder %s139, %s141
      %p148 = scmp.eq.s32.totalorder %s26, 1
      %p149 = por %p147, %p148
      %p150 = scmp.ne.s32.totalorder %s141, %s142
      %p151 = scmp.eq.s32.totalorder %s26, 0
      %p152 = por %p150, %p151
      %p153 = scmp.ne.s32.totalorder %s141, %s142
      %p154 = scmp.eq.s32.totalorder %s27, 1
      %p155 = por %p153, %p154
      %p157 = scmp.ne.s32.totalorder %s142, %s156
      %p158 = scmp.eq.s32.totalorder %s27, 0
      %p159 = por %p157, %p158
      %s161 = sadd.s32 %s160, 1
      %p164 = scmp.eq.s32.totalorder %s21, 1
      %p165 = scmp.ne.s32.totalorder %s160, %s162
      %p166 = scmp.eq.s32.totalorder %s21, 0
      %p167 = por %p165, %p166
      %p168 = scmp.ne.s32.totalorder %s160, %s162
      %p169 = scmp.eq.s32.totalorder %s26, 1
      %p170 = por %p168, %p169
      %p171 = scmp.ne.s32.totalorder %s162, %s163
      %p172 = scmp.eq.s32.totalorder %s26, 0
      %p173 = por %p171, %p172
      %p174 = scmp.ne.s32.totalorder %s162, %s163
      %p175 = scmp.eq.s32.totalorder %s27, 1
      %p176 = por %p174, %p175
      %p178 = scmp.ne.s32.totalorder %s163, %s177
      %p179 = scmp.eq.s32.totalorder %s27, 0
      %p180 = por %p178, %p179
      %s181 = sadd.s32 %s28, %s29
      %s182 = sadd.s32 %s40, %s36
      %s183 = ssub.s32 %s181, %s182
      %p184 = scmp.eq.s32.totalorder %s183, 0
      %s186 = sadd.s32 %s185, 1
      %s187 = scalar_select %p184, %s185, %s186
      %p190 = pneg %p184
      %p191 = scmp.eq.s32.totalorder %s21, 1
      %p192 = por %p190, %p191
      %p193 = scmp.ne.s32.totalorder %s185, %s188
      %p194 = scmp.eq.s32.totalorder %s21, 0
      %p195 = por %p193, %p194
      %p196 = scmp.ne.s32.totalorder %s185, %s188
      %p197 = scmp.eq.s32.totalorder %s26, 1
      %p198 = por %p196, %p197
      %p199 = scmp.ne.s32.totalorder %s188, %s189
      %p200 = scmp.eq.s32.totalorder %s26, 0
      %p201 = por %p199, %p200
      %p202 = scmp.ne.s32.totalorder %s188, %s189
      %p203 = scmp.eq.s32.totalorder %s27, 1
      %p204 = por %p202, %p203
      %p206 = scmp.ne.s32.totalorder %s189, %s205
      %p207 = scmp.eq.s32.totalorder %s27, 0
      %p208 = por %p206, %p207
      %s209 = sadd.s32 %s28, %s29
      %s210 = sadd.s32 %s40, %s36
      %s211 = ssub.s32 %s209, %s210
      %p212 = scmp.eq.s32.totalorder %s211, 0
      %s214 = sadd.s32 %s213, 1
      %s215 = scalar_select %p212, %s213, %s214
      %p218 = pneg %p212
      %p219 = scmp.eq.s32.totalorder %s21, 1
      %p220 = por %p218, %p219
      %p221 = scmp.ne.s32.totalorder %s213, %s216
      %p222 = scmp.eq.s32.totalorder %s21, 0
      %p223 = por %p221, %p222
      %p224 = scmp.ne.s32.totalorder %s213, %s216
      %p225 = scmp.eq.s32.totalorder %s26, 1
      %p226 = por %p224, %p225
      %p227 = scmp.ne.s32.totalorder %s216, %s217
      %p228 = scmp.eq.s32.totalorder %s26, 0
      %p229 = por %p227, %p228
      %p230 = scmp.ne.s32.totalorder %s216, %s217
      %p231 = scmp.eq.s32.totalorder %s27, 1
      %p232 = por %p230, %p231
      %p234 = scmp.ne.s32.totalorder %s217, %s233
      %p235 = scmp.eq.s32.totalorder %s27, 0
      %p236 = por %p234, %p235
      %s237 = ssub.s32 %s28, %s40
      %p238 = scmp.eq.s32.totalorder %s237, 0
      %s240 = sadd.s32 %s239, 1
      %s241 = scalar_select %p238, %s239, %s240
      %p244 = pneg %p238
      %p245 = scmp.eq.s32.totalorder %s21, 1
      %p246 = por %p244, %p245
      %p247 = scmp.ne.s32.totalorder %s239, %s242
      %p248 = scmp.eq.s32.totalorder %s21, 0
      %p249 = por %p247, %p248
      %p250 = scmp.ne.s32.totalorder %s239, %s242
      %p251 = scmp.eq.s32.totalorder %s26, 1
      %p252 = por %p250, %p251
      %p253 = scmp.ne.s32.totalorder %s242, %s243
      %p254 = scmp.eq.s32.totalorder %s26, 0
      %p255 = por %p253, %p254
      %p256 = scmp.ne.s32.totalorder %s242, %s243
      %p257 = scmp.eq.s32.totalorder %s27, 1
      %p258 = por %p256, %p257
      %p260 = scmp.ne.s32.totalorder %s243, %s259
      %p261 = scmp.eq.s32.totalorder %s27, 0
      %p262 = por %p260, %p261
      %p263 = scmp.le.s32.totalorder 1, %s21
      %p264 = scmp.lt.s32.totalorder %s21, 3
      %p265 = pnand %p263, %p264
      %p266 = pneg %p265
      // Predicated region
      $region9: #{_lambda_.5} parent=5 // pred_check
        _
      $region10: #{_lambda_.5} parent=5 // pred_check_branch
        %268 = sbr.rel (%p265) target = $region12
      $region11: #{_lambda_.5} parent=5 // pred_region
        %s269 = ssub.s32 %s21, 1
        // Predicated region
        $region13: #{_lambda_.5} parent=11 // pred_check
          %p270 = pneg %p110
        $region14: #{_lambda_.5} parent=11 // pred_check_branch
          %272 = sbr.rel (%p270) target = $region16
        $region15: #{_lambda_.5} parent=11 // pred_region
          _
        $region16: #{_lambda_.5} parent=11 // pred_fallthru
          _
        // Predicated region
        $region17: #{_lambda_.5} parent=11 // pred_check
          %p273 = pneg %p131
        $region18: #{_lambda_.5} parent=11 // pred_check_branch
          %275 = sbr.rel (%p273) target = $region20
        $region19: #{_lambda_.5} parent=11 // pred_region
          _
        $region20: #{_lambda_.5} parent=11 // pred_fallthru
          _
        // Predicated region
        $region21: #{_lambda_.5} parent=11 // pred_check
          %p276 = pneg %p152
        $region22: #{_lambda_.5} parent=11 // pred_check_branch
          %278 = sbr.rel (%p276) target = $region24
        $region23: #{_lambda_.5} parent=11 // pred_region
          _
        $region24: #{_lambda_.5} parent=11 // pred_fallthru
          _
        // Predicated region
        $region25: #{_lambda_.5} parent=11 // pred_check
          %p279 = pneg %p173
        $region26: #{_lambda_.5} parent=11 // pred_check_branch
          %281 = sbr.rel (%p279) target = $region28
        $region27: #{_lambda_.5} parent=11 // pred_region
          _
        $region28: #{_lambda_.5} parent=11 // pred_fallthru
          _
      $region12: #{_lambda_.5} parent=5 // pred_fallthru
        _
      %p282 = scmp.lt.s32.totalorder %s21, 2
      // Predicated region
      $region29: #{_lambda_.5} parent=5 // pred_check
        %p283 = pneg %p282
      $region30: #{_lambda_.5} parent=5 // pred_check_branch
        %285 = sbr.rel (%p283) target = $region32
      $region31: #{_lambda_.5} parent=5 // pred_region
        // Predicated region
        $region33: #{_lambda_.5} parent=31 // pred_check
          %p286 = pneg %p55
        $region34: #{_lambda_.5} parent=31 // pred_check_branch
          %288 = sbr.rel (%p286) target = $region36
        $region35: #{_lambda_.5} parent=31 // pred_region
          %s289 = sadd.s32 %s28, %s29
          %p290 = scmp.lt.s32.totalorder %s289, 1
          %s291 = scalar_select %p290, %s289, 1
          %s292 = smul.addr %s291, 2
          %s293 = scalar_lea.vmem %s0, %s292
          %s294 = sadd.s32 %s28, %s29
        $region36: #{_lambda_.5} parent=31 // pred_fallthru
          _
        // Predicated region
        $region37: #{_lambda_.5} parent=31 // pred_check
          %p295 = pneg %p83
        $region38: #{_lambda_.5} parent=31 // pred_check_branch
          %297 = sbr.rel (%p295) target = $region40
        $region39: #{_lambda_.5} parent=31 // pred_region
          %s298 = sadd.s32 %s28, %s29
          %p299 = scmp.lt.s32.totalorder %s298, 1
          %s300 = scalar_select %p299, %s298, 1
          %s301 = smul.addr %s300, 2
          %s302 = scalar_lea.vmem %s1, %s301
          %s303 = sadd.s32 %s28, %s29
        $region40: #{_lambda_.5} parent=31 // pred_fallthru
          _
      $region32: #{_lambda_.5} parent=5 // pred_fallthru
        _
      %p304 = scmp.le.s32.totalorder 1, %s21
      %p305 = scmp.lt.s32.totalorder %s21, 3
      %p306 = pnand %p304, %p305
      %p307 = pneg %p306
      // Predicated region
      $region41: #{_lambda_.5} parent=5 // pred_check
        _
      $region42: #{_lambda_.5} parent=5 // pred_check_branch
        %309 = sbr.rel (%p306) target = $region44
      $region43: #{_lambda_.5} parent=5 // pred_region
        %s310 = ssub.s32 %s21, 1
        %s311 = sadd.s32 %s30, %s31
        %p312 = scmp.lt.s32.totalorder %s311, 1
        %s313 = scalar_select %p312, %s311, 1
        %s314 = smul.addr %s313, 2
        %s315 = scalar_lea.vmem %s0, %s314
        %p316 = pneg %p61
        %p317 = pneg %p58
        %s318 = sadd.s32 %s30, %s31
        %p319 = scmp.lt.s32.totalorder %s318, 1
        %s320 = scalar_select %p319, %s318, 1
        %s321 = smul.addr %s320, 2
        %s322 = scalar_lea.vmem %s1, %s321
        %p323 = pneg %p89
        %p324 = pneg %p86
        %p325 = pneg %p110
        %p326 = pneg %p107
        %p327 = pneg %p131
        %p328 = pneg %p128
        %p329 = pneg %p152
        %p330 = pneg %p149
        %p331 = pneg %p173
        %p332 = pneg %p170
        %p333 = pneg %p201
        %p334 = pneg %p198
        %s335 = sand.u32 %s188, 1
        %s336 = scalar_lea.sflag [#allocation3], %s335
        %s337 = sand.u32 %s188, 1
        %s338 = smul.addr %s337, 2
        %s339 = scalar_lea.vmem [#allocation2], %s338
        %p340 = pneg %p229
        %p341 = pneg %p226
        %s342 = sand.u32 %s216, 1
        %s343 = scalar_lea.sflag [#allocation5], %s342
        %s344 = sand.u32 %s216, 1
        %s345 = smul.addr %s344, 2
        %s346 = scalar_lea.vmem [#allocation4], %s345
        %p347 = pneg %p255
        %p348 = pneg %p252
        %p349 = scmp.lt.s32.totalorder %s30, 1
        %s350 = scalar_select %p349, %s30, 1
        %s351 = scalar_lea.vmem %s8, %s350
        %s352 = sadd.s32 %s30, %s31
        %p353 = scmp.lt.s32.totalorder %s352, 1
        %s354 = scalar_select %p353, %s352, 1
        %s355 = smul.addr %s354, 2
        %s356 = scalar_lea.vmem %s0, %s355
        %s357 = sadd.s32 %s30, %s31
        %s358 = sadd.s32 %s30, %s31
        %p359 = scmp.lt.s32.totalorder %s358, 1
        %s360 = scalar_select %p359, %s358, 1
        %s361 = smul.addr %s360, 2
        %s362 = scalar_lea.vmem %s1, %s361
        %s363 = sadd.s32 %s30, %s31
        %s364 = sadd.s32 %s30, %s31
        %s365 = sadd.s32 %s30, %s31
        %p366 = scmp.lt.s32.totalorder %s30, 1
        %s367 = scalar_select %p366, %s30, 1
        %s368 = scalar_lea.vmem %s8, %s367
        %p370 = scmp.eq.s32.totalorder %s31, 0
        // Predicated region
        $region45: #{_lambda_.5} parent=43 // pred_check
          %p371 = pneg %p370
        $region46: #{_lambda_.5} parent=43 // pred_check_branch
          %373 = sbr.rel (%p371) target = $region48
        $region47: #{_lambda_.5} parent=43 // pred_region
          %374 = vst [vmem:[%s368] sm:$0x1] 0.0
        $region48: #{_lambda_.5} parent=43 // pred_fallthru
          _
        %v375 = vld [vmem:[%s2] sm:$0xf]
        %v376 = vld [vmem:[%s2 + $0x4] sm:$0xf]
        %v377 = vld [vmem:[%s2 + $0x8] sm:$0xf]
        %v378 = vld [vmem:[%s2 + $0xc] sm:$0xf]
        %v379 = vld [vmem:[%s2 + $0x10] sm:$0xf]
        %v380 = vld [vmem:[%s2 + $0x14] sm:$0xf]
        %v381 = vld [vmem:[%s2 + $0x18] sm:$0xf]
        %v382 = vld [vmem:[%s2 + $0x1c] sm:$0xf]
        %v383 = vld [vmem:[%s2 + $0x20] sm:$0xf]
        %v384 = vld [vmem:[%s2 + $0x24] sm:$0xf]
        %v385 = vld [vmem:[%s2 + $0x28] sm:$0xf]
        %v386 = vld [vmem:[%s2 + $0x2c] sm:$0xf]
        %v387 = vld [vmem:[%s2 + $0x30] sm:$0xf]
        %v388 = vld [vmem:[%s2 + $0x34] sm:$0xf]
        %v389 = vld [vmem:[%s2 + $0x38] sm:$0xf]
        %v390 = vld [vmem:[%s2 + $0x3c] sm:$0xf]
        %v391 = vld [vmem:[%s3] sm:$0xf]
        %v392 = vld [vmem:[%s3 + $0x4] sm:$0xf]
        %v393 = vld [vmem:[%s3 + $0x8] sm:$0xf]
        %v394 = vld [vmem:[%s3 + $0xc] sm:$0xf]
        %v395 = vld [vmem:[%s3 + $0x10] sm:$0xf]
        %v396 = vld [vmem:[%s3 + $0x14] sm:$0xf]
        %v397 = vld [vmem:[%s3 + $0x18] sm:$0xf]
        %v398 = vld [vmem:[%s3 + $0x1c] sm:$0xf]
        %v399 = vld [vmem:[%s3 + $0x20] sm:$0xf]
        %v400 = vld [vmem:[%s3 + $0x24] sm:$0xf]
        %v401 = vld [vmem:[%s3 + $0x28] sm:$0xf]
        %v402 = vld [vmem:[%s3 + $0x2c] sm:$0xf]
        %v403 = vld [vmem:[%s3 + $0x30] sm:$0xf]
        %v404 = vld [vmem:[%s3 + $0x34] sm:$0xf]
        %v405 = vld [vmem:[%s3 + $0x38] sm:$0xf]
        %v406 = vld [vmem:[%s3 + $0x3c] sm:$0xf]
        %v407 = vld [vmem:[%s4] sm:$0x1]
        %v408 = vld [vmem:[%s5] sm:$0x1]
        %v409 = vld [vmem:[%s356] sm:$0x3]
        %v411 = vlaneseq
        %v412 = vshrl.u32 %v411, 7
        %v413 = vsub.s32 0, %v412
        %v414 = vrot.slane %v407, %v413
        %v432 = vunpack.c.l.b16 %v375
        %v433 = vunpack.c.l.b16 %v376
        %v434 = vunpack.c.l.b16 %v377
        %v435 = vunpack.c.l.b16 %v378
        %v436 = vunpack.c.l.b16 %v379
        %v437 = vunpack.c.l.b16 %v380
        %v438 = vunpack.c.l.b16 %v381
        %v439 = vunpack.c.l.b16 %v382
        %v440 = vunpack.c.l.b16 %v383
        %v441 = vunpack.c.l.b16 %v384
        %v442 = vunpack.c.l.b16 %v385
        %v443 = vunpack.c.l.b16 %v386
        %v444 = vunpack.c.l.b16 %v387
        %v445 = vunpack.c.l.b16 %v388
        %v446 = vunpack.c.l.b16 %v389
        %v447 = vunpack.c.l.b16 %v390
        %v448 = vpack.c.b16 %v433, %v432
        %v449 = vpack.c.b16 %v435, %v434
        %v450 = vpack.c.b16 %v437, %v436
        %v451 = vpack.c.b16 %v439, %v438
        %v452 = vpack.c.b16 %v441, %v440
        %v453 = vpack.c.b16 %v443, %v442
        %v454 = vpack.c.b16 %v445, %v444
        %v455 = vpack.c.b16 %v447, %v446
        %464 = vmatprep.subr.bf16.mxu0 0
        %465 = vmatpush1.bf16.msra.mxu0 %v448
        %466 = vmatprep.subr.bf16.mxu0 0
        %467 = vmatpush1.bf16.msra.mxu0 %v449
        %468 = vmatprep.subr.bf16.mxu0 0
        %469 = vmatpush1.bf16.msra.mxu0 %v450
        %470 = vmatprep.subr.bf16.mxu0 0
        %471 = vmatpush1.bf16.msra.mxu0 %v451
        %472 = vmatprep.subr.bf16.mxu0 0
        %473 = vmatpush1.bf16.msra.mxu0 %v452
        %474 = vmatprep.subr.bf16.mxu0 0
        %475 = vmatpush1.bf16.msra.mxu0 %v453
        %476 = vmatprep.subr.bf16.mxu0 0
        %477 = vmatpush1.bf16.msra.mxu0 %v454
        %478 = vmatprep.subr.bf16.mxu0 0
        %479 = vmatpush1.bf16.msra.mxu0 %v455
        %480 = vmatprep.subr.bf16.mxu0 0
        %481 = vmatpush1.bf16.msra.mxu0 0
        %482 = vmatprep.subr.bf16.mxu0 0
        %483 = vmatpush1.bf16.msra.mxu0 0
        %484 = vmatprep.subr.bf16.mxu0 0
        %485 = vmatpush1.bf16.msra.mxu0 0
        %486 = vmatprep.subr.bf16.mxu0 0
        %487 = vmatpush1.bf16.msra.mxu0 0
        %488 = vmatprep.subr.bf16.mxu0 0
        %489 = vmatpush1.bf16.msra.mxu0 0
        %490 = vmatprep.subr.bf16.mxu0 0
        %491 = vmatpush1.bf16.msra.mxu0 0
        %492 = vmatprep.subr.bf16.mxu0 0
        %493 = vmatpush1.bf16.msra.mxu0 0
        %494 = vmatprep.subr.bf16.mxu0 0
        %495 = vmatpush1.bf16.msra.mxu0 0
        %496 = vmatprep.mubr.bf16.mxu0 0
        %497 = vmatmul.mubr.bf16.gmra.mrb[0].mxu0 %v409
        %v498 = vpop.f32.mrb[0].mxu0
        %v499 = vadd.f32 %v414, %v498
        %v500 = vpop.f32.mrb[0].mxu0
        %v501 = vpop.f32.mrb[0].mxu0
        %v502 = vpop.f32.mrb[0].mxu0
        %503 = vdwg.mxu0
        %v504 = vmax.f32 %v499, 0.0
        %v505 = vld [vmem:[%s362] sm:$0x3]
        %v507 = vlaneseq
        %v508 = vshrl.u32 %v507, 7
        %v509 = vsub.s32 0, %v508
        %v510 = vrot.slane %v408, %v509
        %v528 = vunpack.c.l.b16 %v391
        %v529 = vunpack.c.l.b16 %v392
        %v530 = vunpack.c.l.b16 %v393
        %v531 = vunpack.c.l.b16 %v394
        %v532 = vunpack.c.l.b16 %v395
        %v533 = vunpack.c.l.b16 %v396
        %v534 = vunpack.c.l.b16 %v397
        %v535 = vunpack.c.l.b16 %v398
        %v536 = vunpack.c.l.b16 %v399
        %v537 = vunpack.c.l.b16 %v400
        %v538 = vunpack.c.l.b16 %v401
        %v539 = vunpack.c.l.b16 %v402
        %v540 = vunpack.c.l.b16 %v403
        %v541 = vunpack.c.l.b16 %v404
        %v542 = vunpack.c.l.b16 %v405
        %v543 = vunpack.c.l.b16 %v406
        %v544 = vpack.c.b16 %v529, %v528
        %v545 = vpack.c.b16 %v531, %v530
        %v546 = vpack.c.b16 %v533, %v532
        %v547 = vpack.c.b16 %v535, %v534
        %v548 = vpack.c.b16 %v537, %v536
        %v549 = vpack.c.b16 %v539, %v538
        %v550 = vpack.c.b16 %v541, %v540
        %v551 = vpack.c.b16 %v543, %v542
        %560 = vmatprep.subr.bf16.mxu0 0
        %561 = vmatpush1.bf16.msra.mxu0 %v544
        %562 = vmatprep.subr.bf16.mxu0 0
        %563 = vmatpush1.bf16.msra.mxu0 %v545
        %564 = vmatprep.subr.bf16.mxu0 0
        %565 = vmatpush1.bf16.msra.mxu0 %v546
        %566 = vmatprep.subr.bf16.mxu0 0
        %567 = vmatpush1.bf16.msra.mxu0 %v547
        %568 = vmatprep.subr.bf16.mxu0 0
        %569 = vmatpush1.bf16.msra.mxu0 %v548
        %570 = vmatprep.subr.bf16.mxu0 0
        %571 = vmatpush1.bf16.msra.mxu0 %v549
        %572 = vmatprep.subr.bf16.mxu0 0
        %573 = vmatpush1.bf16.msra.mxu0 %v550
        %574 = vmatprep.subr.bf16.mxu0 0
        %575 = vmatpush1.bf16.msra.mxu0 %v551
        %576 = vmatprep.subr.bf16.mxu0 0
        %577 = vmatpush1.bf16.msra.mxu0 0
        %578 = vmatprep.subr.bf16.mxu0 0
        %579 = vmatpush1.bf16.msra.mxu0 0
        %580 = vmatprep.subr.bf16.mxu0 0
        %581 = vmatpush1.bf16.msra.mxu0 0
        %582 = vmatprep.subr.bf16.mxu0 0
        %583 = vmatpush1.bf16.msra.mxu0 0
        %584 = vmatprep.subr.bf16.mxu0 0
        %585 = vmatpush1.bf16.msra.mxu0 0
        %586 = vmatprep.subr.bf16.mxu0 0
        %587 = vmatpush1.bf16.msra.mxu0 0
        %588 = vmatprep.subr.bf16.mxu0 0
        %589 = vmatpush1.bf16.msra.mxu0 0
        %590 = vmatprep.subr.bf16.mxu0 0
        %591 = vmatpush1.bf16.msra.mxu0 0
        %592 = vmatprep.mubr.bf16.mxu0 0
        %593 = vmatmul.mubr.bf16.gmra.mrb[0].mxu0 %v505
        %v594 = vpop.f32.mrb[0].mxu0
        %v595 = vadd.f32 %v510, %v594
        %v596 = vpop.f32.mrb[0].mxu0
        %v597 = vpop.f32.mrb[0].mxu0
        %v598 = vpop.f32.mrb[0].mxu0
        %599 = vdwg.mxu0
        %v600 = vmax.f32 %v595, 0.0
        %v601 = vpack.c.bf16 %v504, %v504
        %602 = vst [vmem:[%s339] sm:$0x3] %v601
        %v603 = vpack.c.bf16 %v600, %v600
        %604 = vst [vmem:[%s346] sm:$0x3] %v603
        %vm605 = vcmask 1043456
        %v606 = vsel %vm605, %v504, -inf
        %v607 = vrot.slane %v606, 4
        %v608 = vmax.f32 %v606, %v607
        %v609 = vrot.slane %v608, 2
        %v610 = vmax.f32 %v608, %v609
        %v611 = vrot.slane %v610, 1
        %v612 = vmax.f32 %v610, %v611
        %v613 = vsub.f32 %v504, %v612
        %v614 = vmul.f32 %v613, 1.442695
        %v615 = vpow.pop %v614
        %v616 = vsel %vm605, %v615, 0.0
        %v617 = vrot.slane %v616, 4
        %v618 = vadd.f32 %v616, %v617
        %v619 = vrot.slane %v618, 2
        %v620 = vadd.f32 %v618, %v619
        %v621 = vrot.slane %v620, 1
        %v622 = vadd.f32 %v620, %v621
        %v623 = vrcp.pop %v622
        %v624 = vmul.f32 %v623, 4.0
        %v625 = vmul.f32 %v615, %v624
        %v626 = vsel %vm605, %v600, -inf
        %v627 = vrot.slane %v626, 4
        %v628 = vmax.f32 %v626, %v627
        %v629 = vrot.slane %v628, 2
        %v630 = vmax.f32 %v628, %v629
        %v631 = vrot.slane %v630, 1
        %v632 = vmax.f32 %v630, %v631
        %v633 = vsub.f32 %v600, %v632
        %v634 = vmul.f32 %v633, 1.442695
        %v635 = vpow.pop %v634
        %v636 = vsel %vm605, %v635, 0.0
        %v637 = vrot.slane %v636, 4
        %v638 = vadd.f32 %v636, %v637
        %v639 = vrot.slane %v638, 2
        %v640 = vadd.f32 %v638, %v639
        %v641 = vrot.slane %v640, 1
        %v642 = vadd.f32 %v640, %v641
        %v643 = vrcp.pop %v642
        %v644 = vmul.f32 %v643, 4.0
        %v645 = vmul.f32 %v635, %v644
        %v646 = vsub.f32 %v625, %v645
        %v647 = vmul.f32 %v646, %v646
        %v648 = vsel %vm605, %v647, 0.0
        %v649 = vrot.slane %v648, 4
        %v650 = vadd.f32 %v648, %v649
        %v651 = vrot.slane %v650, 2
        %v652 = vadd.f32 %v650, %v651
        %v653 = vrot.slane %v652, 1
        %v654 = vadd.f32 %v652, %v653
        %v655 = vadd.f32 %v654, 0.0
        %v656 = vld [vmem:[%s368] sm:$0x1]
        %v657 = vadd.f32 %v656, %v655
        %658 = vst [vmem:[%s368] sm:$0x1] %v657
        %s659 = sand.u32 %s188, 1
        %s660 = scalar_lea.sflag [#allocation3], %s659
        %s661 = sand.u32 %s188, 1
        %s662 = smul.addr %s661, 2
        %s663 = scalar_lea.vmem [#allocation2], %s662
        %s664 = sand.u32 %s216, 1
        %s665 = scalar_lea.sflag [#allocation5], %s664
        %s666 = sand.u32 %s216, 1
        %s667 = smul.addr %s666, 2
        %s668 = scalar_lea.vmem [#allocation4], %s667
        %p669 = scmp.lt.s32.totalorder %s30, 1
        %s670 = scalar_select %p669, %s30, 1
        %s671 = scalar_lea.vmem %s8, %s670
        // Predicated region
        $region49: #{_lambda_.5} parent=43 // pred_check
          %p672 = pneg %p198
        $region50: #{_lambda_.5} parent=43 // pred_check_branch
          %674 = sbr.rel (%p672) target = $region52
        $region51: #{_lambda_.5} parent=43 // pred_region
          %s675 = sadd.s32 %s30, %s31
          %s677 = ssub.s32 32, 32
          %678 = vsyncadd %s660, %s677
          %s679 = smul.addr %s675, 32
          %s680 = scalar_lea.hbm %s6, %s679
          %s682 = sshll.u32 %s663, 4
          %s683 = int_to_ptr.vmem [resolvable:$true] %s682
          %685 = dma.vmem_to_hbm [thread:$0]  %s683, 32, %s680, %s660
        $region52: #{_lambda_.5} parent=43 // pred_fallthru
          _
        // Predicated region
        $region53: #{_lambda_.5} parent=43 // pred_check
          %p686 = pneg %p226
        $region54: #{_lambda_.5} parent=43 // pred_check_branch
          %688 = sbr.rel (%p686) target = $region56
        $region55: #{_lambda_.5} parent=43 // pred_region
          %s689 = sadd.s32 %s30, %s31
          %s691 = ssub.s32 32, 32
          %692 = vsyncadd %s665, %s691
          %s693 = smul.addr %s689, 32
          %s694 = scalar_lea.hbm %s7, %s693
          %s696 = sshll.u32 %s668, 4
          %s697 = int_to_ptr.vmem [resolvable:$true] %s696
          %699 = dma.vmem_to_hbm [thread:$0]  %s697, 32, %s694, %s665
        $region56: #{_lambda_.5} parent=43 // pred_fallthru
          _
        // Predicated region
        $region57: #{_lambda_.5} parent=43 // pred_check
          %p700 = pneg %p252
        $region58: #{_lambda_.5} parent=43 // pred_check_branch
          %702 = sbr.rel (%p700) target = $region60
        $region59: #{_lambda_.5} parent=43 // pred_region
          _
        $region60: #{_lambda_.5} parent=43 // pred_fallthru
          _
      $region44: #{_lambda_.5} parent=5 // pred_fallthru
        _
      %p703 = scmp.le.s32.totalorder 2, %s21
      // Predicated region
      $region61: #{_lambda_.5} parent=5 // pred_check
        %p704 = pneg %p703
      $region62: #{_lambda_.5} parent=5 // pred_check_branch
        %706 = sbr.rel (%p704) target = $region64
      $region63: #{_lambda_.5} parent=5 // pred_region
        %s707 = ssub.s32 %s21, 2
        // Predicated region
        $region65: #{_lambda_.5} parent=63 // pred_check
          %p708 = pneg %p204
        $region66: #{_lambda_.5} parent=63 // pred_check_branch
          %710 = sbr.rel (%p708) target = $region68
        $region67: #{_lambda_.5} parent=63 // pred_region
          %s711 = sand.u32 %s189, 1
          %s712 = scalar_lea.sflag [#allocation3], %s711
          %s713 = sand.u32 %s189, 1
          %s714 = smul.addr %s713, 2
          %s715 = scalar_lea.vmem [#allocation2], %s714
          %716 = dma.done %s712, 32
        $region68: #{_lambda_.5} parent=63 // pred_fallthru
          _
        // Predicated region
        $region69: #{_lambda_.5} parent=63 // pred_check
          %p717 = pneg %p232
        $region70: #{_lambda_.5} parent=63 // pred_check_branch
          %719 = sbr.rel (%p717) target = $region72
        $region71: #{_lambda_.5} parent=63 // pred_region
          %s720 = sand.u32 %s217, 1
          %s721 = scalar_lea.sflag [#allocation5], %s720
          %s722 = sand.u32 %s217, 1
          %s723 = smul.addr %s722, 2
          %s724 = scalar_lea.vmem [#allocation4], %s723
          %725 = dma.done %s721, 32
        $region72: #{_lambda_.5} parent=63 // pred_fallthru
          _
        // Predicated region
        $region73: #{_lambda_.5} parent=63 // pred_check
          %p726 = pneg %p258
        $region74: #{_lambda_.5} parent=63 // pred_check_branch
          %728 = sbr.rel (%p726) target = $region76
        $region75: #{_lambda_.5} parent=63 // pred_region
          %p729 = scmp.lt.s32.totalorder %s32, 1
          %s730 = scalar_select %p729, %s32, 1
          %s731 = scalar_lea.vmem %s8, %s730
        $region76: #{_lambda_.5} parent=63 // pred_fallthru
          _
      $region64: #{_lambda_.5} parent=5 // pred_fallthru
        _
    $region6: #{_lambda_.5} parent=1 // loop_footer
      %s25 = sadd.s32 1, %s21
    $region7: #{_lambda_.5} parent=1 // loop_footer_branch
      %20 = sbr.rel target = $region3
    $region8: #{_lambda_.5} parent=1 // loop_exit
      _
    %732 = vsyncpa [#allocation3], 1
    %s733 = scalar_lea.sflag [#allocation3], 1
    %734 = vsyncpa %s733, 1
    %735 = vsyncpa [#allocation5], 1
    %s736 = scalar_lea.sflag [#allocation5], 1
    %737 = vsyncpa %s736, 1

</llo_original>
